<compile_context>
chip_gen: v6e
topology: v6e:2x2x1
jax: 0.10.0
libtpu: 0.0.40
codegen_flags: <defaults>
</compile_context>

<pallas_src>
import functools

import jax
import jax.numpy as jnp
import numpy as np
from jax import lax
from jax.experimental import pallas as pl
from jax.experimental.pallas import tpu as pltpu


def lstm_seq_kernel(n_layers, hidden_size, seq_len, batch_block, unroll, *refs):
    H = hidden_size
    T = seq_len
    BB = batch_block

    # ---- unpack positional refs: inputs, outputs, scratch ----
    it = iter(refs)
    x_ref = next(it)                                  # (T, BB, input_size)
    wih_refs, whh_refs, b_refs = [], [], []
    for _ in range(n_layers):
        wih_refs.append(next(it))                     # (in_l, 4H)   pre-scaled
        whh_refs.append(next(it))                     # (H, 4H)      pre-scaled
        b_refs.append(next(it))                       # (1, 4H)      pre-scaled, f32
    wo_ref = next(it)                                 # (H, out_pad)
    bo_ref = next(it)                                 # (1, out_pad) f32
    sc_ref = next(it)                                 # (1, 4H) post-tanh scale
    off_ref = next(it)                                # (1, 4H) post-tanh offset
    h0_ref = next(it)                                 # (L, BB, H)
    c0_ref = next(it)                                 # (L, BB, H)
    y_ref = next(it)                                  # (T, BB, out_pad)
    hout_ref = next(it)                               # (L, BB, H)
    cout_ref = next(it)                               # (L, BB, H)
    x_proj = next(it)                                 # VMEM (T, BB, 4H) f32
    h_top = next(it)                                  # VMEM (T, BB, H)  f32

    w_dt = wo_ref.dtype                               # matmul-operand dtype

    # ---- prologue: batched, time-independent layer-0 input projection ----
    # (embed Linear is algebraically folded into Wih0; bias folded too)
    in_sz = x_ref.shape[2]
    x_flat = x_ref[...].reshape(T * BB, in_sz).astype(w_dt)
    proj = jnp.dot(x_flat, wih_refs[0][...], preferred_element_type=jnp.float32)
    proj = proj + b_refs[0][...]
    x_proj[...] = proj.reshape(T, BB, 4 * H)

    # ---- hoisted loop-invariant broadcasts ----
    sc_b = jnp.broadcast_to(sc_ref[...], (BB, 4 * H))
    off_b = jnp.broadcast_to(off_ref[...], (BB, 4 * H))
    b_b = [None] + [jnp.broadcast_to(b_refs[l][...], (BB, 4 * H))
                    for l in range(1, n_layers)]

    # ---- serial recurrence over time (state carried as fori_loop values) ----
    # NOTE: H=32 gate slices below run at 25% lane utilization; they become
    # free tile-aligned ops once H (or B) is grown to tile-aligned sizes.
    def step(t, carry):
        hs, cs = carry
        new_h, new_c = [], []
        h_in = None
        for l in range(n_layers):                     # static -> unrolled
            h = hs[l]
            c = cs[l]
            g_rec = jnp.dot(h.astype(w_dt), whh_refs[l][...],
                            preferred_element_type=jnp.float32)
            if l == 0:
                gates = x_proj[t] + g_rec             # bias already folded in
            else:
                gates = (jnp.dot(h_in.astype(w_dt), wih_refs[l][...],
                                 preferred_element_type=jnp.float32)
                         + g_rec + b_b[l])
            t_all = jnp.tanh(gates)                   # single full-width tanh
            act = t_all * sc_b + off_b                # sigmoid(i,f,o) / tanh(g)
            i_g = act[:, 0 * H:1 * H]
            f_g = act[:, 1 * H:2 * H]
            g_g = act[:, 2 * H:3 * H]
            o_g = act[:, 3 * H:4 * H]
            c_new = f_g * c + i_g * g_g               # f32 cell state
            h_new = o_g * jnp.tanh(c_new)
            new_h.append(h_new)
            new_c.append(c_new)
            h_in = h_new
        h_top[t] = h_in                               # stage for batched head
        return (tuple(new_h), tuple(new_c))

    init = (tuple(h0_ref[l] for l in range(n_layers)),
            tuple(c0_ref[l] for l in range(n_layers)))
    h_fin, c_fin = lax.fori_loop(0, T, step, init, unroll=unroll)

    for l in range(n_layers):
        hout_ref[l] = h_fin[l]
        cout_ref[l] = c_fin[l]

    # ---- epilogue: batched output head over all (t, b) rows, lane-dense ----
    h_all = h_top[...].reshape(T * BB, H).astype(w_dt)
    y = jnp.tanh(jnp.dot(h_all, wo_ref[...], preferred_element_type=jnp.float32)
                 + bo_ref[...])
    y_ref[...] = y.reshape(T, BB, y.shape[1])


def prepare_params(params, n_layers, hidden_size, weight_dtype):
    """Fold embed into layer 0, bake the 0.5 sigmoid pre-scale into W/b,
    build post-tanh scale/offset rows, pad the head to 128 lanes, cast
    matmul weights to weight_dtype (biases stay f32)."""
    H = hidden_size
    we, be = params["we"], params["be"]
    wih, whh, bias = params["wih"], params["whh"], params["bias"]
    wo, bo = params["wo"], params["bo"]

    col = jnp.arange(4 * H)
    is_g = (col >= 2 * H) & (col < 3 * H)
    pre = jnp.where(is_g, 1.0, 0.5).astype(jnp.float32)         # pre-tanh scale
    post_sc = jnp.where(is_g, 1.0, 0.5).astype(jnp.float32)[None, :]
    post_off = jnp.where(is_g, 0.0, 0.5).astype(jnp.float32)[None, :]

    wih_list, whh_list, b_list = [], [], []
    for l in range(n_layers):
        if l == 0:
            w_top = we @ wih[0]                       # embed fold: (in, 4H)
            b_l = be @ wih[0] + bias[0]               # (1, 4H)
        else:
            w_top = wih[l]
            b_l = bias[l]
        wih_list.append((w_top * pre[None, :]).astype(weight_dtype))
        whh_list.append((whh[l] * pre[None, :]).astype(weight_dtype))
        b_list.append((b_l * pre[None, :]).astype(jnp.float32))

    out_size = wo.shape[1]
    out_pad = pl.cdiv(out_size, 128) * 128
    wo_pad = jnp.pad(wo, ((0, 0), (0, out_pad - out_size))).astype(weight_dtype)
    bo_pad = jnp.pad(bo, ((0, 0), (0, out_pad - out_size))).astype(jnp.float32)
    return wih_list, whh_list, b_list, wo_pad, bo_pad, post_sc, post_off, out_pad


def lstm_forward_seq(x_seq, params, h0, c0, *, n_layers, hidden_size,
                     batch_block=None, weight_dtype=jnp.float32):
    """Runs T timesteps of lstm.forward() (state carried across steps) in one
    pallas_call.  Grid is over independent batch chunks (parallel); the time
    loop lives inside the kernel.  Returns (y (T,B,out), h (L,B,H), c (L,B,H))."""
    T, B, input_size = x_seq.shape
    H = hidden_size
    out_size = params["wo"].shape[1]
    BB = B if batch_block is None else batch_block
    assert B % BB == 0 and BB % 8 == 0
    nb = B // BB

    (wih_l, whh_l, b_l, wo_pad, bo_pad,
     post_sc, post_off, out_pad) = prepare_params(params, n_layers, H, weight_dtype)

    unroll = True if T <= 16 else False
    kernel = functools.partial(lstm_seq_kernel, n_layers, H, T, BB, unroll)

    c2 = lambda b: (0, 0)
    chunk3 = lambda b: (0, b, 0)

    in_specs = [pl.BlockSpec((T, BB, input_size), chunk3)]
    inputs = [x_seq]
    for l in range(n_layers):
        in_specs += [pl.BlockSpec(wih_l[l].shape, c2),
                     pl.BlockSpec(whh_l[l].shape, c2),
                     pl.BlockSpec(b_l[l].shape, c2)]
        inputs += [wih_l[l], whh_l[l], b_l[l]]
    in_specs += [
        pl.BlockSpec(wo_pad.shape, c2),
        pl.BlockSpec(bo_pad.shape, c2),
        pl.BlockSpec(post_sc.shape, c2),
        pl.BlockSpec(post_off.shape, c2),
        pl.BlockSpec((n_layers, BB, H), chunk3),
        pl.BlockSpec((n_layers, BB, H), chunk3),
    ]
    inputs += [wo_pad, bo_pad, post_sc, post_off, h0, c0]

    out_shapes = (
        jax.ShapeDtypeStruct((T, B, out_pad), jnp.float32),
        jax.ShapeDtypeStruct((n_layers, B, H), jnp.float32),
        jax.ShapeDtypeStruct((n_layers, B, H), jnp.float32),
    )
    out_specs = (
        pl.BlockSpec((T, BB, out_pad), chunk3),
        pl.BlockSpec((n_layers, BB, H), chunk3),
        pl.BlockSpec((n_layers, BB, H), chunk3),
    )

    y_pad, h_new, c_new = pl.pallas_call(
        kernel,
        out_shape=out_shapes,
        grid_spec=pltpu.PrefetchScalarGridSpec(
            num_scalar_prefetch=0,
            grid=(nb,),                               # independent batch chunks
            in_specs=in_specs,
            out_specs=out_specs,
            scratch_shapes=[
                pltpu.VMEM((T, BB, 4 * H), jnp.float32),   # hoisted layer-0 proj
                pltpu.VMEM((T, BB, H), jnp.float32),       # top-layer h per step
            ],
        ),
        compiler_params=pltpu.CompilerParams(
            dimension_semantics=("parallel",),        # batch axis: megacore-safe
            vmem_limit_bytes=32 * 1024 * 1024),       # headroom for larger H (v5e default is 16 MiB)
    )(*inputs)
    return y_pad[:, :, :out_size], h_new, c_new


def lstm_forward(x, params, h0, c0, *, n_layers, hidden_size,
                 weight_dtype=jnp.float32):
    """Single-step forward matching the PyTorch module exactly (T = 1)."""
    y, h_new, c_new = lstm_forward_seq(
        x[None], params, h0, c0, n_layers=n_layers, hidden_size=hidden_size,
        weight_dtype=weight_dtype)
    return y[0], h_new, c_new


def make_params(key, input_size, hidden_size, output_size, n_layers):
    """Deterministic synthetic parameters, stored pre-transposed as (in, out)."""
    ks = jax.random.split(key, 8)
    s = 0.1
    we = s * jax.random.normal(ks[0], (input_size, hidden_size), jnp.float32)
    be = s * jax.random.normal(ks[1], (1, hidden_size), jnp.float32)
    wih = s * jax.random.normal(ks[2], (n_layers, hidden_size, 4 * hidden_size), jnp.float32)
    whh = s * jax.random.normal(ks[3], (n_layers, hidden_size, 4 * hidden_size), jnp.float32)
    # bias = bias_ih + bias_hh (always summed in the LSTMCell equations)
    bias = s * jax.random.normal(ks[4], (n_layers, 1, 4 * hidden_size), jnp.float32)
    wo = s * jax.random.normal(ks[5], (hidden_size, output_size), jnp.float32)
    bo = s * jax.random.normal(ks[6], (1, output_size), jnp.float32)
    return dict(we=we, be=be, wih=wih, whh=whh, bias=bias, wo=wo, bo=bo)


def ref_forward_seq(x_seq, p, h0, c0, n_layers, hidden_size):
    """Pure-JAX reference: the PyTorch-equivalent forward() once per step,
    carrying hidden state (same math as the original module)."""
    H = hidden_size
    h = [h0[l] for l in range(n_layers)]
    c = [c0[l] for l in range(n_layers)]
    ys = []
    for t in range(x_seq.shape[0]):
        h_in = x_seq[t] @ p["we"] + p["be"]
        for l in range(n_layers):
            gates = h_in @ p["wih"][l] + h[l] @ p["whh"][l] + p["bias"][l]
            i_g = jax.nn.sigmoid(gates[:, 0 * H:1 * H])
            f_g = jax.nn.sigmoid(gates[:, 1 * H:2 * H])
            g_g = jnp.tanh(gates[:, 2 * H:3 * H])
            o_g = jax.nn.sigmoid(gates[:, 3 * H:4 * H])
            c[l] = f_g * c[l] + i_g * g_g
            h[l] = o_g * jnp.tanh(c[l])
            h_in = h[l]
        ys.append(jnp.tanh(h_in @ p["wo"] + p["bo"]))
    return jnp.stack(ys), jnp.stack(h), jnp.stack(c)


if __name__ == "__main__":
    input_size = 16
    output_size = 16
    hidden_size = 32
    n_layers = 2
    batch_size = 16
    seq_len = 8

    key = jax.random.PRNGKey(0)
    kx, kp = jax.random.split(key)

    x_seq = jax.random.normal(kx, (seq_len, batch_size, input_size), jnp.float32)
    params = make_params(kp, input_size, hidden_size, output_size, n_layers)

    # init_hidden(): zeros for every layer's (h, c)
    h0 = jnp.zeros((n_layers, batch_size, hidden_size), jnp.float32)
    c0 = jnp.zeros((n_layers, batch_size, hidden_size), jnp.float32)

    ref_y, ref_h, ref_c = ref_forward_seq(x_seq, params, h0, c0, n_layers, hidden_size)

    # f32 weights; two parallel batch chunks (uses v7x's second TensorCore)
    y, h_new, c_new = lstm_forward_seq(
        x_seq, params, h0, c0, n_layers=n_layers, hidden_size=hidden_size,
        batch_block=8, weight_dtype=jnp.float32)
    jax.block_until_ready((y, h_new, c_new))
    np.testing.assert_allclose(np.asarray(y), np.asarray(ref_y), rtol=1e-4, atol=1e-4)
    np.testing.assert_allclose(np.asarray(h_new), np.asarray(ref_h), rtol=1e-4, atol=1e-4)
    np.testing.assert_allclose(np.asarray(c_new), np.asarray(ref_c), rtol=1e-4, atol=1e-4)

    # bf16 matmul weights/operands, f32 accumulation and cell state
    yb, hb, cb = lstm_forward_seq(
        x_seq, params, h0, c0, n_layers=n_layers, hidden_size=hidden_size,
        weight_dtype=jnp.bfloat16)
    jax.block_until_ready((yb, hb, cb))
    np.testing.assert_allclose(np.asarray(yb), np.asarray(ref_y), rtol=5e-2, atol=5e-2)

    # single-step path (exact module.forward semantics)
    y1, h1, c1 = lstm_forward(
        x_seq[0], params, h0, c0, n_layers=n_layers, hidden_size=hidden_size)
    jax.block_until_ready((y1, h1, c1))
    np.testing.assert_allclose(np.asarray(y1), np.asarray(ref_y[0]), rtol=1e-4, atol=1e-4)

    print("KERNEL_OK")
</pallas_src>

<mosaic_0001>
module attributes {stable_mosaic.version = 11 : i64} {
  func.func @lstm_seq_kernel(%arg0: i32, %arg1: memref<8x8x16xf32, #tpu.memory_space<vmem>>, %arg2: memref<16x128xf32, #tpu.memory_space<vmem>>, %arg3: memref<32x128xf32, #tpu.memory_space<vmem>>, %arg4: memref<1x128xf32, #tpu.memory_space<vmem>>, %arg5: memref<32x128xf32, #tpu.memory_space<vmem>>, %arg6: memref<32x128xf32, #tpu.memory_space<vmem>>, %arg7: memref<1x128xf32, #tpu.memory_space<vmem>>, %arg8: memref<32x128xf32, #tpu.memory_space<vmem>>, %arg9: memref<1x128xf32, #tpu.memory_space<vmem>>, %arg10: memref<1x128xf32, #tpu.memory_space<vmem>>, %arg11: memref<1x128xf32, #tpu.memory_space<vmem>>, %arg12: memref<2x8x32xf32, #tpu.memory_space<vmem>>, %arg13: memref<2x8x32xf32, #tpu.memory_space<vmem>>, %arg14: memref<8x8x128xf32, #tpu.memory_space<vmem>>, %arg15: memref<2x8x32xf32, #tpu.memory_space<vmem>>, %arg16: memref<2x8x32xf32, #tpu.memory_space<vmem>>, %arg17: memref<8x8x128xf32, #tpu.memory_space<vmem>>, %arg18: memref<8x8x32xf32, #tpu.memory_space<vmem>>) attributes {dimension_semantics = [#tpu.dimension_semantics<parallel>], iteration_bounds = array<i64: 2>, scalar_prefetch = 0 : i64, scratch_operands = 2 : i64, tpu.core_type = #tpu.core_type<tc>, window_params = [{transform_indices = @transform_0, window_bounds = array<i64: 8, 8, 16>}, {pipeline_mode = #tpu.pipeline_mode<synchronous>, transform_indices = @transform_1, window_bounds = array<i64: 16, 128>}, {pipeline_mode = #tpu.pipeline_mode<synchronous>, transform_indices = @transform_2, window_bounds = array<i64: 32, 128>}, {pipeline_mode = #tpu.pipeline_mode<synchronous>, transform_indices = @transform_3, window_bounds = array<i64: 1, 128>}, {pipeline_mode = #tpu.pipeline_mode<synchronous>, transform_indices = @transform_4, window_bounds = array<i64: 32, 128>}, {pipeline_mode = #tpu.pipeline_mode<synchronous>, transform_indices = @transform_5, window_bounds = array<i64: 32, 128>}, {pipeline_mode = #tpu.pipeline_mode<synchronous>, transform_indices = @transform_6, window_bounds = array<i64: 1, 128>}, {pipeline_mode = #tpu.pipeline_mode<synchronous>, transform_indices = @transform_7, window_bounds = array<i64: 32, 128>}, {pipeline_mode = #tpu.pipeline_mode<synchronous>, transform_indices = @transform_8, window_bounds = array<i64: 1, 128>}, {pipeline_mode = #tpu.pipeline_mode<synchronous>, transform_indices = @transform_9, window_bounds = array<i64: 1, 128>}, {pipeline_mode = #tpu.pipeline_mode<synchronous>, transform_indices = @transform_10, window_bounds = array<i64: 1, 128>}, {transform_indices = @transform_11, window_bounds = array<i64: 2, 8, 32>}, {transform_indices = @transform_12, window_bounds = array<i64: 2, 8, 32>}, {transform_indices = @transform_13, window_bounds = array<i64: 8, 8, 128>}, {transform_indices = @transform_14, window_bounds = array<i64: 2, 8, 32>}, {transform_indices = @transform_15, window_bounds = array<i64: 2, 8, 32>}]} {
    %c0 = arith.constant 0 : index
    %c0_0 = arith.constant 0 : index
    %c0_1 = arith.constant 0 : index
    %0 = vector.load %arg1[%c0, %c0_0, %c0_1] : memref<8x8x16xf32, #tpu.memory_space<vmem>>, vector<8x8x16xf32>
    %1 = vector.shape_cast %0 : vector<8x8x16xf32> to vector<64x16xf32>
    %c0_2 = arith.constant 0 : index
    %c0_3 = arith.constant 0 : index
    %2 = vector.load %arg2[%c0_2, %c0_3] : memref<16x128xf32, #tpu.memory_space<vmem>>, vector<16x128xf32>
    %cst = arith.constant dense<0.000000e+00> : vector<64x128xf32>
    %3 = tpu.matmul %1, %2, %cst {dimension_numbers = #tpu.dot_dimension_numbers<[1], [0], [0], [1], [0, 0, 1, 1], [], []>} : vector<64x16xf32>, vector<16x128xf32>, vector<64x128xf32> -> vector<64x128xf32>
    %c0_4 = arith.constant 0 : index
    %c0_5 = arith.constant 0 : index
    %4 = vector.load %arg4[%c0_4, %c0_5] : memref<1x128xf32, #tpu.memory_space<vmem>>, vector<1x128xf32>
    %5 = vector.broadcast %4 : vector<1x128xf32> to vector<64x128xf32>
    %6 = arith.addf %3, %5 : vector<64x128xf32>
    %7 = vector.shape_cast %6 : vector<64x128xf32> to vector<8x8x128xf32>
    %c0_6 = arith.constant 0 : index
    %c0_7 = arith.constant 0 : index
    %c0_8 = arith.constant 0 : index
    %8 = vector.load %arg17[%c0_6, %c0_7, %c0_8] : memref<8x8x128xf32, #tpu.memory_space<vmem>>, vector<8x8x128xf32>
    tpu.vector_store %arg17[%c0_6, %c0_7, %c0_8], %7 {strides = array<i32>} : memref<8x8x128xf32, #tpu.memory_space<vmem>>, vector<8x8x128xf32>,
    %c0_9 = arith.constant 0 : index
    %c0_10 = arith.constant 0 : index
    %9 = vector.load %arg10[%c0_9, %c0_10] : memref<1x128xf32, #tpu.memory_space<vmem>>, vector<1x128xf32>
    %10 = vector.shape_cast %9 : vector<1x128xf32> to vector<1x128xf32>
    %11 = vector.broadcast %10 : vector<1x128xf32> to vector<8x128xf32>
    %c0_11 = arith.constant 0 : index
    %c0_12 = arith.constant 0 : index
    %12 = vector.load %arg11[%c0_11, %c0_12] : memref<1x128xf32, #tpu.memory_space<vmem>>, vector<1x128xf32>
    %13 = vector.shape_cast %12 : vector<1x128xf32> to vector<1x128xf32>
    %14 = vector.broadcast %13 : vector<1x128xf32> to vector<8x128xf32>
    %c0_13 = arith.constant 0 : index
    %c0_14 = arith.constant 0 : index
    %15 = vector.load %arg7[%c0_13, %c0_14] : memref<1x128xf32, #tpu.memory_space<vmem>>, vector<1x128xf32>
    %16 = vector.shape_cast %15 : vector<1x128xf32> to vector<1x128xf32>
    %17 = vector.broadcast %16 : vector<1x128xf32> to vector<8x128xf32>
    %c0_15 = arith.constant 0 : index
    %c0_16 = arith.constant 0 : index
    %c0_17 = arith.constant 0 : index
    %18 = vector.load %arg12[%c0_15, %c0_16, %c0_17] : memref<2x8x32xf32, #tpu.memory_space<vmem>>, vector<1x8x32xf32>
    %19 = vector.shape_cast %18 : vector<1x8x32xf32> to vector<8x32xf32>
    %c1 = arith.constant 1 : index
    %c0_18 = arith.constant 0 : index
    %c0_19 = arith.constant 0 : index
    %20 = vector.load %arg12[%c1, %c0_18, %c0_19] : memref<2x8x32xf32, #tpu.memory_space<vmem>>, vector<1x8x32xf32>
    %21 = vector.shape_cast %20 : vector<1x8x32xf32> to vector<8x32xf32>
    %c0_20 = arith.constant 0 : index
    %c0_21 = arith.constant 0 : index
    %c0_22 = arith.constant 0 : index
    %22 = vector.load %arg13[%c0_20, %c0_21, %c0_22] : memref<2x8x32xf32, #tpu.memory_space<vmem>>, vector<1x8x32xf32>
    %23 = vector.shape_cast %22 : vector<1x8x32xf32> to vector<8x32xf32>
    %c1_23 = arith.constant 1 : index
    %c0_24 = arith.constant 0 : index
    %c0_25 = arith.constant 0 : index
    %24 = vector.load %arg13[%c1_23, %c0_24, %c0_25] : memref<2x8x32xf32, #tpu.memory_space<vmem>>, vector<1x8x32xf32>
    %25 = vector.shape_cast %24 : vector<1x8x32xf32> to vector<8x32xf32>
    %c0_i32 = arith.constant 0 : i32
    %c0_26 = arith.constant 0 : index
    %c0_27 = arith.constant 0 : index
    %26 = vector.load %arg3[%c0_26, %c0_27] : memref<32x128xf32, #tpu.memory_space<vmem>>, vector<32x128xf32>
    %cst_28 = arith.constant dense<0.000000e+00> : vector<8x128xf32>
    %27 = tpu.matmul %19, %26, %cst_28 {dimension_numbers = #tpu.dot_dimension_numbers<[1], [0], [0], [1], [0, 0, 1, 1], [], []>} : vector<8x32xf32>, vector<32x128xf32>, vector<8x128xf32> -> vector<8x128xf32>
    %28 = arith.index_cast %c0_i32 : i32 to index
    %c0_29 = arith.constant 0 : index
    %c0_30 = arith.constant 0 : index
    %29 = vector.load %arg17[%28, %c0_29, %c0_30] : memref<8x8x128xf32, #tpu.memory_space<vmem>>, vector<1x8x128xf32>
    %30 = vector.shape_cast %29 : vector<1x8x128xf32> to vector<8x128xf32>
    %31 = arith.addf %30, %27 : vector<8x128xf32>
    %32 = math.tanh %31 : vector<8x128xf32>
    %33 = arith.mulf %32, %11 : vector<8x128xf32>
    %34 = arith.addf %33, %14 : vector<8x128xf32>
    %35 = vector.extract_strided_slice %34 {offsets = [0, 0], sizes = [8, 32], strides = [1, 1]} : vector<8x128xf32> to vector<8x32xf32>
    %36 = vector.extract_strided_slice %34 {offsets = [0, 32], sizes = [8, 32], strides = [1, 1]} : vector<8x128xf32> to vector<8x32xf32>
    %37 = vector.extract_strided_slice %34 {offsets = [0, 64], sizes = [8, 32], strides = [1, 1]} : vector<8x128xf32> to vector<8x32xf32>
    %38 = vector.extract_strided_slice %34 {offsets = [0, 96], sizes = [8, 32], strides = [1, 1]} : vector<8x128xf32> to vector<8x32xf32>
    %39 = arith.mulf %36, %23 : vector<8x32xf32>
    %40 = arith.mulf %35, %37 : vector<8x32xf32>
    %41 = arith.addf %39, %40 : vector<8x32xf32>
    %42 = math.tanh %41 : vector<8x32xf32>
    %43 = arith.mulf %38, %42 : vector<8x32xf32>
    %c0_31 = arith.constant 0 : index
    %c0_32 = arith.constant 0 : index
    %44 = vector.load %arg6[%c0_31, %c0_32] : memref<32x128xf32, #tpu.memory_space<vmem>>, vector<32x128xf32>
    %cst_33 = arith.constant dense<0.000000e+00> : vector<8x128xf32>
    %45 = tpu.matmul %21, %44, %cst_33 {dimension_numbers = #tpu.dot_dimension_numbers<[1], [0], [0], [1], [0, 0, 1, 1], [], []>} : vector<8x32xf32>, vector<32x128xf32>, vector<8x128xf32> -> vector<8x128xf32>
    %c0_34 = arith.constant 0 : index
    %c0_35 = arith.constant 0 : index
    %46 = vector.load %arg5[%c0_34, %c0_35] : memref<32x128xf32, #tpu.memory_space<vmem>>, vector<32x128xf32>
    %cst_36 = arith.constant dense<0.000000e+00> : vector<8x128xf32>
    %47 = tpu.matmul %43, %46, %cst_36 {dimension_numbers = #tpu.dot_dimension_numbers<[1], [0], [0], [1], [0, 0, 1, 1], [], []>} : vector<8x32xf32>, vector<32x128xf32>, vector<8x128xf32> -> vector<8x128xf32>
    %48 = arith.addf %47, %45 : vector<8x128xf32>
    %49 = arith.addf %48, %17 : vector<8x128xf32>
    %50 = math.tanh %49 : vector<8x128xf32>
    %51 = arith.mulf %50, %11 : vector<8x128xf32>
    %52 = arith.addf %51, %14 : vector<8x128xf32>
    %53 = vector.extract_strided_slice %52 {offsets = [0, 0], sizes = [8, 32], strides = [1, 1]} : vector<8x128xf32> to vector<8x32xf32>
    %54 = vector.extract_strided_slice %52 {offsets = [0, 32], sizes = [8, 32], strides = [1, 1]} : vector<8x128xf32> to vector<8x32xf32>
    %55 = vector.extract_strided_slice %52 {offsets = [0, 64], sizes = [8, 32], strides = [1, 1]} : vector<8x128xf32> to vector<8x32xf32>
    %56 = vector.extract_strided_slice %52 {offsets = [0, 96], sizes = [8, 32], strides = [1, 1]} : vector<8x128xf32> to vector<8x32xf32>
    %57 = arith.mulf %54, %25 : vector<8x32xf32>
    %58 = arith.mulf %53, %55 : vector<8x32xf32>
    %59 = arith.addf %57, %58 : vector<8x32xf32>
    %60 = math.tanh %59 : vector<8x32xf32>
    %61 = arith.mulf %56, %60 : vector<8x32xf32>
    %62 = arith.index_cast %c0_i32 : i32 to index
    %c0_37 = arith.constant 0 : index
    %c0_38 = arith.constant 0 : index
    %63 = vector.load %arg18[%62, %c0_37, %c0_38] : memref<8x8x32xf32, #tpu.memory_space<vmem>>, vector<1x8x32xf32>
    %64 = vector.shape_cast %63 : vector<1x8x32xf32> to vector<8x32xf32>
    %65 = vector.shape_cast %61 : vector<8x32xf32> to vector<1x8x32xf32>
    tpu.vector_store %arg18[%62, %c0_37, %c0_38], %65 {strides = array<i32>} : memref<8x8x32xf32, #tpu.memory_space<vmem>>, vector<1x8x32xf32>,
    %c1_i32 = arith.constant 1 : i32
    %c0_39 = arith.constant 0 : index
    %c0_40 = arith.constant 0 : index
    %66 = vector.load %arg3[%c0_39, %c0_40] : memref<32x128xf32, #tpu.memory_space<vmem>>, vector<32x128xf32>
    %cst_41 = arith.constant dense<0.000000e+00> : vector<8x128xf32>
    %67 = tpu.matmul %43, %66, %cst_41 {dimension_numbers = #tpu.dot_dimension_numbers<[1], [0], [0], [1], [0, 0, 1, 1], [], []>} : vector<8x32xf32>, vector<32x128xf32>, vector<8x128xf32> -> vector<8x128xf32>
    %68 = arith.index_cast %c1_i32 : i32 to index
    %c0_42 = arith.constant 0 : index
    %c0_43 = arith.constant 0 : index
    %69 = vector.load %arg17[%68, %c0_42, %c0_43] : memref<8x8x128xf32, #tpu.memory_space<vmem>>, vector<1x8x128xf32>
    %70 = vector.shape_cast %69 : vector<1x8x128xf32> to vector<8x128xf32>
    %71 = arith.addf %70, %67 : vector<8x128xf32>
    %72 = math.tanh %71 : vector<8x128xf32>
    %73 = arith.mulf %72, %11 : vector<8x128xf32>
    %74 = arith.addf %73, %14 : vector<8x128xf32>
    %75 = vector.extract_strided_slice %74 {offsets = [0, 0], sizes = [8, 32], strides = [1, 1]} : vector<8x128xf32> to vector<8x32xf32>
    %76 = vector.extract_strided_slice %74 {offsets = [0, 32], sizes = [8, 32], strides = [1, 1]} : vector<8x128xf32> to vector<8x32xf32>
    %77 = vector.extract_strided_slice %74 {offsets = [0, 64], sizes = [8, 32], strides = [1, 1]} : vector<8x128xf32> to vector<8x32xf32>
    %78 = vector.extract_strided_slice %74 {offsets = [0, 96], sizes = [8, 32], strides = [1, 1]} : vector<8x128xf32> to vector<8x32xf32>
    %79 = arith.mulf %76, %41 : vector<8x32xf32>
    %80 = arith.mulf %75, %77 : vector<8x32xf32>
    %81 = arith.addf %79, %80 : vector<8x32xf32>
    %82 = math.tanh %81 : vector<8x32xf32>
    %83 = arith.mulf %78, %82 : vector<8x32xf32>
    %c0_44 = arith.constant 0 : index
    %c0_45 = arith.constant 0 : index
    %84 = vector.load %arg6[%c0_44, %c0_45] : memref<32x128xf32, #tpu.memory_space<vmem>>, vector<32x128xf32>
    %cst_46 = arith.constant dense<0.000000e+00> : vector<8x128xf32>
    %85 = tpu.matmul %61, %84, %cst_46 {dimension_numbers = #tpu.dot_dimension_numbers<[1], [0], [0], [1], [0, 0, 1, 1], [], []>} : vector<8x32xf32>, vector<32x128xf32>, vector<8x128xf32> -> vector<8x128xf32>
    %c0_47 = arith.constant 0 : index
    %c0_48 = arith.constant 0 : index
    %86 = vector.load %arg5[%c0_47, %c0_48] : memref<32x128xf32, #tpu.memory_space<vmem>>, vector<32x128xf32>
    %cst_49 = arith.constant dense<0.000000e+00> : vector<8x128xf32>
    %87 = tpu.matmul %83, %86, %cst_49 {dimension_numbers = #tpu.dot_dimension_numbers<[1], [0], [0], [1], [0, 0, 1, 1], [], []>} : vector<8x32xf32>, vector<32x128xf32>, vector<8x128xf32> -> vector<8x128xf32>
    %88 = arith.addf %87, %85 : vector<8x128xf32>
    %89 = arith.addf %88, %17 : vector<8x128xf32>
    %90 = math.tanh %89 : vector<8x128xf32>
    %91 = arith.mulf %90, %11 : vector<8x128xf32>
    %92 = arith.addf %91, %14 : vector<8x128xf32>
    %93 = vector.extract_strided_slice %92 {offsets = [0, 0], sizes = [8, 32], strides = [1, 1]} : vector<8x128xf32> to vector<8x32xf32>
    %94 = vector.extract_strided_slice %92 {offsets = [0, 32], sizes = [8, 32], strides = [1, 1]} : vector<8x128xf32> to vector<8x32xf32>
    %95 = vector.extract_strided_slice %92 {offsets = [0, 64], sizes = [8, 32], strides = [1, 1]} : vector<8x128xf32> to vector<8x32xf32>
    %96 = vector.extract_strided_slice %92 {offsets = [0, 96], sizes = [8, 32], strides = [1, 1]} : vector<8x128xf32> to vector<8x32xf32>
    %97 = arith.mulf %94, %59 : vector<8x32xf32>
    %98 = arith.mulf %93, %95 : vector<8x32xf32>
    %99 = arith.addf %97, %98 : vector<8x32xf32>
    %100 = math.tanh %99 : vector<8x32xf32>
    %101 = arith.mulf %96, %100 : vector<8x32xf32>
    %102 = arith.index_cast %c1_i32 : i32 to index
    %c0_50 = arith.constant 0 : index
    %c0_51 = arith.constant 0 : index
    %103 = vector.load %arg18[%102, %c0_50, %c0_51] : memref<8x8x32xf32, #tpu.memory_space<vmem>>, vector<1x8x32xf32>
    %104 = vector.shape_cast %103 : vector<1x8x32xf32> to vector<8x32xf32>
    %105 = vector.shape_cast %101 : vector<8x32xf32> to vector<1x8x32xf32>
    tpu.vector_store %arg18[%102, %c0_50, %c0_51], %105 {strides = array<i32>} : memref<8x8x32xf32, #tpu.memory_space<vmem>>, vector<1x8x32xf32>,
    %c2_i32 = arith.constant 2 : i32
    %c0_52 = arith.constant 0 : index
    %c0_53 = arith.constant 0 : index
    %106 = vector.load %arg3[%c0_52, %c0_53] : memref<32x128xf32, #tpu.memory_space<vmem>>, vector<32x128xf32>
    %cst_54 = arith.constant dense<0.000000e+00> : vector<8x128xf32>
    %107 = tpu.matmul %83, %106, %cst_54 {dimension_numbers = #tpu.dot_dimension_numbers<[1], [0], [0], [1], [0, 0, 1, 1], [], []>} : vector<8x32xf32>, vector<32x128xf32>, vector<8x128xf32> -> vector<8x128xf32>
    %108 = arith.index_cast %c2_i32 : i32 to index
    %c0_55 = arith.constant 0 : index
    %c0_56 = arith.constant 0 : index
    %109 = vector.load %arg17[%108, %c0_55, %c0_56] : memref<8x8x128xf32, #tpu.memory_space<vmem>>, vector<1x8x128xf32>
    %110 = vector.shape_cast %109 : vector<1x8x128xf32> to vector<8x128xf32>
    %111 = arith.addf %110, %107 : vector<8x128xf32>
    %112 = math.tanh %111 : vector<8x128xf32>
    %113 = arith.mulf %112, %11 : vector<8x128xf32>
    %114 = arith.addf %113, %14 : vector<8x128xf32>
    %115 = vector.extract_strided_slice %114 {offsets = [0, 0], sizes = [8, 32], strides = [1, 1]} : vector<8x128xf32> to vector<8x32xf32>
    %116 = vector.extract_strided_slice %114 {offsets = [0, 32], sizes = [8, 32], strides = [1, 1]} : vector<8x128xf32> to vector<8x32xf32>
    %117 = vector.extract_strided_slice %114 {offsets = [0, 64], sizes = [8, 32], strides = [1, 1]} : vector<8x128xf32> to vector<8x32xf32>
    %118 = vector.extract_strided_slice %114 {offsets = [0, 96], sizes = [8, 32], strides = [1, 1]} : vector<8x128xf32> to vector<8x32xf32>
    %119 = arith.mulf %116, %81 : vector<8x32xf32>
    %120 = arith.mulf %115, %117 : vector<8x32xf32>
    %121 = arith.addf %119, %120 : vector<8x32xf32>
    %122 = math.tanh %121 : vector<8x32xf32>
    %123 = arith.mulf %118, %122 : vector<8x32xf32>
    %c0_57 = arith.constant 0 : index
    %c0_58 = arith.constant 0 : index
    %124 = vector.load %arg6[%c0_57, %c0_58] : memref<32x128xf32, #tpu.memory_space<vmem>>, vector<32x128xf32>
    %cst_59 = arith.constant dense<0.000000e+00> : vector<8x128xf32>
    %125 = tpu.matmul %101, %124, %cst_59 {dimension_numbers = #tpu.dot_dimension_numbers<[1], [0], [0], [1], [0, 0, 1, 1], [], []>} : vector<8x32xf32>, vector<32x128xf32>, vector<8x128xf32> -> vector<8x128xf32>
    %c0_60 = arith.constant 0 : index
    %c0_61 = arith.constant 0 : index
    %126 = vector.load %arg5[%c0_60, %c0_61] : memref<32x128xf32, #tpu.memory_space<vmem>>, vector<32x128xf32>
    %cst_62 = arith.constant dense<0.000000e+00> : vector<8x128xf32>
    %127 = tpu.matmul %123, %126, %cst_62 {dimension_numbers = #tpu.dot_dimension_numbers<[1], [0], [0], [1], [0, 0, 1, 1], [], []>} : vector<8x32xf32>, vector<32x128xf32>, vector<8x128xf32> -> vector<8x128xf32>
    %128 = arith.addf %127, %125 : vector<8x128xf32>
    %129 = arith.addf %128, %17 : vector<8x128xf32>
    %130 = math.tanh %129 : vector<8x128xf32>
    %131 = arith.mulf %130, %11 : vector<8x128xf32>
    %132 = arith.addf %131, %14 : vector<8x128xf32>
    %133 = vector.extract_strided_slice %132 {offsets = [0, 0], sizes = [8, 32], strides = [1, 1]} : vector<8x128xf32> to vector<8x32xf32>
    %134 = vector.extract_strided_slice %132 {offsets = [0, 32], sizes = [8, 32], strides = [1, 1]} : vector<8x128xf32> to vector<8x32xf32>
    %135 = vector.extract_strided_slice %132 {offsets = [0, 64], sizes = [8, 32], strides = [1, 1]} : vector<8x128xf32> to vector<8x32xf32>
    %136 = vector.extract_strided_slice %132 {offsets = [0, 96], sizes = [8, 32], strides = [1, 1]} : vector<8x128xf32> to vector<8x32xf32>
    %137 = arith.mulf %134, %99 : vector<8x32xf32>
    %138 = arith.mulf %133, %135 : vector<8x32xf32>
    %139 = arith.addf %137, %138 : vector<8x32xf32>
    %140 = math.tanh %139 : vector<8x32xf32>
    %141 = arith.mulf %136, %140 : vector<8x32xf32>
    %142 = arith.index_cast %c2_i32 : i32 to index
    %c0_63 = arith.constant 0 : index
    %c0_64 = arith.constant 0 : index
    %143 = vector.load %arg18[%142, %c0_63, %c0_64] : memref<8x8x32xf32, #tpu.memory_space<vmem>>, vector<1x8x32xf32>
    %144 = vector.shape_cast %143 : vector<1x8x32xf32> to vector<8x32xf32>
    %145 = vector.shape_cast %141 : vector<8x32xf32> to vector<1x8x32xf32>
    tpu.vector_store %arg18[%142, %c0_63, %c0_64], %145 {strides = array<i32>} : memref<8x8x32xf32, #tpu.memory_space<vmem>>, vector<1x8x32xf32>,
    %c3_i32 = arith.constant 3 : i32
    %c0_65 = arith.constant 0 : index
    %c0_66 = arith.constant 0 : index
    %146 = vector.load %arg3[%c0_65, %c0_66] : memref<32x128xf32, #tpu.memory_space<vmem>>, vector<32x128xf32>
    %cst_67 = arith.constant dense<0.000000e+00> : vector<8x128xf32>
    %147 = tpu.matmul %123, %146, %cst_67 {dimension_numbers = #tpu.dot_dimension_numbers<[1], [0], [0], [1], [0, 0, 1, 1], [], []>} : vector<8x32xf32>, vector<32x128xf32>, vector<8x128xf32> -> vector<8x128xf32>
    %148 = arith.index_cast %c3_i32 : i32 to index
    %c0_68 = arith.constant 0 : index
    %c0_69 = arith.constant 0 : index
    %149 = vector.load %arg17[%148, %c0_68, %c0_69] : memref<8x8x128xf32, #tpu.memory_space<vmem>>, vector<1x8x128xf32>
    %150 = vector.shape_cast %149 : vector<1x8x128xf32> to vector<8x128xf32>
    %151 = arith.addf %150, %147 : vector<8x128xf32>
    %152 = math.tanh %151 : vector<8x128xf32>
    %153 = arith.mulf %152, %11 : vector<8x128xf32>
    %154 = arith.addf %153, %14 : vector<8x128xf32>
    %155 = vector.extract_strided_slice %154 {offsets = [0, 0], sizes = [8, 32], strides = [1, 1]} : vector<8x128xf32> to vector<8x32xf32>
    %156 = vector.extract_strided_slice %154 {offsets = [0, 32], sizes = [8, 32], strides = [1, 1]} : vector<8x128xf32> to vector<8x32xf32>
    %157 = vector.extract_strided_slice %154 {offsets = [0, 64], sizes = [8, 32], strides = [1, 1]} : vector<8x128xf32> to vector<8x32xf32>
    %158 = vector.extract_strided_slice %154 {offsets = [0, 96], sizes = [8, 32], strides = [1, 1]} : vector<8x128xf32> to vector<8x32xf32>
    %159 = arith.mulf %156, %121 : vector<8x32xf32>
    %160 = arith.mulf %155, %157 : vector<8x32xf32>
    %161 = arith.addf %159, %160 : vector<8x32xf32>
    %162 = math.tanh %161 : vector<8x32xf32>
    %163 = arith.mulf %158, %162 : vector<8x32xf32>
    %c0_70 = arith.constant 0 : index
    %c0_71 = arith.constant 0 : index
    %164 = vector.load %arg6[%c0_70, %c0_71] : memref<32x128xf32, #tpu.memory_space<vmem>>, vector<32x128xf32>
    %cst_72 = arith.constant dense<0.000000e+00> : vector<8x128xf32>
    %165 = tpu.matmul %141, %164, %cst_72 {dimension_numbers = #tpu.dot_dimension_numbers<[1], [0], [0], [1], [0, 0, 1, 1], [], []>} : vector<8x32xf32>, vector<32x128xf32>, vector<8x128xf32> -> vector<8x128xf32>
    %c0_73 = arith.constant 0 : index
    %c0_74 = arith.constant 0 : index
    %166 = vector.load %arg5[%c0_73, %c0_74] : memref<32x128xf32, #tpu.memory_space<vmem>>, vector<32x128xf32>
    %cst_75 = arith.constant dense<0.000000e+00> : vector<8x128xf32>
    %167 = tpu.matmul %163, %166, %cst_75 {dimension_numbers = #tpu.dot_dimension_numbers<[1], [0], [0], [1], [0, 0, 1, 1], [], []>} : vector<8x32xf32>, vector<32x128xf32>, vector<8x128xf32> -> vector<8x128xf32>
    %168 = arith.addf %167, %165 : vector<8x128xf32>
    %169 = arith.addf %168, %17 : vector<8x128xf32>
    %170 = math.tanh %169 : vector<8x128xf32>
    %171 = arith.mulf %170, %11 : vector<8x128xf32>
    %172 = arith.addf %171, %14 : vector<8x128xf32>
    %173 = vector.extract_strided_slice %172 {offsets = [0, 0], sizes = [8, 32], strides = [1, 1]} : vector<8x128xf32> to vector<8x32xf32>
    %174 = vector.extract_strided_slice %172 {offsets = [0, 32], sizes = [8, 32], strides = [1, 1]} : vector<8x128xf32> to vector<8x32xf32>
    %175 = vector.extract_strided_slice %172 {offsets = [0, 64], sizes = [8, 32], strides = [1, 1]} : vector<8x128xf32> to vector<8x32xf32>
    %176 = vector.extract_strided_slice %172 {offsets = [0, 96], sizes = [8, 32], strides = [1, 1]} : vector<8x128xf32> to vector<8x32xf32>
    %177 = arith.mulf %174, %139 : vector<8x32xf32>
    %178 = arith.mulf %173, %175 : vector<8x32xf32>
    %179 = arith.addf %177, %178 : vector<8x32xf32>
    %180 = math.tanh %179 : vector<8x32xf32>
    %181 = arith.mulf %176, %180 : vector<8x32xf32>
    %182 = arith.index_cast %c3_i32 : i32 to index
    %c0_76 = arith.constant 0 : index
    %c0_77 = arith.constant 0 : index
    %183 = vector.load %arg18[%182, %c0_76, %c0_77] : memref<8x8x32xf32, #tpu.memory_space<vmem>>, vector<1x8x32xf32>
    %184 = vector.shape_cast %183 : vector<1x8x32xf32> to vector<8x32xf32>
    %185 = vector.shape_cast %181 : vector<8x32xf32> to vector<1x8x32xf32>
    tpu.vector_store %arg18[%182, %c0_76, %c0_77], %185 {strides = array<i32>} : memref<8x8x32xf32, #tpu.memory_space<vmem>>, vector<1x8x32xf32>,
    %c4_i32 = arith.constant 4 : i32
    %c0_78 = arith.constant 0 : index
    %c0_79 = arith.constant 0 : index
    %186 = vector.load %arg3[%c0_78, %c0_79] : memref<32x128xf32, #tpu.memory_space<vmem>>, vector<32x128xf32>
    %cst_80 = arith.constant dense<0.000000e+00> : vector<8x128xf32>
    %187 = tpu.matmul %163, %186, %cst_80 {dimension_numbers = #tpu.dot_dimension_numbers<[1], [0], [0], [1], [0, 0, 1, 1], [], []>} : vector<8x32xf32>, vector<32x128xf32>, vector<8x128xf32> -> vector<8x128xf32>
    %188 = arith.index_cast %c4_i32 : i32 to index
    %c0_81 = arith.constant 0 : index
    %c0_82 = arith.constant 0 : index
    %189 = vector.load %arg17[%188, %c0_81, %c0_82] : memref<8x8x128xf32, #tpu.memory_space<vmem>>, vector<1x8x128xf32>
    %190 = vector.shape_cast %189 : vector<1x8x128xf32> to vector<8x128xf32>
    %191 = arith.addf %190, %187 : vector<8x128xf32>
    %192 = math.tanh %191 : vector<8x128xf32>
    %193 = arith.mulf %192, %11 : vector<8x128xf32>
    %194 = arith.addf %193, %14 : vector<8x128xf32>
    %195 = vector.extract_strided_slice %194 {offsets = [0, 0], sizes = [8, 32], strides = [1, 1]} : vector<8x128xf32> to vector<8x32xf32>
    %196 = vector.extract_strided_slice %194 {offsets = [0, 32], sizes = [8, 32], strides = [1, 1]} : vector<8x128xf32> to vector<8x32xf32>
    %197 = vector.extract_strided_slice %194 {offsets = [0, 64], sizes = [8, 32], strides = [1, 1]} : vector<8x128xf32> to vector<8x32xf32>
    %198 = vector.extract_strided_slice %194 {offsets = [0, 96], sizes = [8, 32], strides = [1, 1]} : vector<8x128xf32> to vector<8x32xf32>
    %199 = arith.mulf %196, %161 : vector<8x32xf32>
    %200 = arith.mulf %195, %197 : vector<8x32xf32>
    %201 = arith.addf %199, %200 : vector<8x32xf32>
    %202 = math.tanh %201 : vector<8x32xf32>
    %203 = arith.mulf %198, %202 : vector<8x32xf32>
    %c0_83 = arith.constant 0 : index
    %c0_84 = arith.constant 0 : index
    %204 = vector.load %arg6[%c0_83, %c0_84] : memref<32x128xf32, #tpu.memory_space<vmem>>, vector<32x128xf32>
    %cst_85 = arith.constant dense<0.000000e+00> : vector<8x128xf32>
    %205 = tpu.matmul %181, %204, %cst_85 {dimension_numbers = #tpu.dot_dimension_numbers<[1], [0], [0], [1], [0, 0, 1, 1], [], []>} : vector<8x32xf32>, vector<32x128xf32>, vector<8x128xf32> -> vector<8x128xf32>
    %c0_86 = arith.constant 0 : index
    %c0_87 = arith.constant 0 : index
    %206 = vector.load %arg5[%c0_86, %c0_87] : memref<32x128xf32, #tpu.memory_space<vmem>>, vector<32x128xf32>
    %cst_88 = arith.constant dense<0.000000e+00> : vector<8x128xf32>
    %207 = tpu.matmul %203, %206, %cst_88 {dimension_numbers = #tpu.dot_dimension_numbers<[1], [0], [0], [1], [0, 0, 1, 1], [], []>} : vector<8x32xf32>, vector<32x128xf32>, vector<8x128xf32> -> vector<8x128xf32>
    %208 = arith.addf %207, %205 : vector<8x128xf32>
    %209 = arith.addf %208, %17 : vector<8x128xf32>
    %210 = math.tanh %209 : vector<8x128xf32>
    %211 = arith.mulf %210, %11 : vector<8x128xf32>
    %212 = arith.addf %211, %14 : vector<8x128xf32>
    %213 = vector.extract_strided_slice %212 {offsets = [0, 0], sizes = [8, 32], strides = [1, 1]} : vector<8x128xf32> to vector<8x32xf32>
    %214 = vector.extract_strided_slice %212 {offsets = [0, 32], sizes = [8, 32], strides = [1, 1]} : vector<8x128xf32> to vector<8x32xf32>
    %215 = vector.extract_strided_slice %212 {offsets = [0, 64], sizes = [8, 32], strides = [1, 1]} : vector<8x128xf32> to vector<8x32xf32>
    %216 = vector.extract_strided_slice %212 {offsets = [0, 96], sizes = [8, 32], strides = [1, 1]} : vector<8x128xf32> to vector<8x32xf32>
    %217 = arith.mulf %214, %179 : vector<8x32xf32>
    %218 = arith.mulf %213, %215 : vector<8x32xf32>
    %219 = arith.addf %217, %218 : vector<8x32xf32>
    %220 = math.tanh %219 : vector<8x32xf32>
    %221 = arith.mulf %216, %220 : vector<8x32xf32>
    %222 = arith.index_cast %c4_i32 : i32 to index
    %c0_89 = arith.constant 0 : index
    %c0_90 = arith.constant 0 : index
    %223 = vector.load %arg18[%222, %c0_89, %c0_90] : memref<8x8x32xf32, #tpu.memory_space<vmem>>, vector<1x8x32xf32>
    %224 = vector.shape_cast %223 : vector<1x8x32xf32> to vector<8x32xf32>
    %225 = vector.shape_cast %221 : vector<8x32xf32> to vector<1x8x32xf32>
    tpu.vector_store %arg18[%222, %c0_89, %c0_90], %225 {strides = array<i32>} : memref<8x8x32xf32, #tpu.memory_space<vmem>>, vector<1x8x32xf32>,
    %c5_i32 = arith.constant 5 : i32
    %c0_91 = arith.constant 0 : index
    %c0_92 = arith.constant 0 : index
    %226 = vector.load %arg3[%c0_91, %c0_92] : memref<32x128xf32, #tpu.memory_space<vmem>>, vector<32x128xf32>
    %cst_93 = arith.constant dense<0.000000e+00> : vector<8x128xf32>
    %227 = tpu.matmul %203, %226, %cst_93 {dimension_numbers = #tpu.dot_dimension_numbers<[1], [0], [0], [1], [0, 0, 1, 1], [], []>} : vector<8x32xf32>, vector<32x128xf32>, vector<8x128xf32> -> vector<8x128xf32>
    %228 = arith.index_cast %c5_i32 : i32 to index
    %c0_94 = arith.constant 0 : index
    %c0_95 = arith.constant 0 : index
    %229 = vector.load %arg17[%228, %c0_94, %c0_95] : memref<8x8x128xf32, #tpu.memory_space<vmem>>, vector<1x8x128xf32>
    %230 = vector.shape_cast %229 : vector<1x8x128xf32> to vector<8x128xf32>
    %231 = arith.addf %230, %227 : vector<8x128xf32>
    %232 = math.tanh %231 : vector<8x128xf32>
    %233 = arith.mulf %232, %11 : vector<8x128xf32>
    %234 = arith.addf %233, %14 : vector<8x128xf32>
    %235 = vector.extract_strided_slice %234 {offsets = [0, 0], sizes = [8, 32], strides = [1, 1]} : vector<8x128xf32> to vector<8x32xf32>
    %236 = vector.extract_strided_slice %234 {offsets = [0, 32], sizes = [8, 32], strides = [1, 1]} : vector<8x128xf32> to vector<8x32xf32>
    %237 = vector.extract_strided_slice %234 {offsets = [0, 64], sizes = [8, 32], strides = [1, 1]} : vector<8x128xf32> to vector<8x32xf32>
    %238 = vector.extract_strided_slice %234 {offsets = [0, 96], sizes = [8, 32], strides = [1, 1]} : vector<8x128xf32> to vector<8x32xf32>
    %239 = arith.mulf %236, %201 : vector<8x32xf32>
    %240 = arith.mulf %235, %237 : vector<8x32xf32>
    %241 = arith.addf %239, %240 : vector<8x32xf32>
    %242 = math.tanh %241 : vector<8x32xf32>
    %243 = arith.mulf %238, %242 : vector<8x32xf32>
    %c0_96 = arith.constant 0 : index
    %c0_97 = arith.constant 0 : index
    %244 = vector.load %arg6[%c0_96, %c0_97] : memref<32x128xf32, #tpu.memory_space<vmem>>, vector<32x128xf32>
    %cst_98 = arith.constant dense<0.000000e+00> : vector<8x128xf32>
    %245 = tpu.matmul %221, %244, %cst_98 {dimension_numbers = #tpu.dot_dimension_numbers<[1], [0], [0], [1], [0, 0, 1, 1], [], []>} : vector<8x32xf32>, vector<32x128xf32>, vector<8x128xf32> -> vector<8x128xf32>
    %c0_99 = arith.constant 0 : index
    %c0_100 = arith.constant 0 : index
    %246 = vector.load %arg5[%c0_99, %c0_100] : memref<32x128xf32, #tpu.memory_space<vmem>>, vector<32x128xf32>
    %cst_101 = arith.constant dense<0.000000e+00> : vector<8x128xf32>
    %247 = tpu.matmul %243, %246, %cst_101 {dimension_numbers = #tpu.dot_dimension_numbers<[1], [0], [0], [1], [0, 0, 1, 1], [], []>} : vector<8x32xf32>, vector<32x128xf32>, vector<8x128xf32> -> vector<8x128xf32>
    %248 = arith.addf %247, %245 : vector<8x128xf32>
    %249 = arith.addf %248, %17 : vector<8x128xf32>
    %250 = math.tanh %249 : vector<8x128xf32>
    %251 = arith.mulf %250, %11 : vector<8x128xf32>
    %252 = arith.addf %251, %14 : vector<8x128xf32>
    %253 = vector.extract_strided_slice %252 {offsets = [0, 0], sizes = [8, 32], strides = [1, 1]} : vector<8x128xf32> to vector<8x32xf32>
    %254 = vector.extract_strided_slice %252 {offsets = [0, 32], sizes = [8, 32], strides = [1, 1]} : vector<8x128xf32> to vector<8x32xf32>
    %255 = vector.extract_strided_slice %252 {offsets = [0, 64], sizes = [8, 32], strides = [1, 1]} : vector<8x128xf32> to vector<8x32xf32>
    %256 = vector.extract_strided_slice %252 {offsets = [0, 96], sizes = [8, 32], strides = [1, 1]} : vector<8x128xf32> to vector<8x32xf32>
    %257 = arith.mulf %254, %219 : vector<8x32xf32>
    %258 = arith.mulf %253, %255 : vector<8x32xf32>
    %259 = arith.addf %257, %258 : vector<8x32xf32>
    %260 = math.tanh %259 : vector<8x32xf32>
    %261 = arith.mulf %256, %260 : vector<8x32xf32>
    %262 = arith.index_cast %c5_i32 : i32 to index
    %c0_102 = arith.constant 0 : index
    %c0_103 = arith.constant 0 : index
    %263 = vector.load %arg18[%262, %c0_102, %c0_103] : memref<8x8x32xf32, #tpu.memory_space<vmem>>, vector<1x8x32xf32>
    %264 = vector.shape_cast %263 : vector<1x8x32xf32> to vector<8x32xf32>
    %265 = vector.shape_cast %261 : vector<8x32xf32> to vector<1x8x32xf32>
    tpu.vector_store %arg18[%262, %c0_102, %c0_103], %265 {strides = array<i32>} : memref<8x8x32xf32, #tpu.memory_space<vmem>>, vector<1x8x32xf32>,
    %c6_i32 = arith.constant 6 : i32
    %c0_104 = arith.constant 0 : index
    %c0_105 = arith.constant 0 : index
    %266 = vector.load %arg3[%c0_104, %c0_105] : memref<32x128xf32, #tpu.memory_space<vmem>>, vector<32x128xf32>
    %cst_106 = arith.constant dense<0.000000e+00> : vector<8x128xf32>
    %267 = tpu.matmul %243, %266, %cst_106 {dimension_numbers = #tpu.dot_dimension_numbers<[1], [0], [0], [1], [0, 0, 1, 1], [], []>} : vector<8x32xf32>, vector<32x128xf32>, vector<8x128xf32> -> vector<8x128xf32>
    %268 = arith.index_cast %c6_i32 : i32 to index
    %c0_107 = arith.constant 0 : index
    %c0_108 = arith.constant 0 : index
    %269 = vector.load %arg17[%268, %c0_107, %c0_108] : memref<8x8x128xf32, #tpu.memory_space<vmem>>, vector<1x8x128xf32>
    %270 = vector.shape_cast %269 : vector<1x8x128xf32> to vector<8x128xf32>
    %271 = arith.addf %270, %267 : vector<8x128xf32>
    %272 = math.tanh %271 : vector<8x128xf32>
    %273 = arith.mulf %272, %11 : vector<8x128xf32>
    %274 = arith.addf %273, %14 : vector<8x128xf32>
    %275 = vector.extract_strided_slice %274 {offsets = [0, 0], sizes = [8, 32], strides = [1, 1]} : vector<8x128xf32> to vector<8x32xf32>
    %276 = vector.extract_strided_slice %274 {offsets = [0, 32], sizes = [8, 32], strides = [1, 1]} : vector<8x128xf32> to vector<8x32xf32>
    %277 = vector.extract_strided_slice %274 {offsets = [0, 64], sizes = [8, 32], strides = [1, 1]} : vector<8x128xf32> to vector<8x32xf32>
    %278 = vector.extract_strided_slice %274 {offsets = [0, 96], sizes = [8, 32], strides = [1, 1]} : vector<8x128xf32> to vector<8x32xf32>
    %279 = arith.mulf %276, %241 : vector<8x32xf32>
    %280 = arith.mulf %275, %277 : vector<8x32xf32>
    %281 = arith.addf %279, %280 : vector<8x32xf32>
    %282 = math.tanh %281 : vector<8x32xf32>
    %283 = arith.mulf %278, %282 : vector<8x32xf32>
    %c0_109 = arith.constant 0 : index
    %c0_110 = arith.constant 0 : index
    %284 = vector.load %arg6[%c0_109, %c0_110] : memref<32x128xf32, #tpu.memory_space<vmem>>, vector<32x128xf32>
    %cst_111 = arith.constant dense<0.000000e+00> : vector<8x128xf32>
    %285 = tpu.matmul %261, %284, %cst_111 {dimension_numbers = #tpu.dot_dimension_numbers<[1], [0], [0], [1], [0, 0, 1, 1], [], []>} : vector<8x32xf32>, vector<32x128xf32>, vector<8x128xf32> -> vector<8x128xf32>
    %c0_112 = arith.constant 0 : index
    %c0_113 = arith.constant 0 : index
    %286 = vector.load %arg5[%c0_112, %c0_113] : memref<32x128xf32, #tpu.memory_space<vmem>>, vector<32x128xf32>
    %cst_114 = arith.constant dense<0.000000e+00> : vector<8x128xf32>
    %287 = tpu.matmul %283, %286, %cst_114 {dimension_numbers = #tpu.dot_dimension_numbers<[1], [0], [0], [1], [0, 0, 1, 1], [], []>} : vector<8x32xf32>, vector<32x128xf32>, vector<8x128xf32> -> vector<8x128xf32>
    %288 = arith.addf %287, %285 : vector<8x128xf32>
    %289 = arith.addf %288, %17 : vector<8x128xf32>
    %290 = math.tanh %289 : vector<8x128xf32>
    %291 = arith.mulf %290, %11 : vector<8x128xf32>
    %292 = arith.addf %291, %14 : vector<8x128xf32>
    %293 = vector.extract_strided_slice %292 {offsets = [0, 0], sizes = [8, 32], strides = [1, 1]} : vector<8x128xf32> to vector<8x32xf32>
    %294 = vector.extract_strided_slice %292 {offsets = [0, 32], sizes = [8, 32], strides = [1, 1]} : vector<8x128xf32> to vector<8x32xf32>
    %295 = vector.extract_strided_slice %292 {offsets = [0, 64], sizes = [8, 32], strides = [1, 1]} : vector<8x128xf32> to vector<8x32xf32>
    %296 = vector.extract_strided_slice %292 {offsets = [0, 96], sizes = [8, 32], strides = [1, 1]} : vector<8x128xf32> to vector<8x32xf32>
    %297 = arith.mulf %294, %259 : vector<8x32xf32>
    %298 = arith.mulf %293, %295 : vector<8x32xf32>
    %299 = arith.addf %297, %298 : vector<8x32xf32>
    %300 = math.tanh %299 : vector<8x32xf32>
    %301 = arith.mulf %296, %300 : vector<8x32xf32>
    %302 = arith.index_cast %c6_i32 : i32 to index
    %c0_115 = arith.constant 0 : index
    %c0_116 = arith.constant 0 : index
    %303 = vector.load %arg18[%302, %c0_115, %c0_116] : memref<8x8x32xf32, #tpu.memory_space<vmem>>, vector<1x8x32xf32>
    %304 = vector.shape_cast %303 : vector<1x8x32xf32> to vector<8x32xf32>
    %305 = vector.shape_cast %301 : vector<8x32xf32> to vector<1x8x32xf32>
    tpu.vector_store %arg18[%302, %c0_115, %c0_116], %305 {strides = array<i32>} : memref<8x8x32xf32, #tpu.memory_space<vmem>>, vector<1x8x32xf32>,
    %c7_i32 = arith.constant 7 : i32
    %c0_117 = arith.constant 0 : index
    %c0_118 = arith.constant 0 : index
    %306 = vector.load %arg3[%c0_117, %c0_118] : memref<32x128xf32, #tpu.memory_space<vmem>>, vector<32x128xf32>
    %cst_119 = arith.constant dense<0.000000e+00> : vector<8x128xf32>
    %307 = tpu.matmul %283, %306, %cst_119 {dimension_numbers = #tpu.dot_dimension_numbers<[1], [0], [0], [1], [0, 0, 1, 1], [], []>} : vector<8x32xf32>, vector<32x128xf32>, vector<8x128xf32> -> vector<8x128xf32>
    %308 = arith.index_cast %c7_i32 : i32 to index
    %c0_120 = arith.constant 0 : index
    %c0_121 = arith.constant 0 : index
    %309 = vector.load %arg17[%308, %c0_120, %c0_121] : memref<8x8x128xf32, #tpu.memory_space<vmem>>, vector<1x8x128xf32>
    %310 = vector.shape_cast %309 : vector<1x8x128xf32> to vector<8x128xf32>
    %311 = arith.addf %310, %307 : vector<8x128xf32>
    %312 = math.tanh %311 : vector<8x128xf32>
    %313 = arith.mulf %312, %11 : vector<8x128xf32>
    %314 = arith.addf %313, %14 : vector<8x128xf32>
    %315 = vector.extract_strided_slice %314 {offsets = [0, 0], sizes = [8, 32], strides = [1, 1]} : vector<8x128xf32> to vector<8x32xf32>
    %316 = vector.extract_strided_slice %314 {offsets = [0, 32], sizes = [8, 32], strides = [1, 1]} : vector<8x128xf32> to vector<8x32xf32>
    %317 = vector.extract_strided_slice %314 {offsets = [0, 64], sizes = [8, 32], strides = [1, 1]} : vector<8x128xf32> to vector<8x32xf32>
    %318 = vector.extract_strided_slice %314 {offsets = [0, 96], sizes = [8, 32], strides = [1, 1]} : vector<8x128xf32> to vector<8x32xf32>
    %319 = arith.mulf %316, %281 : vector<8x32xf32>
    %320 = arith.mulf %315, %317 : vector<8x32xf32>
    %321 = arith.addf %319, %320 : vector<8x32xf32>
    %322 = math.tanh %321 : vector<8x32xf32>
    %323 = arith.mulf %318, %322 : vector<8x32xf32>
    %c0_122 = arith.constant 0 : index
    %c0_123 = arith.constant 0 : index
    %324 = vector.load %arg6[%c0_122, %c0_123] : memref<32x128xf32, #tpu.memory_space<vmem>>, vector<32x128xf32>
    %cst_124 = arith.constant dense<0.000000e+00> : vector<8x128xf32>
    %325 = tpu.matmul %301, %324, %cst_124 {dimension_numbers = #tpu.dot_dimension_numbers<[1], [0], [0], [1], [0, 0, 1, 1], [], []>} : vector<8x32xf32>, vector<32x128xf32>, vector<8x128xf32> -> vector<8x128xf32>
    %c0_125 = arith.constant 0 : index
    %c0_126 = arith.constant 0 : index
    %326 = vector.load %arg5[%c0_125, %c0_126] : memref<32x128xf32, #tpu.memory_space<vmem>>, vector<32x128xf32>
    %cst_127 = arith.constant dense<0.000000e+00> : vector<8x128xf32>
    %327 = tpu.matmul %323, %326, %cst_127 {dimension_numbers = #tpu.dot_dimension_numbers<[1], [0], [0], [1], [0, 0, 1, 1], [], []>} : vector<8x32xf32>, vector<32x128xf32>, vector<8x128xf32> -> vector<8x128xf32>
    %328 = arith.addf %327, %325 : vector<8x128xf32>
    %329 = arith.addf %328, %17 : vector<8x128xf32>
    %330 = math.tanh %329 : vector<8x128xf32>
    %331 = arith.mulf %330, %11 : vector<8x128xf32>
    %332 = arith.addf %331, %14 : vector<8x128xf32>
    %333 = vector.extract_strided_slice %332 {offsets = [0, 0], sizes = [8, 32], strides = [1, 1]} : vector<8x128xf32> to vector<8x32xf32>
    %334 = vector.extract_strided_slice %332 {offsets = [0, 32], sizes = [8, 32], strides = [1, 1]} : vector<8x128xf32> to vector<8x32xf32>
    %335 = vector.extract_strided_slice %332 {offsets = [0, 64], sizes = [8, 32], strides = [1, 1]} : vector<8x128xf32> to vector<8x32xf32>
    %336 = vector.extract_strided_slice %332 {offsets = [0, 96], sizes = [8, 32], strides = [1, 1]} : vector<8x128xf32> to vector<8x32xf32>
    %337 = arith.mulf %334, %299 : vector<8x32xf32>
    %338 = arith.mulf %333, %335 : vector<8x32xf32>
    %339 = arith.addf %337, %338 : vector<8x32xf32>
    %340 = math.tanh %339 : vector<8x32xf32>
    %341 = arith.mulf %336, %340 : vector<8x32xf32>
    %342 = arith.index_cast %c7_i32 : i32 to index
    %c0_128 = arith.constant 0 : index
    %c0_129 = arith.constant 0 : index
    %343 = vector.load %arg18[%342, %c0_128, %c0_129] : memref<8x8x32xf32, #tpu.memory_space<vmem>>, vector<1x8x32xf32>
    %344 = vector.shape_cast %343 : vector<1x8x32xf32> to vector<8x32xf32>
    %345 = vector.shape_cast %341 : vector<8x32xf32> to vector<1x8x32xf32>
    tpu.vector_store %arg18[%342, %c0_128, %c0_129], %345 {strides = array<i32>} : memref<8x8x32xf32, #tpu.memory_space<vmem>>, vector<1x8x32xf32>,
    %c8_i32 = arith.constant 8 : i32
    %c0_130 = arith.constant 0 : index
    %c0_131 = arith.constant 0 : index
    %c0_132 = arith.constant 0 : index
    %346 = vector.load %arg15[%c0_130, %c0_131, %c0_132] : memref<2x8x32xf32, #tpu.memory_space<vmem>>, vector<1x8x32xf32>
    %347 = vector.shape_cast %346 : vector<1x8x32xf32> to vector<8x32xf32>
    %348 = vector.shape_cast %323 : vector<8x32xf32> to vector<1x8x32xf32>
    tpu.vector_store %arg15[%c0_130, %c0_131, %c0_132], %348 {strides = array<i32>} : memref<2x8x32xf32, #tpu.memory_space<vmem>>, vector<1x8x32xf32>,
    %c0_133 = arith.constant 0 : index
    %c0_134 = arith.constant 0 : index
    %c0_135 = arith.constant 0 : index
    %349 = vector.load %arg16[%c0_133, %c0_134, %c0_135] : memref<2x8x32xf32, #tpu.memory_space<vmem>>, vector<1x8x32xf32>
    %350 = vector.shape_cast %349 : vector<1x8x32xf32> to vector<8x32xf32>
    %351 = vector.shape_cast %321 : vector<8x32xf32> to vector<1x8x32xf32>
    tpu.vector_store %arg16[%c0_133, %c0_134, %c0_135], %351 {strides = array<i32>} : memref<2x8x32xf32, #tpu.memory_space<vmem>>, vector<1x8x32xf32>,
    %c1_136 = arith.constant 1 : index
    %c0_137 = arith.constant 0 : index
    %c0_138 = arith.constant 0 : index
    %352 = vector.load %arg15[%c1_136, %c0_137, %c0_138] : memref<2x8x32xf32, #tpu.memory_space<vmem>>, vector<1x8x32xf32>
    %353 = vector.shape_cast %352 : vector<1x8x32xf32> to vector<8x32xf32>
    %354 = vector.shape_cast %341 : vector<8x32xf32> to vector<1x8x32xf32>
    tpu.vector_store %arg15[%c1_136, %c0_137, %c0_138], %354 {strides = array<i32>} : memref<2x8x32xf32, #tpu.memory_space<vmem>>, vector<1x8x32xf32>,
    %c1_139 = arith.constant 1 : index
    %c0_140 = arith.constant 0 : index
    %c0_141 = arith.constant 0 : index
    %355 = vector.load %arg16[%c1_139, %c0_140, %c0_141] : memref<2x8x32xf32, #tpu.memory_space<vmem>>, vector<1x8x32xf32>
    %356 = vector.shape_cast %355 : vector<1x8x32xf32> to vector<8x32xf32>
    %357 = vector.shape_cast %339 : vector<8x32xf32> to vector<1x8x32xf32>
    tpu.vector_store %arg16[%c1_139, %c0_140, %c0_141], %357 {strides = array<i32>} : memref<2x8x32xf32, #tpu.memory_space<vmem>>, vector<1x8x32xf32>,
    %c0_142 = arith.constant 0 : index
    %c0_143 = arith.constant 0 : index
    %c0_144 = arith.constant 0 : index
    %358 = vector.load %arg18[%c0_142, %c0_143, %c0_144] : memref<8x8x32xf32, #tpu.memory_space<vmem>>, vector<8x8x32xf32>
    %359 = vector.shape_cast %358 : vector<8x8x32xf32> to vector<64x32xf32>
    %c0_145 = arith.constant 0 : index
    %c0_146 = arith.constant 0 : index
    %360 = vector.load %arg8[%c0_145, %c0_146] : memref<32x128xf32, #tpu.memory_space<vmem>>, vector<32x128xf32>
    %cst_147 = arith.constant dense<0.000000e+00> : vector<64x128xf32>
    %361 = tpu.matmul %359, %360, %cst_147 {dimension_numbers = #tpu.dot_dimension_numbers<[1], [0], [0], [1], [0, 0, 1, 1], [], []>} : vector<64x32xf32>, vector<32x128xf32>, vector<64x128xf32> -> vector<64x128xf32>
    %c0_148 = arith.constant 0 : index
    %c0_149 = arith.constant 0 : index
    %362 = vector.load %arg9[%c0_148, %c0_149] : memref<1x128xf32, #tpu.memory_space<vmem>>, vector<1x128xf32>
    %363 = vector.broadcast %362 : vector<1x128xf32> to vector<64x128xf32>
    %364 = arith.addf %361, %363 : vector<64x128xf32>
    %365 = math.tanh %364 : vector<64x128xf32>
    %366 = vector.shape_cast %365 : vector<64x128xf32> to vector<8x8x128xf32>
    %c0_150 = arith.constant 0 : index
    %c0_151 = arith.constant 0 : index
    %c0_152 = arith.constant 0 : index
    %367 = vector.load %arg14[%c0_150, %c0_151, %c0_152] : memref<8x8x128xf32, #tpu.memory_space<vmem>>, vector<8x8x128xf32>
    tpu.vector_store %arg14[%c0_150, %c0_151, %c0_152], %366 {strides = array<i32>} : memref<8x8x128xf32, #tpu.memory_space<vmem>>, vector<8x8x128xf32>,
    return
  }
  func.func @transform_0(%arg0: i32) -> (i32, i32, i32) {
    %c0_i32 = arith.constant 0 : i32
    %c0_i32_0 = arith.constant 0 : i32
    %c0_i32_1 = arith.constant 0 : i32
    return %c0_i32, %arg0, %c0_i32_0 : i32, i32, i32
  }
  func.func @transform_1(%arg0: i32) -> (i32, i32) {
    %c0_i32 = arith.constant 0 : i32
    %c0_i32_0 = arith.constant 0 : i32
    %c0_i32_1 = arith.constant 0 : i32
    return %c0_i32, %c0_i32_0 : i32, i32
  }
  func.func @transform_2(%arg0: i32) -> (i32, i32) {
    %c0_i32 = arith.constant 0 : i32
    %c0_i32_0 = arith.constant 0 : i32
    %c0_i32_1 = arith.constant 0 : i32
    return %c0_i32, %c0_i32_0 : i32, i32
  }
  func.func @transform_3(%arg0: i32) -> (i32, i32) {
    %c0_i32 = arith.constant 0 : i32
    %c0_i32_0 = arith.constant 0 : i32
    %c0_i32_1 = arith.constant 0 : i32
    return %c0_i32, %c0_i32_0 : i32, i32
  }
  func.func @transform_4(%arg0: i32) -> (i32, i32) {
    %c0_i32 = arith.constant 0 : i32
    %c0_i32_0 = arith.constant 0 : i32
    %c0_i32_1 = arith.constant 0 : i32
    return %c0_i32, %c0_i32_0 : i32, i32
  }
  func.func @transform_5(%arg0: i32) -> (i32, i32) {
    %c0_i32 = arith.constant 0 : i32
    %c0_i32_0 = arith.constant 0 : i32
    %c0_i32_1 = arith.constant 0 : i32
    return %c0_i32, %c0_i32_0 : i32, i32
  }
  func.func @transform_6(%arg0: i32) -> (i32, i32) {
    %c0_i32 = arith.constant 0 : i32
    %c0_i32_0 = arith.constant 0 : i32
    %c0_i32_1 = arith.constant 0 : i32
    return %c0_i32, %c0_i32_0 : i32, i32
  }
  func.func @transform_7(%arg0: i32) -> (i32, i32) {
    %c0_i32 = arith.constant 0 : i32
    %c0_i32_0 = arith.constant 0 : i32
    %c0_i32_1 = arith.constant 0 : i32
    return %c0_i32, %c0_i32_0 : i32, i32
  }
  func.func @transform_8(%arg0: i32) -> (i32, i32) {
    %c0_i32 = arith.constant 0 : i32
    %c0_i32_0 = arith.constant 0 : i32
    %c0_i32_1 = arith.constant 0 : i32
    return %c0_i32, %c0_i32_0 : i32, i32
  }
  func.func @transform_9(%arg0: i32) -> (i32, i32) {
    %c0_i32 = arith.constant 0 : i32
    %c0_i32_0 = arith.constant 0 : i32
    %c0_i32_1 = arith.constant 0 : i32
    return %c0_i32, %c0_i32_0 : i32, i32
  }
  func.func @transform_10(%arg0: i32) -> (i32, i32) {
    %c0_i32 = arith.constant 0 : i32
    %c0_i32_0 = arith.constant 0 : i32
    %c0_i32_1 = arith.constant 0 : i32
    return %c0_i32, %c0_i32_0 : i32, i32
  }
  func.func @transform_11(%arg0: i32) -> (i32, i32, i32) {
    %c0_i32 = arith.constant 0 : i32
    %c0_i32_0 = arith.constant 0 : i32
    %c0_i32_1 = arith.constant 0 : i32
    return %c0_i32, %arg0, %c0_i32_0 : i32, i32, i32
  }
  func.func @transform_12(%arg0: i32) -> (i32, i32, i32) {
    %c0_i32 = arith.constant 0 : i32
    %c0_i32_0 = arith.constant 0 : i32
    %c0_i32_1 = arith.constant 0 : i32
    return %c0_i32, %arg0, %c0_i32_0 : i32, i32, i32
  }
  func.func @transform_13(%arg0: i32) -> (i32, i32, i32) {
    %c0_i32 = arith.constant 0 : i32
    %c0_i32_0 = arith.constant 0 : i32
    %c0_i32_1 = arith.constant 0 : i32
    return %c0_i32, %arg0, %c0_i32_0 : i32, i32, i32
  }
  func.func @transform_14(%arg0: i32) -> (i32, i32, i32) {
    %c0_i32 = arith.constant 0 : i32
    %c0_i32_0 = arith.constant 0 : i32
    %c0_i32_1 = arith.constant 0 : i32
    return %c0_i32, %arg0, %c0_i32_0 : i32, i32, i32
  }
  func.func @transform_15(%arg0: i32) -> (i32, i32, i32) {
    %c0_i32 = arith.constant 0 : i32
    %c0_i32_0 = arith.constant 0 : i32
    %c0_i32_1 = arith.constant 0 : i32
    return %c0_i32, %arg0, %c0_i32_0 : i32, i32, i32
  }
}

</mosaic_0001>

<llo_original>
// kernel: tpu_custom_call.1
$region0: #{tpu_custom_call.1}
  #allocation0 [shape = 'u32[]', space=smem, size = 0x4, offset = 0x4, fixed_abs, tag = 'smem constant byte address 0x4 - core index']
  #allocation1 [shape = 'u32[144,128]{1,0:T(1,128)}', space=vmem, size = 0x12000, scoped, tag = 'internal scratch']
  #allocation2 [shape = 'f32[8,8,128]{2,1,0:T(8,128)}', space=vmem, size = 0x8000, scoped, tag = 'scratch operand']
  #allocation3 [shape = 'f32[8,8,32]{2,1,0:T(8,128)}', space=vmem, size = 0x8000, scoped, tag = 'scratch operand']
  %s0 = inlined_call_operand.hbm [shape: f32[8,16,16], index: 0, kind: input, shape index: {}]
  %s1 = inlined_call_operand.hbm [shape: f32[16,128], index: 1, kind: input, shape index: {}]
  %s2 = inlined_call_operand.hbm [shape: f32[32,128], index: 2, kind: input, shape index: {}]
  %s3 = inlined_call_operand.vmem [shape: f32[1,128], index: 3, kind: input, shape index: {}]
  %s4 = inlined_call_operand.hbm [shape: f32[32,128], index: 4, kind: input, shape index: {}]
  %s5 = inlined_call_operand.hbm [shape: f32[32,128], index: 5, kind: input, shape index: {}]
  %s6 = inlined_call_operand.vmem [shape: f32[1,128], index: 6, kind: input, shape index: {}]
  %s7 = inlined_call_operand.hbm [shape: f32[32,128], index: 7, kind: input, shape index: {}]
  %s8 = inlined_call_operand.vmem [shape: f32[1,128], index: 8, kind: input, shape index: {}]
  %s9 = inlined_call_operand.vmem [shape: f32[1,128], index: 9, kind: input, shape index: {}]
  %s10 = inlined_call_operand.vmem [shape: f32[1,128], index: 10, kind: input, shape index: {}]
  %s11 = inlined_call_operand.hbm [shape: f32[2,16,32], index: 11, kind: input, shape index: {}]
  %s12 = inlined_call_operand.hbm [shape: f32[2,16,32], index: 12, kind: input, shape index: {}]
  %s13 = inlined_call_operand.hbm [shape: f32[8,16,128], index: 13, kind: output, shape index: {0}]
  %s14 = inlined_call_operand.hbm [shape: f32[2,16,32], index: 14, kind: output, shape index: {1}]
  %s15 = inlined_call_operand.hbm [shape: f32[2,16,32], index: 15, kind: output, shape index: {2}]
  %16 = xla_tuple %s13, %s14, %s15
  %s17 = sld [smem:[#allocation0]]
  $region133: #{tpu_custom_call.1} parent=0
    _
  %s19 = ssub.s32 1, %s17
  %s20 = scalar_select 0, %s19, %s17
  $region1: #{tpu_custom_call.1} parent=0
    #allocation4 [shape = 'u8[65536]{0}', space=vmem, size = 0x10000, scoped, tag = 'input window, operand 0']
    #allocation5 [shape = 's32[2]{0}', space=sflag, size = 0x8, scoped, tag = 'scoped memory for tpu_custom_call.1']
    #allocation6 [shape = 's32[2]{0}', space=sflag, size = 0x8, scoped, tag = 'scoped memory for tpu_custom_call.1']
    #allocation7 [shape = 'u8[8192]{0}', space=vmem, size = 0x2000, scoped, tag = 'input window, operand 1, single buffered']
    #allocation8 [shape = 's32[1]{0}', space=sflag, size = 0x4, scoped, tag = 'scoped memory for tpu_custom_call.1']
    #allocation9 [shape = 'u8[16384]{0}', space=vmem, size = 0x4000, scoped, tag = 'input window, operand 2, single buffered']
    #allocation10 [shape = 'u8[16384]{0}', space=vmem, size = 0x4000, scoped, tag = 'input window, operand 4, single buffered']
    #allocation11 [shape = 's32[1]{0}', space=sflag, size = 0x4, scoped, tag = 'scoped memory for tpu_custom_call.1']
    #allocation12 [shape = 'u8[16384]{0}', space=vmem, size = 0x4000, scoped, tag = 'input window, operand 5, single buffered']
    #allocation13 [shape = 'u8[16384]{0}', space=vmem, size = 0x4000, scoped, tag = 'input window, operand 7, single buffered']
    #allocation14 [shape = 's32[1]{0}', space=sflag, size = 0x4, scoped, tag = 'scoped memory for tpu_custom_call.1']
    #allocation15 [shape = 'u8[16384]{0}', space=vmem, size = 0x4000, scoped, tag = 'input window, operand 11']
    #allocation16 [shape = 'u8[16384]{0}', space=vmem, size = 0x4000, scoped, tag = 'input window, operand 12']
    #allocation17 [shape = 'u8[65536]{0}', space=vmem, size = 0x10000, scoped, tag = 'output window, operand 0']
    #allocation18 [shape = 'u8[16384]{0}', space=vmem, size = 0x4000, scoped, tag = 'output window, operand 1']
    #allocation19 [shape = 's32[2]{0}', space=sflag, size = 0x8, scoped, tag = 'scoped memory for tpu_custom_call.1']
    #allocation20 [shape = 'u8[16384]{0}', space=vmem, size = 0x4000, scoped, tag = 'output window, operand 2']
    %21 = vsyncpa [#allocation5], 0
    %s22 = scalar_lea.sflag [#allocation5], 1
    %23 = vsyncpa %s22, 0
    %24 = vsyncpa [#allocation8], 0
    %25 = vsyncpa [#allocation11], 0
    %26 = vsyncpa [#allocation14], 0
    %27 = vsyncpa [#allocation6], 0
    %s28 = scalar_lea.sflag [#allocation6], 1
    %29 = vsyncpa %s28, 0
    %30 = vsyncpa [#allocation19], 0
    %s31 = scalar_lea.sflag [#allocation19], 1
    %32 = vsyncpa %s31, 0
    loop: start=0, step=1, limit=4
    $region2: #{tpu_custom_call.1} parent=1 // loop_pre_header
      _
    $region3: #{tpu_custom_call.1} parent=1 // loop_header
      %s34 = sphi 0, %s38
      %p35 = scmp.ge.s32.totalorder %s34, 4
      %s44 = sphi 0, %s46
      %s47 = sphi 0, %s44
      %s48 = sphi 0, %s47
      %s64 = sphi 0, %s48
      %s68 = sphi 0, %s68
      %s70 = sphi 0, %s68
      %s71 = sphi 0, %s70
      %s85 = sphi 0, %s71
      %s89 = sphi 0, %s89
      %s91 = sphi 0, %s89
      %s92 = sphi 0, %s91
      %s106 = sphi 0, %s92
      %s110 = sphi 0, %s110
      %s112 = sphi 0, %s110
      %s113 = sphi 0, %s112
      %s127 = sphi 0, %s113
      %s131 = sphi 0, %s131
      %s133 = sphi 0, %s131
      %s134 = sphi 0, %s133
      %s148 = sphi 0, %s134
      %s152 = sphi 0, %s152
      %s154 = sphi 0, %s152
      %s155 = sphi 0, %s154
      %s169 = sphi 0, %s155
      %s173 = sphi 0, %s173
      %s175 = sphi 0, %s173
      %s176 = sphi 0, %s175
      %s190 = sphi 0, %s176
      %s194 = sphi 0, %s194
      %s196 = sphi 0, %s194
      %s197 = sphi 0, %s196
      %s211 = sphi 0, %s197
      %s215 = sphi 0, %s215
      %s217 = sphi 0, %s215
      %s218 = sphi 0, %s217
      %s232 = sphi 0, %s218
      %s236 = sphi 0, %s236
      %s238 = sphi 0, %s236
      %s239 = sphi 0, %s238
      %s253 = sphi 0, %s239
      %s257 = sphi 0, %s257
      %s259 = sphi 0, %s257
      %s260 = sphi 0, %s259
      %s274 = sphi 0, %s260
      %s280 = sphi 0, %s282
      %s283 = sphi 0, %s280
      %s284 = sphi 0, %s283
      %s300 = sphi 0, %s284
      %s306 = sphi 0, %s308
      %s309 = sphi 0, %s306
      %s310 = sphi 0, %s309
      %s326 = sphi 0, %s310
      %s332 = sphi 0, %s334
      %s335 = sphi 0, %s332
      %s336 = sphi 0, %s335
      %s352 = sphi 0, %s336
      %s358 = sphi 0, %s360
      %s361 = sphi 0, %s358
      %s362 = sphi 0, %s361
      %s378 = sphi 0, %s362
      %s384 = sphi 0, %s386
      %s387 = sphi 0, %s384
      %s388 = sphi 0, %s387
      %s404 = sphi 0, %s388
    $region4: #{tpu_custom_call.1} parent=1 // loop_header_branch
      %37 = sbr.rel (%p35) target = $region8
    $region5: #{tpu_custom_call.1} parent=1 // loop_body
      %s39 = ssub.s32 %s34, 1
      %s40 = ssub.s32 %s34, 2
      %s41 = sadd.s32 %s34, 1
      %s42 = ssub.s32 %s34, %s41
      %p43 = scmp.eq.s32.totalorder %s42, 0
      %s45 = sadd.s32 %s44, 1
      %s46 = scalar_select %p43, %s44, %s45
      %p49 = pneg %p43
      %p50 = scmp.eq.s32.totalorder %s34, 1
      %p51 = por %p49, %p50
      %p52 = scmp.ne.s32.totalorder %s44, %s47
      %p53 = scmp.eq.s32.totalorder %s34, 0
      %p54 = por %p52, %p53
      %p55 = scmp.ne.s32.totalorder %s44, %s47
      %p56 = scmp.eq.s32.totalorder %s39, 1
      %p57 = por %p55, %p56
      %p58 = scmp.ne.s32.totalorder %s47, %s48
      %p59 = scmp.eq.s32.totalorder %s39, 0
      %p60 = por %p58, %p59
      %p61 = scmp.ne.s32.totalorder %s47, %s48
      %p62 = scmp.eq.s32.totalorder %s40, 1
      %p63 = por %p61, %p62
      %p65 = scmp.ne.s32.totalorder %s48, %s64
      %p66 = scmp.eq.s32.totalorder %s40, 0
      %p67 = por %p65, %p66
      %s69 = sadd.s32 %s68, 1
      %p72 = scmp.eq.s32.totalorder %s34, 1
      %p73 = scmp.ne.s32.totalorder %s68, %s70
      %p74 = scmp.eq.s32.totalorder %s34, 0
      %p75 = por %p73, %p74
      %p76 = scmp.ne.s32.totalorder %s68, %s70
      %p77 = scmp.eq.s32.totalorder %s39, 1
      %p78 = por %p76, %p77
      %p79 = scmp.ne.s32.totalorder %s70, %s71
      %p80 = scmp.eq.s32.totalorder %s39, 0
      %p81 = por %p79, %p80
      %p82 = scmp.ne.s32.totalorder %s70, %s71
      %p83 = scmp.eq.s32.totalorder %s40, 1
      %p84 = por %p82, %p83
      %p86 = scmp.ne.s32.totalorder %s71, %s85
      %p87 = scmp.eq.s32.totalorder %s40, 0
      %p88 = por %p86, %p87
      %s90 = sadd.s32 %s89, 1
      %p93 = scmp.eq.s32.totalorder %s34, 1
      %p94 = scmp.ne.s32.totalorder %s89, %s91
      %p95 = scmp.eq.s32.totalorder %s34, 0
      %p96 = por %p94, %p95
      %p97 = scmp.ne.s32.totalorder %s89, %s91
      %p98 = scmp.eq.s32.totalorder %s39, 1
      %p99 = por %p97, %p98
      %p100 = scmp.ne.s32.totalorder %s91, %s92
      %p101 = scmp.eq.s32.totalorder %s39, 0
      %p102 = por %p100, %p101
      %p103 = scmp.ne.s32.totalorder %s91, %s92
      %p104 = scmp.eq.s32.totalorder %s40, 1
      %p105 = por %p103, %p104
      %p107 = scmp.ne.s32.totalorder %s92, %s106
      %p108 = scmp.eq.s32.totalorder %s40, 0
      %p109 = por %p107, %p108
      %s111 = sadd.s32 %s110, 1
      %p114 = scmp.eq.s32.totalorder %s34, 1
      %p115 = scmp.ne.s32.totalorder %s110, %s112
      %p116 = scmp.eq.s32.totalorder %s34, 0
      %p117 = por %p115, %p116
      %p118 = scmp.ne.s32.totalorder %s110, %s112
      %p119 = scmp.eq.s32.totalorder %s39, 1
      %p120 = por %p118, %p119
      %p121 = scmp.ne.s32.totalorder %s112, %s113
      %p122 = scmp.eq.s32.totalorder %s39, 0
      %p123 = por %p121, %p122
      %p124 = scmp.ne.s32.totalorder %s112, %s113
      %p125 = scmp.eq.s32.totalorder %s40, 1
      %p126 = por %p124, %p125
      %p128 = scmp.ne.s32.totalorder %s113, %s127
      %p129 = scmp.eq.s32.totalorder %s40, 0
      %p130 = por %p128, %p129
      %s132 = sadd.s32 %s131, 1
      %p135 = scmp.eq.s32.totalorder %s34, 1
      %p136 = scmp.ne.s32.totalorder %s131, %s133
      %p137 = scmp.eq.s32.totalorder %s34, 0
      %p138 = por %p136, %p137
      %p139 = scmp.ne.s32.totalorder %s131, %s133
      %p140 = scmp.eq.s32.totalorder %s39, 1
      %p141 = por %p139, %p140
      %p142 = scmp.ne.s32.totalorder %s133, %s134
      %p143 = scmp.eq.s32.totalorder %s39, 0
      %p144 = por %p142, %p143
      %p145 = scmp.ne.s32.totalorder %s133, %s134
      %p146 = scmp.eq.s32.totalorder %s40, 1
      %p147 = por %p145, %p146
      %p149 = scmp.ne.s32.totalorder %s134, %s148
      %p150 = scmp.eq.s32.totalorder %s40, 0
      %p151 = por %p149, %p150
      %s153 = sadd.s32 %s152, 1
      %p156 = scmp.eq.s32.totalorder %s34, 1
      %p157 = scmp.ne.s32.totalorder %s152, %s154
      %p158 = scmp.eq.s32.totalorder %s34, 0
      %p159 = por %p157, %p158
      %p160 = scmp.ne.s32.totalorder %s152, %s154
      %p161 = scmp.eq.s32.totalorder %s39, 1
      %p162 = por %p160, %p161
      %p163 = scmp.ne.s32.totalorder %s154, %s155
      %p164 = scmp.eq.s32.totalorder %s39, 0
      %p165 = por %p163, %p164
      %p166 = scmp.ne.s32.totalorder %s154, %s155
      %p167 = scmp.eq.s32.totalorder %s40, 1
      %p168 = por %p166, %p167
      %p170 = scmp.ne.s32.totalorder %s155, %s169
      %p171 = scmp.eq.s32.totalorder %s40, 0
      %p172 = por %p170, %p171
      %s174 = sadd.s32 %s173, 1
      %p177 = scmp.eq.s32.totalorder %s34, 1
      %p178 = scmp.ne.s32.totalorder %s173, %s175
      %p179 = scmp.eq.s32.totalorder %s34, 0
      %p180 = por %p178, %p179
      %p181 = scmp.ne.s32.totalorder %s173, %s175
      %p182 = scmp.eq.s32.totalorder %s39, 1
      %p183 = por %p181, %p182
      %p184 = scmp.ne.s32.totalorder %s175, %s176
      %p185 = scmp.eq.s32.totalorder %s39, 0
      %p186 = por %p184, %p185
      %p187 = scmp.ne.s32.totalorder %s175, %s176
      %p188 = scmp.eq.s32.totalorder %s40, 1
      %p189 = por %p187, %p188
      %p191 = scmp.ne.s32.totalorder %s176, %s190
      %p192 = scmp.eq.s32.totalorder %s40, 0
      %p193 = por %p191, %p192
      %s195 = sadd.s32 %s194, 1
      %p198 = scmp.eq.s32.totalorder %s34, 1
      %p199 = scmp.ne.s32.totalorder %s194, %s196
      %p200 = scmp.eq.s32.totalorder %s34, 0
      %p201 = por %p199, %p200
      %p202 = scmp.ne.s32.totalorder %s194, %s196
      %p203 = scmp.eq.s32.totalorder %s39, 1
      %p204 = por %p202, %p203
      %p205 = scmp.ne.s32.totalorder %s196, %s197
      %p206 = scmp.eq.s32.totalorder %s39, 0
      %p207 = por %p205, %p206
      %p208 = scmp.ne.s32.totalorder %s196, %s197
      %p209 = scmp.eq.s32.totalorder %s40, 1
      %p210 = por %p208, %p209
      %p212 = scmp.ne.s32.totalorder %s197, %s211
      %p213 = scmp.eq.s32.totalorder %s40, 0
      %p214 = por %p212, %p213
      %s216 = sadd.s32 %s215, 1
      %p219 = scmp.eq.s32.totalorder %s34, 1
      %p220 = scmp.ne.s32.totalorder %s215, %s217
      %p221 = scmp.eq.s32.totalorder %s34, 0
      %p222 = por %p220, %p221
      %p223 = scmp.ne.s32.totalorder %s215, %s217
      %p224 = scmp.eq.s32.totalorder %s39, 1
      %p225 = por %p223, %p224
      %p226 = scmp.ne.s32.totalorder %s217, %s218
      %p227 = scmp.eq.s32.totalorder %s39, 0
      %p228 = por %p226, %p227
      %p229 = scmp.ne.s32.totalorder %s217, %s218
      %p230 = scmp.eq.s32.totalorder %s40, 1
      %p231 = por %p229, %p230
      %p233 = scmp.ne.s32.totalorder %s218, %s232
      %p234 = scmp.eq.s32.totalorder %s40, 0
      %p235 = por %p233, %p234
      %s237 = sadd.s32 %s236, 1
      %p240 = scmp.eq.s32.totalorder %s34, 1
      %p241 = scmp.ne.s32.totalorder %s236, %s238
      %p242 = scmp.eq.s32.totalorder %s34, 0
      %p243 = por %p241, %p242
      %p244 = scmp.ne.s32.totalorder %s236, %s238
      %p245 = scmp.eq.s32.totalorder %s39, 1
      %p246 = por %p244, %p245
      %p247 = scmp.ne.s32.totalorder %s238, %s239
      %p248 = scmp.eq.s32.totalorder %s39, 0
      %p249 = por %p247, %p248
      %p250 = scmp.ne.s32.totalorder %s238, %s239
      %p251 = scmp.eq.s32.totalorder %s40, 1
      %p252 = por %p250, %p251
      %p254 = scmp.ne.s32.totalorder %s239, %s253
      %p255 = scmp.eq.s32.totalorder %s40, 0
      %p256 = por %p254, %p255
      %s258 = sadd.s32 %s257, 1
      %p261 = scmp.eq.s32.totalorder %s34, 1
      %p262 = scmp.ne.s32.totalorder %s257, %s259
      %p263 = scmp.eq.s32.totalorder %s34, 0
      %p264 = por %p262, %p263
      %p265 = scmp.ne.s32.totalorder %s257, %s259
      %p266 = scmp.eq.s32.totalorder %s39, 1
      %p267 = por %p265, %p266
      %p268 = scmp.ne.s32.totalorder %s259, %s260
      %p269 = scmp.eq.s32.totalorder %s39, 0
      %p270 = por %p268, %p269
      %p271 = scmp.ne.s32.totalorder %s259, %s260
      %p272 = scmp.eq.s32.totalorder %s40, 1
      %p273 = por %p271, %p272
      %p275 = scmp.ne.s32.totalorder %s260, %s274
      %p276 = scmp.eq.s32.totalorder %s40, 0
      %p277 = por %p275, %p276
      %s278 = ssub.s32 %s34, %s41
      %p279 = scmp.eq.s32.totalorder %s278, 0
      %s281 = sadd.s32 %s280, 1
      %s282 = scalar_select %p279, %s280, %s281
      %p285 = pneg %p279
      %p286 = scmp.eq.s32.totalorder %s34, 1
      %p287 = por %p285, %p286
      %p288 = scmp.ne.s32.totalorder %s280, %s283
      %p289 = scmp.eq.s32.totalorder %s34, 0
      %p290 = por %p288, %p289
      %p291 = scmp.ne.s32.totalorder %s280, %s283
      %p292 = scmp.eq.s32.totalorder %s39, 1
      %p293 = por %p291, %p292
      %p294 = scmp.ne.s32.totalorder %s283, %s284
      %p295 = scmp.eq.s32.totalorder %s39, 0
      %p296 = por %p294, %p295
      %p297 = scmp.ne.s32.totalorder %s283, %s284
      %p298 = scmp.eq.s32.totalorder %s40, 1
      %p299 = por %p297, %p298
      %p301 = scmp.ne.s32.totalorder %s284, %s300
      %p302 = scmp.eq.s32.totalorder %s40, 0
      %p303 = por %p301, %p302
      %s304 = ssub.s32 %s34, %s41
      %p305 = scmp.eq.s32.totalorder %s304, 0
      %s307 = sadd.s32 %s306, 1
      %s308 = scalar_select %p305, %s306, %s307
      %p311 = pneg %p305
      %p312 = scmp.eq.s32.totalorder %s34, 1
      %p313 = por %p311, %p312
      %p314 = scmp.ne.s32.totalorder %s306, %s309
      %p315 = scmp.eq.s32.totalorder %s34, 0
      %p316 = por %p314, %p315
      %p317 = scmp.ne.s32.totalorder %s306, %s309
      %p318 = scmp.eq.s32.totalorder %s39, 1
      %p319 = por %p317, %p318
      %p320 = scmp.ne.s32.totalorder %s309, %s310
      %p321 = scmp.eq.s32.totalorder %s39, 0
      %p322 = por %p320, %p321
      %p323 = scmp.ne.s32.totalorder %s309, %s310
      %p324 = scmp.eq.s32.totalorder %s40, 1
      %p325 = por %p323, %p324
      %p327 = scmp.ne.s32.totalorder %s310, %s326
      %p328 = scmp.eq.s32.totalorder %s40, 0
      %p329 = por %p327, %p328
      %s330 = ssub.s32 %s34, %s41
      %p331 = scmp.eq.s32.totalorder %s330, 0
      %s333 = sadd.s32 %s332, 1
      %s334 = scalar_select %p331, %s332, %s333
      %p337 = pneg %p331
      %p338 = scmp.eq.s32.totalorder %s34, 1
      %p339 = por %p337, %p338
      %p340 = scmp.ne.s32.totalorder %s332, %s335
      %p341 = scmp.eq.s32.totalorder %s34, 0
      %p342 = por %p340, %p341
      %p343 = scmp.ne.s32.totalorder %s332, %s335
      %p344 = scmp.eq.s32.totalorder %s39, 1
      %p345 = por %p343, %p344
      %p346 = scmp.ne.s32.totalorder %s335, %s336
      %p347 = scmp.eq.s32.totalorder %s39, 0
      %p348 = por %p346, %p347
      %p349 = scmp.ne.s32.totalorder %s335, %s336
      %p350 = scmp.eq.s32.totalorder %s40, 1
      %p351 = por %p349, %p350
      %p353 = scmp.ne.s32.totalorder %s336, %s352
      %p354 = scmp.eq.s32.totalorder %s40, 0
      %p355 = por %p353, %p354
      %s356 = ssub.s32 %s34, %s41
      %p357 = scmp.eq.s32.totalorder %s356, 0
      %s359 = sadd.s32 %s358, 1
      %s360 = scalar_select %p357, %s358, %s359
      %p363 = pneg %p357
      %p364 = scmp.eq.s32.totalorder %s34, 1
      %p365 = por %p363, %p364
      %p366 = scmp.ne.s32.totalorder %s358, %s361
      %p367 = scmp.eq.s32.totalorder %s34, 0
      %p368 = por %p366, %p367
      %p369 = scmp.ne.s32.totalorder %s358, %s361
      %p370 = scmp.eq.s32.totalorder %s39, 1
      %p371 = por %p369, %p370
      %p372 = scmp.ne.s32.totalorder %s361, %s362
      %p373 = scmp.eq.s32.totalorder %s39, 0
      %p374 = por %p372, %p373
      %p375 = scmp.ne.s32.totalorder %s361, %s362
      %p376 = scmp.eq.s32.totalorder %s40, 1
      %p377 = por %p375, %p376
      %p379 = scmp.ne.s32.totalorder %s362, %s378
      %p380 = scmp.eq.s32.totalorder %s40, 0
      %p381 = por %p379, %p380
      %s382 = ssub.s32 %s34, %s41
      %p383 = scmp.eq.s32.totalorder %s382, 0
      %s385 = sadd.s32 %s384, 1
      %s386 = scalar_select %p383, %s384, %s385
      %p389 = pneg %p383
      %p390 = scmp.eq.s32.totalorder %s34, 1
      %p391 = por %p389, %p390
      %p392 = scmp.ne.s32.totalorder %s384, %s387
      %p393 = scmp.eq.s32.totalorder %s34, 0
      %p394 = por %p392, %p393
      %p395 = scmp.ne.s32.totalorder %s384, %s387
      %p396 = scmp.eq.s32.totalorder %s39, 1
      %p397 = por %p395, %p396
      %p398 = scmp.ne.s32.totalorder %s387, %s388
      %p399 = scmp.eq.s32.totalorder %s39, 0
      %p400 = por %p398, %p399
      %p401 = scmp.ne.s32.totalorder %s387, %s388
      %p402 = scmp.eq.s32.totalorder %s40, 1
      %p403 = por %p401, %p402
      %p405 = scmp.ne.s32.totalorder %s388, %s404
      %p406 = scmp.eq.s32.totalorder %s40, 0
      %p407 = por %p405, %p406
      %p408 = scmp.le.s32.totalorder 1, %s34
      %p409 = scmp.lt.s32.totalorder %s34, 3
      %p410 = pnand %p408, %p409
      %p411 = pneg %p410
      // Predicated region
      $region9: #{tpu_custom_call.1} parent=5 // pred_check
        _
      $region10: #{tpu_custom_call.1} parent=5 // pred_check_branch
        %413 = sbr.rel (%p410) target = $region12
      $region11: #{tpu_custom_call.1} parent=5 // pred_region
        %s414 = ssub.s32 %s34, 1
        // Predicated region
        $region13: #{tpu_custom_call.1} parent=11 // pred_check
          %p415 = pneg %p81
        $region14: #{tpu_custom_call.1} parent=11 // pred_check_branch
          %417 = sbr.rel (%p415) target = $region16
        $region15: #{tpu_custom_call.1} parent=11 // pred_region
          %s419 = ssub.s32 256, 256
          %420 = vsyncadd [#allocation8], %s419
          %s421 = sshll.u32 [#allocation7], 4
          %s422 = int_to_ptr.vmem [resolvable:$true] %s421
          %427 = dma.hbm_to_vmem [thread:$0]  %s1, 256, %s422, [#allocation8], 128, 128, 8
        $region16: #{tpu_custom_call.1} parent=11 // pred_fallthru
          _
        // Predicated region
        $region17: #{tpu_custom_call.1} parent=11 // pred_check
          %p428 = pneg %p102
        $region18: #{tpu_custom_call.1} parent=11 // pred_check_branch
          %430 = sbr.rel (%p428) target = $region20
        $region19: #{tpu_custom_call.1} parent=11 // pred_region
          %s432 = ssub.s32 512, 512
          %433 = vsyncadd [#allocation8], %s432
          %s434 = sshll.u32 [#allocation9], 4
          %s435 = int_to_ptr.vmem [resolvable:$true] %s434
          %440 = dma.hbm_to_vmem [thread:$0]  %s2, 512, %s435, [#allocation8], 128, 128, 8
        $region20: #{tpu_custom_call.1} parent=11 // pred_fallthru
          _
        // Predicated region
        $region21: #{tpu_custom_call.1} parent=11 // pred_check
          %p441 = pneg %p123
        $region22: #{tpu_custom_call.1} parent=11 // pred_check_branch
          %443 = sbr.rel (%p441) target = $region24
        $region23: #{tpu_custom_call.1} parent=11 // pred_region
          _
        $region24: #{tpu_custom_call.1} parent=11 // pred_fallthru
          _
        // Predicated region
        $region25: #{tpu_custom_call.1} parent=11 // pred_check
          %p444 = pneg %p144
        $region26: #{tpu_custom_call.1} parent=11 // pred_check_branch
          %446 = sbr.rel (%p444) target = $region28
        $region27: #{tpu_custom_call.1} parent=11 // pred_region
          %s448 = ssub.s32 512, 512
          %449 = vsyncadd [#allocation11], %s448
          %s450 = sshll.u32 [#allocation10], 4
          %s451 = int_to_ptr.vmem [resolvable:$true] %s450
          %456 = dma.hbm_to_vmem [thread:$0]  %s4, 512, %s451, [#allocation11], 128, 128, 8
        $region28: #{tpu_custom_call.1} parent=11 // pred_fallthru
          _
        // Predicated region
        $region29: #{tpu_custom_call.1} parent=11 // pred_check
          %p457 = pneg %p165
        $region30: #{tpu_custom_call.1} parent=11 // pred_check_branch
          %459 = sbr.rel (%p457) target = $region32
        $region31: #{tpu_custom_call.1} parent=11 // pred_region
          %s461 = ssub.s32 512, 512
          %462 = vsyncadd [#allocation11], %s461
          %s463 = sshll.u32 [#allocation12], 4
          %s464 = int_to_ptr.vmem [resolvable:$true] %s463
          %469 = dma.hbm_to_vmem [thread:$0]  %s5, 512, %s464, [#allocation11], 128, 128, 8
        $region32: #{tpu_custom_call.1} parent=11 // pred_fallthru
          _
        // Predicated region
        $region33: #{tpu_custom_call.1} parent=11 // pred_check
          %p470 = pneg %p186
        $region34: #{tpu_custom_call.1} parent=11 // pred_check_branch
          %472 = sbr.rel (%p470) target = $region36
        $region35: #{tpu_custom_call.1} parent=11 // pred_region
          _
        $region36: #{tpu_custom_call.1} parent=11 // pred_fallthru
          _
        // Predicated region
        $region37: #{tpu_custom_call.1} parent=11 // pred_check
          %p473 = pneg %p207
        $region38: #{tpu_custom_call.1} parent=11 // pred_check_branch
          %475 = sbr.rel (%p473) target = $region40
        $region39: #{tpu_custom_call.1} parent=11 // pred_region
          %s477 = ssub.s32 512, 512
          %478 = vsyncadd [#allocation14], %s477
          %s479 = sshll.u32 [#allocation13], 4
          %s480 = int_to_ptr.vmem [resolvable:$true] %s479
          %485 = dma.hbm_to_vmem [thread:$0]  %s7, 512, %s480, [#allocation14], 128, 128, 8
        $region40: #{tpu_custom_call.1} parent=11 // pred_fallthru
          _
        // Predicated region
        $region41: #{tpu_custom_call.1} parent=11 // pred_check
          %p486 = pneg %p228
        $region42: #{tpu_custom_call.1} parent=11 // pred_check_branch
          %488 = sbr.rel (%p486) target = $region44
        $region43: #{tpu_custom_call.1} parent=11 // pred_region
          _
        $region44: #{tpu_custom_call.1} parent=11 // pred_fallthru
          _
        // Predicated region
        $region45: #{tpu_custom_call.1} parent=11 // pred_check
          %p489 = pneg %p249
        $region46: #{tpu_custom_call.1} parent=11 // pred_check_branch
          %491 = sbr.rel (%p489) target = $region48
        $region47: #{tpu_custom_call.1} parent=11 // pred_region
          _
        $region48: #{tpu_custom_call.1} parent=11 // pred_fallthru
          _
        // Predicated region
        $region49: #{tpu_custom_call.1} parent=11 // pred_check
          %p492 = pneg %p270
        $region50: #{tpu_custom_call.1} parent=11 // pred_check_branch
          %494 = sbr.rel (%p492) target = $region52
        $region51: #{tpu_custom_call.1} parent=11 // pred_region
          _
        $region52: #{tpu_custom_call.1} parent=11 // pred_fallthru
          _
      $region12: #{tpu_custom_call.1} parent=5 // pred_fallthru
        _
      %p495 = scmp.lt.s32.totalorder %s34, 2
      // Predicated region
      $region53: #{tpu_custom_call.1} parent=5 // pred_check
        %p496 = pneg %p495
      $region54: #{tpu_custom_call.1} parent=5 // pred_check_branch
        %498 = sbr.rel (%p496) target = $region56
      $region55: #{tpu_custom_call.1} parent=5 // pred_region
        // Predicated region
        $region57: #{tpu_custom_call.1} parent=55 // pred_check
          %p499 = pneg %p54
        $region58: #{tpu_custom_call.1} parent=55 // pred_check_branch
          %501 = sbr.rel (%p499) target = $region60
        $region59: #{tpu_custom_call.1} parent=55 // pred_region
          %s502 = sand.u32 %s34, 1
          %s503 = scalar_lea.sflag [#allocation5], %s502
          %s504 = sand.u32 %s44, 1
          %s505 = smul.addr %s504, 64
          %s506 = scalar_lea.vmem [#allocation4], %s505
          %s508 = ssub.s32 1024, 1024
          %509 = vsyncadd %s503, %s508
          %s510 = smul.addr %s34, 128
          %s511 = scalar_lea.hbm %s0, %s510
          %s512 = sshll.u32 %s506, 4
          %s513 = int_to_ptr.vmem [resolvable:$true] %s512
          %518 = dma.hbm_to_vmem [thread:$0]  %s511, 1024, %s513, %s503, 256, 128, 8
        $region60: #{tpu_custom_call.1} parent=55 // pred_fallthru
          _
        // Predicated region
        $region61: #{tpu_custom_call.1} parent=55 // pred_check
          %p519 = pneg %p290
        $region62: #{tpu_custom_call.1} parent=55 // pred_check_branch
          %521 = sbr.rel (%p519) target = $region64
        $region63: #{tpu_custom_call.1} parent=55 // pred_region
          %s522 = sand.u32 %s34, 1
          %s523 = scalar_lea.sflag [#allocation5], %s522
          %s524 = sand.u32 %s280, 1
          %s525 = smul.addr %s524, 16
          %s526 = scalar_lea.vmem [#allocation15], %s525
          %s528 = ssub.s32 256, 256
          %529 = vsyncadd %s523, %s528
          %s530 = smul.addr %s34, 128
          %s531 = scalar_lea.hbm %s11, %s530
          %s532 = sshll.u32 %s526, 4
          %s533 = int_to_ptr.vmem [resolvable:$true] %s532
          %538 = dma.hbm_to_vmem [thread:$0]  %s531, 256, %s533, %s523, 256, 128, 8
        $region64: #{tpu_custom_call.1} parent=55 // pred_fallthru
          _
        // Predicated region
        $region65: #{tpu_custom_call.1} parent=55 // pred_check
          %p539 = pneg %p316
        $region66: #{tpu_custom_call.1} parent=55 // pred_check_branch
          %541 = sbr.rel (%p539) target = $region68
        $region67: #{tpu_custom_call.1} parent=55 // pred_region
          %s542 = sand.u32 %s34, 1
          %s543 = scalar_lea.sflag [#allocation5], %s542
          %s544 = sand.u32 %s306, 1
          %s545 = smul.addr %s544, 16
          %s546 = scalar_lea.vmem [#allocation16], %s545
          %s548 = ssub.s32 256, 256
          %549 = vsyncadd %s543, %s548
          %s550 = smul.addr %s34, 128
          %s551 = scalar_lea.hbm %s12, %s550
          %s552 = sshll.u32 %s546, 4
          %s553 = int_to_ptr.vmem [resolvable:$true] %s552
          %558 = dma.hbm_to_vmem [thread:$0]  %s551, 256, %s553, %s543, 256, 128, 8
        $region68: #{tpu_custom_call.1} parent=55 // pred_fallthru
          _
      $region56: #{tpu_custom_call.1} parent=5 // pred_fallthru
        _
      %p559 = scmp.le.s32.totalorder 1, %s34
      %p560 = scmp.lt.s32.totalorder %s34, 3
      %p561 = pnand %p559, %p560
      %p562 = pneg %p561
      // Predicated region
      $region69: #{tpu_custom_call.1} parent=5 // pred_check
        _
      $region70: #{tpu_custom_call.1} parent=5 // pred_check_branch
        %564 = sbr.rel (%p561) target = $region72
      $region71: #{tpu_custom_call.1} parent=5 // pred_region
        %s565 = ssub.s32 %s34, 1
        %s566 = sand.u32 %s39, 1
        %s567 = scalar_lea.sflag [#allocation5], %s566
        %s568 = sand.u32 %s47, 1
        %s569 = smul.addr %s568, 64
        %s570 = scalar_lea.vmem [#allocation4], %s569
        // Predicated region
        $region73: #{tpu_custom_call.1} parent=71 // pred_check
          %p571 = pneg %p60
        $region74: #{tpu_custom_call.1} parent=71 // pred_check_branch
          %573 = sbr.rel (%p571) target = $region76
        $region75: #{tpu_custom_call.1} parent=71 // pred_region
          %574 = dma.done %s567, 1024
        $region76: #{tpu_custom_call.1} parent=71 // pred_fallthru
          _
        // Predicated region
        $region77: #{tpu_custom_call.1} parent=71 // pred_check
          %p575 = pneg %p81
        $region78: #{tpu_custom_call.1} parent=71 // pred_check_branch
          %577 = sbr.rel (%p575) target = $region80
        $region79: #{tpu_custom_call.1} parent=71 // pred_region
          %578 = dma.done [#allocation8], 256
        $region80: #{tpu_custom_call.1} parent=71 // pred_fallthru
          _
        // Predicated region
        $region81: #{tpu_custom_call.1} parent=71 // pred_check
          %p579 = pneg %p102
        $region82: #{tpu_custom_call.1} parent=71 // pred_check_branch
          %581 = sbr.rel (%p579) target = $region84
        $region83: #{tpu_custom_call.1} parent=71 // pred_region
          %582 = dma.done [#allocation8], 512
        $region84: #{tpu_custom_call.1} parent=71 // pred_fallthru
          _
        // Predicated region
        $region85: #{tpu_custom_call.1} parent=71 // pred_check
          %p583 = pneg %p144
        $region86: #{tpu_custom_call.1} parent=71 // pred_check_branch
          %585 = sbr.rel (%p583) target = $region88
        $region87: #{tpu_custom_call.1} parent=71 // pred_region
          %586 = dma.done [#allocation11], 512
        $region88: #{tpu_custom_call.1} parent=71 // pred_fallthru
          _
        // Predicated region
        $region89: #{tpu_custom_call.1} parent=71 // pred_check
          %p587 = pneg %p165
        $region90: #{tpu_custom_call.1} parent=71 // pred_check_branch
          %589 = sbr.rel (%p587) target = $region92
        $region91: #{tpu_custom_call.1} parent=71 // pred_region
          %590 = dma.done [#allocation11], 512
        $region92: #{tpu_custom_call.1} parent=71 // pred_fallthru
          _
        // Predicated region
        $region93: #{tpu_custom_call.1} parent=71 // pred_check
          %p591 = pneg %p207
        $region94: #{tpu_custom_call.1} parent=71 // pred_check_branch
          %593 = sbr.rel (%p591) target = $region96
        $region95: #{tpu_custom_call.1} parent=71 // pred_region
          %594 = dma.done [#allocation14], 512
        $region96: #{tpu_custom_call.1} parent=71 // pred_fallthru
          _
        %s595 = sand.u32 %s39, 1
        %s596 = scalar_lea.sflag [#allocation5], %s595
        %s597 = sand.u32 %s283, 1
        %s598 = smul.addr %s597, 16
        %s599 = scalar_lea.vmem [#allocation15], %s598
        // Predicated region
        $region97: #{tpu_custom_call.1} parent=71 // pred_check
          %p600 = pneg %p296
        $region98: #{tpu_custom_call.1} parent=71 // pred_check_branch
          %602 = sbr.rel (%p600) target = $region100
        $region99: #{tpu_custom_call.1} parent=71 // pred_region
          %603 = dma.done %s596, 256
        $region100: #{tpu_custom_call.1} parent=71 // pred_fallthru
          _
        %s604 = sand.u32 %s39, 1
        %s605 = scalar_lea.sflag [#allocation5], %s604
        %s606 = sand.u32 %s309, 1
        %s607 = smul.addr %s606, 16
        %s608 = scalar_lea.vmem [#allocation16], %s607
        // Predicated region
        $region101: #{tpu_custom_call.1} parent=71 // pred_check
          %p609 = pneg %p322
        $region102: #{tpu_custom_call.1} parent=71 // pred_check_branch
          %611 = sbr.rel (%p609) target = $region104
        $region103: #{tpu_custom_call.1} parent=71 // pred_region
          %612 = dma.done %s605, 256
        $region104: #{tpu_custom_call.1} parent=71 // pred_fallthru
          _
        %s613 = sand.u32 %s39, 1
        %s614 = scalar_lea.sflag [#allocation5], %s613
        %s615 = sand.u32 %s47, 1
        %s616 = smul.addr %s615, 64
        %s617 = scalar_lea.vmem [#allocation4], %s616
        %p618 = pneg %p60
        %p619 = pneg %p57
        %p620 = pneg %p81
        %p621 = pneg %p78
        %p622 = pneg %p102
        %p623 = pneg %p99
        %p624 = pneg %p123
        %p625 = pneg %p120
        %p626 = pneg %p144
        %p627 = pneg %p141
        %p628 = pneg %p165
        %p629 = pneg %p162
        %p630 = pneg %p186
        %p631 = pneg %p183
        %p632 = pneg %p207
        %p633 = pneg %p204
        %p634 = pneg %p228
        %p635 = pneg %p225
        %p636 = pneg %p249
        %p637 = pneg %p246
        %p638 = pneg %p270
        %p639 = pneg %p267
        %s640 = sand.u32 %s39, 1
        %s641 = scalar_lea.sflag [#allocation5], %s640
        %s642 = sand.u32 %s283, 1
        %s643 = smul.addr %s642, 16
        %s644 = scalar_lea.vmem [#allocation15], %s643
        %p645 = pneg %p296
        %p646 = pneg %p293
        %s647 = sand.u32 %s39, 1
        %s648 = scalar_lea.sflag [#allocation5], %s647
        %s649 = sand.u32 %s309, 1
        %s650 = smul.addr %s649, 16
        %s651 = scalar_lea.vmem [#allocation16], %s650
        %p652 = pneg %p322
        %p653 = pneg %p319
        %p654 = pneg %p348
        %p655 = pneg %p345
        %s656 = sand.u32 %s335, 1
        %s657 = scalar_lea.sflag [#allocation6], %s656
        %s658 = sand.u32 %s335, 1
        %s659 = smul.addr %s658, 64
        %s660 = scalar_lea.vmem [#allocation17], %s659
        %p661 = pneg %p374
        %p662 = pneg %p371
        %s663 = sand.u32 %s39, 1
        %s664 = scalar_lea.sflag [#allocation19], %s663
        %s665 = sand.u32 %s361, 1
        %s666 = smul.addr %s665, 16
        %s667 = scalar_lea.vmem [#allocation18], %s666
        %p668 = pneg %p400
        %p669 = pneg %p397
        %s670 = sand.u32 %s39, 1
        %s671 = scalar_lea.sflag [#allocation19], %s670
        %s672 = sand.u32 %s387, 1
        %s673 = smul.addr %s672, 16
        %s674 = scalar_lea.vmem [#allocation20], %s673
        %v675 = vld [vmem:[%s570] sm:$0xff]
        %v676 = vld [vmem:[%s570 + $0x8] sm:$0xff]
        %v677 = vld [vmem:[%s570 + $0x10] sm:$0xff]
        %v678 = vld [vmem:[%s570 + $0x18] sm:$0xff]
        %v679 = vld [vmem:[%s570 + $0x20] sm:$0xff]
        %v680 = vld [vmem:[%s570 + $0x28] sm:$0xff]
        %v681 = vld [vmem:[%s570 + $0x30] sm:$0xff]
        %v682 = vld [vmem:[%s570 + $0x38] sm:$0xff]
        %v683 = vld [vmem:[#allocation7] sm:$0xff]
        %v684 = vld [vmem:[#allocation7 + $0x8] sm:$0xff]
        %v685 = vld [vmem:[%s3] sm:$0x1]
        %v687 = vlaneseq
        %v688 = vshrl.u32 %v687, 7
        %v689 = vsub.s32 0, %v688
        %v690 = vrot.slane %v685, %v689
        %vm692 = vcmask 130048
        %v694 = vsel %vm692, %v675, 0
        %v697 = vsel %vm692, %v676, 0
        %v700 = vsel %vm692, %v677, 0
        %v703 = vsel %vm692, %v678, 0
        %v706 = vsel %vm692, %v679, 0
        %v709 = vsel %vm692, %v680, 0
        %v712 = vsel %vm692, %v681, 0
        %v715 = vsel %vm692, %v682, 0
        %717 = vmatprep.subr.mxu0 0.0
        %718 = vmatpush1.msra.mxu0 0.0
        %719 = vmatprep.subr.mxu0 0.0
        %720 = vmatpush1.msra.mxu0 0.0
        %721 = vmatprep.subr.mxu0 0.0
        %722 = vmatpush1.msra.mxu0 0.0
        %723 = vmatprep.subr.mxu0 0.0
        %724 = vmatpush1.msra.mxu0 0.0
        %725 = vmatprep.subr.mxu0 0.0
        %726 = vmatpush1.msra.mxu0 0.0
        %727 = vmatprep.subr.mxu0 0.0
        %728 = vmatpush1.msra.mxu0 0.0
        %729 = vmatprep.subr.mxu0 0.0
        %730 = vmatpush1.msra.mxu0 0.0
        %731 = vmatprep.subr.mxu0 0.0
        %732 = vmatpush1.msra.mxu0 0.0
        %733 = vmatprep.subr.mxu0 0.0
        %734 = vmatpush1.msra.mxu0 0.0
        %735 = vmatprep.subr.mxu0 0.0
        %736 = vmatpush1.msra.mxu0 0.0
        %737 = vmatprep.subr.mxu0 0.0
        %738 = vmatpush1.msra.mxu0 0.0
        %739 = vmatprep.subr.mxu0 0.0
        %740 = vmatpush1.msra.mxu0 0.0
        %741 = vmatprep.subr.mxu0 0.0
        %742 = vmatpush1.msra.mxu0 0.0
        %743 = vmatprep.subr.mxu0 0.0
        %744 = vmatpush1.msra.mxu0 0.0
        %745 = vmatprep.subr.mxu0 0.0
        %746 = vmatpush1.msra.mxu0 %v684
        %747 = vmatprep.subr.mxu0 0.0
        %748 = vmatpush1.msra.mxu0 %v683
        %749 = vmatprep.subr.mxu0 0.0
        %750 = vmatpush2.msra.mxu0 0.0
        %751 = vmatprep.subr.mxu0 0.0
        %752 = vmatpush2.msra.mxu0 0.0
        %753 = vmatprep.subr.mxu0 0.0
        %754 = vmatpush2.msra.mxu0 0.0
        %755 = vmatprep.subr.mxu0 0.0
        %756 = vmatpush2.msra.mxu0 0.0
        %757 = vmatprep.subr.mxu0 0.0
        %758 = vmatpush2.msra.mxu0 0.0
        %759 = vmatprep.subr.mxu0 0.0
        %760 = vmatpush2.msra.mxu0 0.0
        %761 = vmatprep.subr.mxu0 0.0
        %762 = vmatpush2.msra.mxu0 0.0
        %763 = vmatprep.subr.mxu0 0.0
        %764 = vmatpush2.msra.mxu0 0.0
        %765 = vmatprep.subr.mxu0 0.0
        %766 = vmatpush2.msra.mxu0 0.0
        %767 = vmatprep.subr.mxu0 0.0
        %768 = vmatpush2.msra.mxu0 0.0
        %769 = vmatprep.subr.mxu0 0.0
        %770 = vmatpush2.msra.mxu0 0.0
        %771 = vmatprep.subr.mxu0 0.0
        %772 = vmatpush2.msra.mxu0 0.0
        %773 = vmatprep.subr.mxu0 0.0
        %774 = vmatpush2.msra.mxu0 0.0
        %775 = vmatprep.subr.mxu0 0.0
        %776 = vmatpush2.msra.mxu0 0.0
        %777 = vmatprep.subr.mxu0 0.0
        %778 = vmatpush2.msra.mxu0 0.0
        %779 = vmatprep.subr.mxu0 0.0
        %780 = vmatpush2.msra.mxu0 0.0
        %781 = vmatprep.mubr.f32.mxu0 0.0
        %782 = vmatmul.mubr.f32.gmra.mxu0 %v694
        %v783 = vpop.f32.mrf.mxu0
        %v784 = vadd.f32 %v690, %v783
        %v785 = vpop.f32.mrf.mxu0
        %786 = vmatprep.mubr.f32.mxu0 0.0
        %787 = vmatmul.mubr.f32.gmra.mxu0 %v697
        %v788 = vpop.f32.mrf.mxu0
        %v789 = vadd.f32 %v690, %v788
        %v790 = vpop.f32.mrf.mxu0
        %791 = vmatprep.mubr.f32.mxu0 0.0
        %792 = vmatmul.mubr.f32.gmra.mxu0 %v700
        %v793 = vpop.f32.mrf.mxu0
        %v794 = vadd.f32 %v690, %v793
        %v795 = vpop.f32.mrf.mxu0
        %796 = vmatprep.mubr.f32.mxu0 0.0
        %797 = vmatmul.mubr.f32.gmra.mxu0 %v703
        %v798 = vpop.f32.mrf.mxu0
        %v799 = vadd.f32 %v690, %v798
        %v800 = vpop.f32.mrf.mxu0
        %801 = vmatprep.mubr.f32.mxu0 0.0
        %802 = vmatmul.mubr.f32.gmra.mxu0 %v706
        %v803 = vpop.f32.mrf.mxu0
        %v804 = vadd.f32 %v690, %v803
        %v805 = vpop.f32.mrf.mxu0
        %806 = vmatprep.mubr.f32.mxu0 0.0
        %807 = vmatmul.mubr.f32.gmra.mxu0 %v709
        %v808 = vpop.f32.mrf.mxu0
        %v809 = vadd.f32 %v690, %v808
        %v810 = vpop.f32.mrf.mxu0
        %811 = vmatprep.mubr.f32.mxu0 0.0
        %812 = vmatmul.mubr.f32.gmra.mxu0 %v712
        %v813 = vpop.f32.mrf.mxu0
        %v814 = vadd.f32 %v690, %v813
        %v815 = vpop.f32.mrf.mxu0
        %816 = vmatprep.mubr.f32.mxu0 0.0
        %817 = vmatmul.mubr.f32.gmra.mxu0 %v715
        %v818 = vpop.f32.mrf.mxu0
        %v819 = vadd.f32 %v690, %v818
        %v820 = vpop.f32.mrf.mxu0
        %821 = vdwg.mxu0
        %822 = vst [vmem:[#allocation2] sm:$0xff] %v784
        %823 = vst [vmem:[#allocation2 + $0x8] sm:$0xff] %v789
        %824 = vst [vmem:[#allocation2 + $0x10] sm:$0xff] %v794
        %825 = vst [vmem:[#allocation2 + $0x18] sm:$0xff] %v799
        %826 = vst [vmem:[#allocation2 + $0x20] sm:$0xff] %v804
        %827 = vst [vmem:[#allocation2 + $0x28] sm:$0xff] %v809
        %828 = vst [vmem:[#allocation2 + $0x30] sm:$0xff] %v814
        %829 = vst [vmem:[#allocation2 + $0x38] sm:$0xff] %v819
        %v830 = vld [vmem:[%s9] sm:$0x1]
        %v832 = vlaneseq
        %v833 = vshrl.u32 %v832, 7
        %v834 = vsub.s32 0, %v833
        %v835 = vrot.slane %v830, %v834
        %v837 = vld [vmem:[%s10] sm:$0x1]
        %v839 = vlaneseq
        %v840 = vshrl.u32 %v839, 7
        %v841 = vsub.s32 0, %v840
        %v842 = vrot.slane %v837, %v841
        %v844 = vld [vmem:[%s6] sm:$0x1]
        %v846 = vlaneseq
        %v847 = vshrl.u32 %v846, 7
        %v848 = vsub.s32 0, %v847
        %v849 = vrot.slane %v844, %v848
        %v851 = vld [vmem:[%s599] sm:$0xff]
        %s852 = scalar_lea.vmem %s599, 8 [#allocation15]
        %v853 = vld [vmem:[%s852] sm:$0xff]
        %v854 = vld [vmem:[%s608] sm:$0xff]
        %s855 = scalar_lea.vmem %s608, 8 [#allocation16]
        %v856 = vld [vmem:[%s855] sm:$0xff]
        %v857 = vld [vmem:[#allocation9] sm:$0xff]
        %v858 = vld [vmem:[#allocation9 + $0x8] sm:$0xff]
        %v859 = vld [vmem:[#allocation9 + $0x10] sm:$0xff]
        %v860 = vld [vmem:[#allocation9 + $0x18] sm:$0xff]
        %vm861 = vcmask 261120
        %v863 = vsel %vm861, %v851, 0
        %865 = vmatprep.subr.mxu0 0.0
        %866 = vmatpush1.msra.mxu0 0.0
        %867 = vmatprep.subr.mxu0 0.0
        %868 = vmatpush1.msra.mxu0 0.0
        %869 = vmatprep.subr.mxu0 0.0
        %870 = vmatpush1.msra.mxu0 0.0
        %871 = vmatprep.subr.mxu0 0.0
        %872 = vmatpush1.msra.mxu0 0.0
        %873 = vmatprep.subr.mxu0 0.0
        %874 = vmatpush1.msra.mxu0 0.0
        %875 = vmatprep.subr.mxu0 0.0
        %876 = vmatpush1.msra.mxu0 0.0
        %877 = vmatprep.subr.mxu0 0.0
        %878 = vmatpush1.msra.mxu0 0.0
        %879 = vmatprep.subr.mxu0 0.0
        %880 = vmatpush1.msra.mxu0 0.0
        %881 = vmatprep.subr.mxu0 0.0
        %882 = vmatpush1.msra.mxu0 0.0
        %883 = vmatprep.subr.mxu0 0.0
        %884 = vmatpush1.msra.mxu0 0.0
        %885 = vmatprep.subr.mxu0 0.0
        %886 = vmatpush1.msra.mxu0 0.0
        %887 = vmatprep.subr.mxu0 0.0
        %888 = vmatpush1.msra.mxu0 0.0
        %889 = vmatprep.subr.mxu0 0.0
        %890 = vmatpush1.msra.mxu0 %v860
        %891 = vmatprep.subr.mxu0 0.0
        %892 = vmatpush1.msra.mxu0 %v859
        %893 = vmatprep.subr.mxu0 0.0
        %894 = vmatpush1.msra.mxu0 %v858
        %895 = vmatprep.subr.mxu0 0.0
        %896 = vmatpush1.msra.mxu0 %v857
        %897 = vmatprep.subr.mxu0 0.0
        %898 = vmatpush2.msra.mxu0 0.0
        %899 = vmatprep.subr.mxu0 0.0
        %900 = vmatpush2.msra.mxu0 0.0
        %901 = vmatprep.subr.mxu0 0.0
        %902 = vmatpush2.msra.mxu0 0.0
        %903 = vmatprep.subr.mxu0 0.0
        %904 = vmatpush2.msra.mxu0 0.0
        %905 = vmatprep.subr.mxu0 0.0
        %906 = vmatpush2.msra.mxu0 0.0
        %907 = vmatprep.subr.mxu0 0.0
        %908 = vmatpush2.msra.mxu0 0.0
        %909 = vmatprep.subr.mxu0 0.0
        %910 = vmatpush2.msra.mxu0 0.0
        %911 = vmatprep.subr.mxu0 0.0
        %912 = vmatpush2.msra.mxu0 0.0
        %913 = vmatprep.subr.mxu0 0.0
        %914 = vmatpush2.msra.mxu0 0.0
        %915 = vmatprep.subr.mxu0 0.0
        %916 = vmatpush2.msra.mxu0 0.0
        %917 = vmatprep.subr.mxu0 0.0
        %918 = vmatpush2.msra.mxu0 0.0
        %919 = vmatprep.subr.mxu0 0.0
        %920 = vmatpush2.msra.mxu0 0.0
        %921 = vmatprep.subr.mxu0 0.0
        %922 = vmatpush2.msra.mxu0 0.0
        %923 = vmatprep.subr.mxu0 0.0
        %924 = vmatpush2.msra.mxu0 0.0
        %925 = vmatprep.subr.mxu0 0.0
        %926 = vmatpush2.msra.mxu0 0.0
        %927 = vmatprep.subr.mxu0 0.0
        %928 = vmatpush2.msra.mxu0 0.0
        %929 = vmatprep.mubr.f32.mxu0 0.0
        %930 = vmatmul.mubr.f32.gmra.mxu0 %v863
        %v931 = vpop.f32.mrf.mxu0
        %v932 = vadd.f32 0.0, %v931
        %v933 = vpop.f32.mrf.mxu0
        %934 = vdwg.mxu0
        %v935 = vld [vmem:[#allocation2] sm:$0xff]
        %v936 = vadd.f32 %v935, %v932
        %v937 = vtanh.pop %v936
        %v938 = vmul.f32 %v937, %v835
        %v939 = vadd.f32 %v938, %v842
        %941 = vrot.lane.b32.xlu0 %v854, 32
        %v942 = vpop.permute.xlu0 %941
        %v944 = vmul.f32 %v939, %v942
        %946 = vrot.lane.b32.xlu0 %v939, 64
        %v947 = vpop.permute.xlu0 %946
        %v949 = vmul.f32 %v939, %v947
        %951 = vrot.lane.b32.xlu0 %v949, 32
        %v952 = vpop.permute.xlu0 %951
        %v954 = vadd.f32 %v944, %v952
        %v955 = vtanh.pop %v954
        %957 = vrot.lane.b32.xlu0 %v955, 64
        %v958 = vpop.permute.xlu0 %957
        %v960 = vmul.f32 %v939, %v958
        %v961 = vld [vmem:[#allocation12] sm:$0xff]
        %v962 = vld [vmem:[#allocation12 + $0x8] sm:$0xff]
        %v963 = vld [vmem:[#allocation12 + $0x10] sm:$0xff]
        %v964 = vld [vmem:[#allocation12 + $0x18] sm:$0xff]
        %v966 = vsel %vm861, %v853, 0
        %968 = vmatprep.subr.mxu0 0.0
        %969 = vmatpush1.msra.mxu0 0.0
        %970 = vmatprep.subr.mxu0 0.0
        %971 = vmatpush1.msra.mxu0 0.0
        %972 = vmatprep.subr.mxu0 0.0
        %973 = vmatpush1.msra.mxu0 0.0
        %974 = vmatprep.subr.mxu0 0.0
        %975 = vmatpush1.msra.mxu0 0.0
        %976 = vmatprep.subr.mxu0 0.0
        %977 = vmatpush1.msra.mxu0 0.0
        %978 = vmatprep.subr.mxu0 0.0
        %979 = vmatpush1.msra.mxu0 0.0
        %980 = vmatprep.subr.mxu0 0.0
        %981 = vmatpush1.msra.mxu0 0.0
        %982 = vmatprep.subr.mxu0 0.0
        %983 = vmatpush1.msra.mxu0 0.0
        %984 = vmatprep.subr.mxu0 0.0
        %985 = vmatpush1.msra.mxu0 0.0
        %986 = vmatprep.subr.mxu0 0.0
        %987 = vmatpush1.msra.mxu0 0.0
        %988 = vmatprep.subr.mxu0 0.0
        %989 = vmatpush1.msra.mxu0 0.0
        %990 = vmatprep.subr.mxu0 0.0
        %991 = vmatpush1.msra.mxu0 0.0
        %992 = vmatprep.subr.mxu0 0.0
        %993 = vmatpush1.msra.mxu0 %v964
        %994 = vmatprep.subr.mxu0 0.0
        %995 = vmatpush1.msra.mxu0 %v963
        %996 = vmatprep.subr.mxu0 0.0
        %997 = vmatpush1.msra.mxu0 %v962
        %998 = vmatprep.subr.mxu0 0.0
        %999 = vmatpush1.msra.mxu0 %v961
        %1000 = vmatprep.subr.mxu0 0.0
        %1001 = vmatpush2.msra.mxu0 0.0
        %1002 = vmatprep.subr.mxu0 0.0
        %1003 = vmatpush2.msra.mxu0 0.0
        %1004 = vmatprep.subr.mxu0 0.0
        %1005 = vmatpush2.msra.mxu0 0.0
        %1006 = vmatprep.subr.mxu0 0.0
        %1007 = vmatpush2.msra.mxu0 0.0
        %1008 = vmatprep.subr.mxu0 0.0
        %1009 = vmatpush2.msra.mxu0 0.0
        %1010 = vmatprep.subr.mxu0 0.0
        %1011 = vmatpush2.msra.mxu0 0.0
        %1012 = vmatprep.subr.mxu0 0.0
        %1013 = vmatpush2.msra.mxu0 0.0
        %1014 = vmatprep.subr.mxu0 0.0
        %1015 = vmatpush2.msra.mxu0 0.0
        %1016 = vmatprep.subr.mxu0 0.0
        %1017 = vmatpush2.msra.mxu0 0.0
        %1018 = vmatprep.subr.mxu0 0.0
        %1019 = vmatpush2.msra.mxu0 0.0
        %1020 = vmatprep.subr.mxu0 0.0
        %1021 = vmatpush2.msra.mxu0 0.0
        %1022 = vmatprep.subr.mxu0 0.0
        %1023 = vmatpush2.msra.mxu0 0.0
        %1024 = vmatprep.subr.mxu0 0.0
        %1025 = vmatpush2.msra.mxu0 0.0
        %1026 = vmatprep.subr.mxu0 0.0
        %1027 = vmatpush2.msra.mxu0 0.0
        %1028 = vmatprep.subr.mxu0 0.0
        %1029 = vmatpush2.msra.mxu0 0.0
        %1030 = vmatprep.subr.mxu0 0.0
        %1031 = vmatpush2.msra.mxu0 0.0
        %1032 = vmatprep.mubr.f32.mxu0 0.0
        %1033 = vmatmul.mubr.f32.gmra.mxu0 %v966
        %v1034 = vpop.f32.mrf.mxu0
        %v1035 = vadd.f32 0.0, %v1034
        %v1036 = vpop.f32.mrf.mxu0
        %1037 = vdwg.mxu0
        %v1038 = vld [vmem:[#allocation10] sm:$0xff]
        %v1039 = vld [vmem:[#allocation10 + $0x8] sm:$0xff]
        %v1040 = vld [vmem:[#allocation10 + $0x10] sm:$0xff]
        %v1041 = vld [vmem:[#allocation10 + $0x18] sm:$0xff]
        %1043 = vrot.lane.b32.xlu0 %v960, 32
        %v1044 = vpop.permute.xlu0 %1043
        %v1045 = vsel %vm861, %v1044, 0
        %1047 = vmatprep.subr.mxu0 0.0
        %1048 = vmatpush1.msra.mxu0 0.0
        %1049 = vmatprep.subr.mxu0 0.0
        %1050 = vmatpush1.msra.mxu0 0.0
        %1051 = vmatprep.subr.mxu0 0.0
        %1052 = vmatpush1.msra.mxu0 0.0
        %1053 = vmatprep.subr.mxu0 0.0
        %1054 = vmatpush1.msra.mxu0 0.0
        %1055 = vmatprep.subr.mxu0 0.0
        %1056 = vmatpush1.msra.mxu0 0.0
        %1057 = vmatprep.subr.mxu0 0.0
        %1058 = vmatpush1.msra.mxu0 0.0
        %1059 = vmatprep.subr.mxu0 0.0
        %1060 = vmatpush1.msra.mxu0 0.0
        %1061 = vmatprep.subr.mxu0 0.0
        %1062 = vmatpush1.msra.mxu0 0.0
        %1063 = vmatprep.subr.mxu0 0.0
        %1064 = vmatpush1.msra.mxu0 0.0
        %1065 = vmatprep.subr.mxu0 0.0
        %1066 = vmatpush1.msra.mxu0 0.0
        %1067 = vmatprep.subr.mxu0 0.0
        %1068 = vmatpush1.msra.mxu0 0.0
        %1069 = vmatprep.subr.mxu0 0.0
        %1070 = vmatpush1.msra.mxu0 0.0
        %1071 = vmatprep.subr.mxu0 0.0
        %1072 = vmatpush1.msra.mxu0 %v1041
        %1073 = vmatprep.subr.mxu0 0.0
        %1074 = vmatpush1.msra.mxu0 %v1040
        %1075 = vmatprep.subr.mxu0 0.0
        %1076 = vmatpush1.msra.mxu0 %v1039
        %1077 = vmatprep.subr.mxu0 0.0
        %1078 = vmatpush1.msra.mxu0 %v1038
        %1079 = vmatprep.subr.mxu0 0.0
        %1080 = vmatpush2.msra.mxu0 0.0
        %1081 = vmatprep.subr.mxu0 0.0
        %1082 = vmatpush2.msra.mxu0 0.0
        %1083 = vmatprep.subr.mxu0 0.0
        %1084 = vmatpush2.msra.mxu0 0.0
        %1085 = vmatprep.subr.mxu0 0.0
        %1086 = vmatpush2.msra.mxu0 0.0
        %1087 = vmatprep.subr.mxu0 0.0
        %1088 = vmatpush2.msra.mxu0 0.0
        %1089 = vmatprep.subr.mxu0 0.0
        %1090 = vmatpush2.msra.mxu0 0.0
        %1091 = vmatprep.subr.mxu0 0.0
        %1092 = vmatpush2.msra.mxu0 0.0
        %1093 = vmatprep.subr.mxu0 0.0
        %1094 = vmatpush2.msra.mxu0 0.0
        %1095 = vmatprep.subr.mxu0 0.0
        %1096 = vmatpush2.msra.mxu0 0.0
        %1097 = vmatprep.subr.mxu0 0.0
        %1098 = vmatpush2.msra.mxu0 0.0
        %1099 = vmatprep.subr.mxu0 0.0
        %1100 = vmatpush2.msra.mxu0 0.0
        %1101 = vmatprep.subr.mxu0 0.0
        %1102 = vmatpush2.msra.mxu0 0.0
        %1103 = vmatprep.subr.mxu0 0.0
        %1104 = vmatpush2.msra.mxu0 0.0
        %1105 = vmatprep.subr.mxu0 0.0
        %1106 = vmatpush2.msra.mxu0 0.0
        %1107 = vmatprep.subr.mxu0 0.0
        %1108 = vmatpush2.msra.mxu0 0.0
        %1109 = vmatprep.subr.mxu0 0.0
        %1110 = vmatpush2.msra.mxu0 0.0
        %1111 = vmatprep.mubr.f32.mxu0 0.0
        %1112 = vmatmul.mubr.f32.gmra.mxu0 %v1045
        %v1113 = vpop.f32.mrf.mxu0
        %v1114 = vadd.f32 %v1035, %v1113
        %v1115 = vpop.f32.mrf.mxu0
        %1116 = vdwg.mxu0
        %v1117 = vadd.f32 %v1114, %v849
        %v1118 = vtanh.pop %v1117
        %v1119 = vmul.f32 %v1118, %v835
        %v1120 = vadd.f32 %v1119, %v842
        %1122 = vrot.lane.b32.xlu0 %v856, 32
        %v1123 = vpop.permute.xlu0 %1122
        %v1125 = vmul.f32 %v1120, %v1123
        %1127 = vrot.lane.b32.xlu0 %v1120, 64
        %v1128 = vpop.permute.xlu0 %1127
        %v1130 = vmul.f32 %v1120, %v1128
        %1132 = vrot.lane.b32.xlu0 %v1130, 32
        %v1133 = vpop.permute.xlu0 %1132
        %v1135 = vadd.f32 %v1125, %v1133
        %v1136 = vtanh.pop %v1135
        %1138 = vrot.lane.b32.xlu0 %v1136, 64
        %v1139 = vpop.permute.xlu0 %1138
        %v1141 = vmul.f32 %v1120, %v1139
        %1143 = vrot.lane.b32.xlu0 %v1141, 32
        %v1144 = vpop.permute.xlu0 %1143
        %1146 = vst.msk [vmem:[#allocation3] sm:$0xff] %vm861, %v1144
        %v1147 = vld [vmem:[#allocation9] sm:$0xff]
        %v1148 = vld [vmem:[#allocation9 + $0x8] sm:$0xff]
        %v1149 = vld [vmem:[#allocation9 + $0x10] sm:$0xff]
        %v1150 = vld [vmem:[#allocation9 + $0x18] sm:$0xff]
        %1151 = vmatprep.subr.mxu0 0.0
        %1152 = vmatpush1.msra.mxu0 0.0
        %1153 = vmatprep.subr.mxu0 0.0
        %1154 = vmatpush1.msra.mxu0 0.0
        %1155 = vmatprep.subr.mxu0 0.0
        %1156 = vmatpush1.msra.mxu0 0.0
        %1157 = vmatprep.subr.mxu0 0.0
        %1158 = vmatpush1.msra.mxu0 0.0
        %1159 = vmatprep.subr.mxu0 0.0
        %1160 = vmatpush1.msra.mxu0 0.0
        %1161 = vmatprep.subr.mxu0 0.0
        %1162 = vmatpush1.msra.mxu0 0.0
        %1163 = vmatprep.subr.mxu0 0.0
        %1164 = vmatpush1.msra.mxu0 0.0
        %1165 = vmatprep.subr.mxu0 0.0
        %1166 = vmatpush1.msra.mxu0 0.0
        %1167 = vmatprep.subr.mxu0 0.0
        %1168 = vmatpush1.msra.mxu0 0.0
        %1169 = vmatprep.subr.mxu0 0.0
        %1170 = vmatpush1.msra.mxu0 0.0
        %1171 = vmatprep.subr.mxu0 0.0
        %1172 = vmatpush1.msra.mxu0 0.0
        %1173 = vmatprep.subr.mxu0 0.0
        %1174 = vmatpush1.msra.mxu0 0.0
        %1175 = vmatprep.subr.mxu0 0.0
        %1176 = vmatpush1.msra.mxu0 %v1150
        %1177 = vmatprep.subr.mxu0 0.0
        %1178 = vmatpush1.msra.mxu0 %v1149
        %1179 = vmatprep.subr.mxu0 0.0
        %1180 = vmatpush1.msra.mxu0 %v1148
        %1181 = vmatprep.subr.mxu0 0.0
        %1182 = vmatpush1.msra.mxu0 %v1147
        %1183 = vmatprep.subr.mxu0 0.0
        %1184 = vmatpush2.msra.mxu0 0.0
        %1185 = vmatprep.subr.mxu0 0.0
        %1186 = vmatpush2.msra.mxu0 0.0
        %1187 = vmatprep.subr.mxu0 0.0
        %1188 = vmatpush2.msra.mxu0 0.0
        %1189 = vmatprep.subr.mxu0 0.0
        %1190 = vmatpush2.msra.mxu0 0.0
        %1191 = vmatprep.subr.mxu0 0.0
        %1192 = vmatpush2.msra.mxu0 0.0
        %1193 = vmatprep.subr.mxu0 0.0
        %1194 = vmatpush2.msra.mxu0 0.0
        %1195 = vmatprep.subr.mxu0 0.0
        %1196 = vmatpush2.msra.mxu0 0.0
        %1197 = vmatprep.subr.mxu0 0.0
        %1198 = vmatpush2.msra.mxu0 0.0
        %1199 = vmatprep.subr.mxu0 0.0
        %1200 = vmatpush2.msra.mxu0 0.0
        %1201 = vmatprep.subr.mxu0 0.0
        %1202 = vmatpush2.msra.mxu0 0.0
        %1203 = vmatprep.subr.mxu0 0.0
        %1204 = vmatpush2.msra.mxu0 0.0
        %1205 = vmatprep.subr.mxu0 0.0
        %1206 = vmatpush2.msra.mxu0 0.0
        %1207 = vmatprep.subr.mxu0 0.0
        %1208 = vmatpush2.msra.mxu0 0.0
        %1209 = vmatprep.subr.mxu0 0.0
        %1210 = vmatpush2.msra.mxu0 0.0
        %1211 = vmatprep.subr.mxu0 0.0
        %1212 = vmatpush2.msra.mxu0 0.0
        %1213 = vmatprep.subr.mxu0 0.0
        %1214 = vmatpush2.msra.mxu0 0.0
        %1215 = vmatprep.mubr.f32.mxu0 0.0
        %1216 = vmatmul.mubr.f32.gmra.mxu0 %v1045
        %v1217 = vpop.f32.mrf.mxu0
        %v1218 = vadd.f32 0.0, %v1217
        %v1219 = vpop.f32.mrf.mxu0
        %1220 = vdwg.mxu0
        %s1221 = scalar_lea.vmem [#allocation2], 8
        %v1222 = vld [vmem:[%s1221] sm:$0xff]
        %v1223 = vadd.f32 %v1222, %v1218
        %v1224 = vtanh.pop %v1223
        %v1225 = vmul.f32 %v1224, %v835
        %v1226 = vadd.f32 %v1225, %v842
        %v1227 = vmul.f32 %v1226, %v954
        %1229 = vrot.lane.b32.xlu0 %v1226, 64
        %v1230 = vpop.permute.xlu0 %1229
        %v1232 = vmul.f32 %v1226, %v1230
        %1234 = vrot.lane.b32.xlu0 %v1232, 32
        %v1235 = vpop.permute.xlu0 %1234
        %v1237 = vadd.f32 %v1227, %v1235
        %v1238 = vtanh.pop %v1237
        %1240 = vrot.lane.b32.xlu0 %v1238, 64
        %v1241 = vpop.permute.xlu0 %1240
        %v1243 = vmul.f32 %v1226, %v1241
        %v1244 = vld [vmem:[#allocation12] sm:$0xff]
        %v1245 = vld [vmem:[#allocation12 + $0x8] sm:$0xff]
        %v1246 = vld [vmem:[#allocation12 + $0x10] sm:$0xff]
        %v1247 = vld [vmem:[#allocation12 + $0x18] sm:$0xff]
        %v1248 = vsel %vm861, %v1144, 0
        %1250 = vmatprep.subr.mxu0 0.0
        %1251 = vmatpush1.msra.mxu0 0.0
        %1252 = vmatprep.subr.mxu0 0.0
        %1253 = vmatpush1.msra.mxu0 0.0
        %1254 = vmatprep.subr.mxu0 0.0
        %1255 = vmatpush1.msra.mxu0 0.0
        %1256 = vmatprep.subr.mxu0 0.0
        %1257 = vmatpush1.msra.mxu0 0.0
        %1258 = vmatprep.subr.mxu0 0.0
        %1259 = vmatpush1.msra.mxu0 0.0
        %1260 = vmatprep.subr.mxu0 0.0
        %1261 = vmatpush1.msra.mxu0 0.0
        %1262 = vmatprep.subr.mxu0 0.0
        %1263 = vmatpush1.msra.mxu0 0.0
        %1264 = vmatprep.subr.mxu0 0.0
        %1265 = vmatpush1.msra.mxu0 0.0
        %1266 = vmatprep.subr.mxu0 0.0
        %1267 = vmatpush1.msra.mxu0 0.0
        %1268 = vmatprep.subr.mxu0 0.0
        %1269 = vmatpush1.msra.mxu0 0.0
        %1270 = vmatprep.subr.mxu0 0.0
        %1271 = vmatpush1.msra.mxu0 0.0
        %1272 = vmatprep.subr.mxu0 0.0
        %1273 = vmatpush1.msra.mxu0 0.0
        %1274 = vmatprep.subr.mxu0 0.0
        %1275 = vmatpush1.msra.mxu0 %v1247
        %1276 = vmatprep.subr.mxu0 0.0
        %1277 = vmatpush1.msra.mxu0 %v1246
        %1278 = vmatprep.subr.mxu0 0.0
        %1279 = vmatpush1.msra.mxu0 %v1245
        %1280 = vmatprep.subr.mxu0 0.0
        %1281 = vmatpush1.msra.mxu0 %v1244
        %1282 = vmatprep.subr.mxu0 0.0
        %1283 = vmatpush2.msra.mxu0 0.0
        %1284 = vmatprep.subr.mxu0 0.0
        %1285 = vmatpush2.msra.mxu0 0.0
        %1286 = vmatprep.subr.mxu0 0.0
        %1287 = vmatpush2.msra.mxu0 0.0
        %1288 = vmatprep.subr.mxu0 0.0
        %1289 = vmatpush2.msra.mxu0 0.0
        %1290 = vmatprep.subr.mxu0 0.0
        %1291 = vmatpush2.msra.mxu0 0.0
        %1292 = vmatprep.subr.mxu0 0.0
        %1293 = vmatpush2.msra.mxu0 0.0
        %1294 = vmatprep.subr.mxu0 0.0
        %1295 = vmatpush2.msra.mxu0 0.0
        %1296 = vmatprep.subr.mxu0 0.0
        %1297 = vmatpush2.msra.mxu0 0.0
        %1298 = vmatprep.subr.mxu0 0.0
        %1299 = vmatpush2.msra.mxu0 0.0
        %1300 = vmatprep.subr.mxu0 0.0
        %1301 = vmatpush2.msra.mxu0 0.0
        %1302 = vmatprep.subr.mxu0 0.0
        %1303 = vmatpush2.msra.mxu0 0.0
        %1304 = vmatprep.subr.mxu0 0.0
        %1305 = vmatpush2.msra.mxu0 0.0
        %1306 = vmatprep.subr.mxu0 0.0
        %1307 = vmatpush2.msra.mxu0 0.0
        %1308 = vmatprep.subr.mxu0 0.0
        %1309 = vmatpush2.msra.mxu0 0.0
        %1310 = vmatprep.subr.mxu0 0.0
        %1311 = vmatpush2.msra.mxu0 0.0
        %1312 = vmatprep.subr.mxu0 0.0
        %1313 = vmatpush2.msra.mxu0 0.0
        %1314 = vmatprep.mubr.f32.mxu0 0.0
        %1315 = vmatmul.mubr.f32.gmra.mxu0 %v1248
        %v1316 = vpop.f32.mrf.mxu0
        %v1317 = vadd.f32 0.0, %v1316
        %v1318 = vpop.f32.mrf.mxu0
        %1319 = vdwg.mxu0
        %v1320 = vld [vmem:[#allocation10] sm:$0xff]
        %v1321 = vld [vmem:[#allocation10 + $0x8] sm:$0xff]
        %v1322 = vld [vmem:[#allocation10 + $0x10] sm:$0xff]
        %v1323 = vld [vmem:[#allocation10 + $0x18] sm:$0xff]
        %1325 = vrot.lane.b32.xlu0 %v1243, 32
        %v1326 = vpop.permute.xlu0 %1325
        %v1327 = vsel %vm861, %v1326, 0
        %1329 = vmatprep.subr.mxu0 0.0
        %1330 = vmatpush1.msra.mxu0 0.0
        %1331 = vmatprep.subr.mxu0 0.0
        %1332 = vmatpush1.msra.mxu0 0.0
        %1333 = vmatprep.subr.mxu0 0.0
        %1334 = vmatpush1.msra.mxu0 0.0
        %1335 = vmatprep.subr.mxu0 0.0
        %1336 = vmatpush1.msra.mxu0 0.0
        %1337 = vmatprep.subr.mxu0 0.0
        %1338 = vmatpush1.msra.mxu0 0.0
        %1339 = vmatprep.subr.mxu0 0.0
        %1340 = vmatpush1.msra.mxu0 0.0
        %1341 = vmatprep.subr.mxu0 0.0
        %1342 = vmatpush1.msra.mxu0 0.0
        %1343 = vmatprep.subr.mxu0 0.0
        %1344 = vmatpush1.msra.mxu0 0.0
        %1345 = vmatprep.subr.mxu0 0.0
        %1346 = vmatpush1.msra.mxu0 0.0
        %1347 = vmatprep.subr.mxu0 0.0
        %1348 = vmatpush1.msra.mxu0 0.0
        %1349 = vmatprep.subr.mxu0 0.0
        %1350 = vmatpush1.msra.mxu0 0.0
        %1351 = vmatprep.subr.mxu0 0.0
        %1352 = vmatpush1.msra.mxu0 0.0
        %1353 = vmatprep.subr.mxu0 0.0
        %1354 = vmatpush1.msra.mxu0 %v1323
        %1355 = vmatprep.subr.mxu0 0.0
        %1356 = vmatpush1.msra.mxu0 %v1322
        %1357 = vmatprep.subr.mxu0 0.0
        %1358 = vmatpush1.msra.mxu0 %v1321
        %1359 = vmatprep.subr.mxu0 0.0
        %1360 = vmatpush1.msra.mxu0 %v1320
        %1361 = vmatprep.subr.mxu0 0.0
        %1362 = vmatpush2.msra.mxu0 0.0
        %1363 = vmatprep.subr.mxu0 0.0
        %1364 = vmatpush2.msra.mxu0 0.0
        %1365 = vmatprep.subr.mxu0 0.0
        %1366 = vmatpush2.msra.mxu0 0.0
        %1367 = vmatprep.subr.mxu0 0.0
        %1368 = vmatpush2.msra.mxu0 0.0
        %1369 = vmatprep.subr.mxu0 0.0
        %1370 = vmatpush2.msra.mxu0 0.0
        %1371 = vmatprep.subr.mxu0 0.0
        %1372 = vmatpush2.msra.mxu0 0.0
        %1373 = vmatprep.subr.mxu0 0.0
        %1374 = vmatpush2.msra.mxu0 0.0
        %1375 = vmatprep.subr.mxu0 0.0
        %1376 = vmatpush2.msra.mxu0 0.0
        %1377 = vmatprep.subr.mxu0 0.0
        %1378 = vmatpush2.msra.mxu0 0.0
        %1379 = vmatprep.subr.mxu0 0.0
        %1380 = vmatpush2.msra.mxu0 0.0
        %1381 = vmatprep.subr.mxu0 0.0
        %1382 = vmatpush2.msra.mxu0 0.0
        %1383 = vmatprep.subr.mxu0 0.0
        %1384 = vmatpush2.msra.mxu0 0.0
        %1385 = vmatprep.subr.mxu0 0.0
        %1386 = vmatpush2.msra.mxu0 0.0
        %1387 = vmatprep.subr.mxu0 0.0
        %1388 = vmatpush2.msra.mxu0 0.0
        %1389 = vmatprep.subr.mxu0 0.0
        %1390 = vmatpush2.msra.mxu0 0.0
        %1391 = vmatprep.subr.mxu0 0.0
        %1392 = vmatpush2.msra.mxu0 0.0
        %1393 = vmatprep.mubr.f32.mxu0 0.0
        %1394 = vmatmul.mubr.f32.gmra.mxu0 %v1327
        %v1395 = vpop.f32.mrf.mxu0
        %v1396 = vadd.f32 %v1317, %v1395
        %v1397 = vpop.f32.mrf.mxu0
        %1398 = vdwg.mxu0
        %v1399 = vadd.f32 %v1396, %v849
        %v1400 = vtanh.pop %v1399
        %v1401 = vmul.f32 %v1400, %v835
        %v1402 = vadd.f32 %v1401, %v842
        %v1403 = vmul.f32 %v1402, %v1135
        %1405 = vrot.lane.b32.xlu0 %v1402, 64
        %v1406 = vpop.permute.xlu0 %1405
        %v1408 = vmul.f32 %v1402, %v1406
        %1410 = vrot.lane.b32.xlu0 %v1408, 32
        %v1411 = vpop.permute.xlu0 %1410
        %v1413 = vadd.f32 %v1403, %v1411
        %v1414 = vtanh.pop %v1413
        %1416 = vrot.lane.b32.xlu0 %v1414, 64
        %v1417 = vpop.permute.xlu0 %1416
        %v1419 = vmul.f32 %v1402, %v1417
        %1421 = vrot.lane.b32.xlu0 %v1419, 32
        %v1422 = vpop.permute.xlu0 %1421
        %s1424 = scalar_lea.vmem [#allocation3], 8
        %1425 = vst.msk [vmem:[%s1424] sm:$0xff] %vm861, %v1422
        %v1426 = vld [vmem:[#allocation9] sm:$0xff]
        %v1427 = vld [vmem:[#allocation9 + $0x8] sm:$0xff]
        %v1428 = vld [vmem:[#allocation9 + $0x10] sm:$0xff]
        %v1429 = vld [vmem:[#allocation9 + $0x18] sm:$0xff]
        %1430 = vmatprep.subr.mxu0 0.0
        %1431 = vmatpush1.msra.mxu0 0.0
        %1432 = vmatprep.subr.mxu0 0.0
        %1433 = vmatpush1.msra.mxu0 0.0
        %1434 = vmatprep.subr.mxu0 0.0
        %1435 = vmatpush1.msra.mxu0 0.0
        %1436 = vmatprep.subr.mxu0 0.0
        %1437 = vmatpush1.msra.mxu0 0.0
        %1438 = vmatprep.subr.mxu0 0.0
        %1439 = vmatpush1.msra.mxu0 0.0
        %1440 = vmatprep.subr.mxu0 0.0
        %1441 = vmatpush1.msra.mxu0 0.0
        %1442 = vmatprep.subr.mxu0 0.0
        %1443 = vmatpush1.msra.mxu0 0.0
        %1444 = vmatprep.subr.mxu0 0.0
        %1445 = vmatpush1.msra.mxu0 0.0
        %1446 = vmatprep.subr.mxu0 0.0
        %1447 = vmatpush1.msra.mxu0 0.0
        %1448 = vmatprep.subr.mxu0 0.0
        %1449 = vmatpush1.msra.mxu0 0.0
        %1450 = vmatprep.subr.mxu0 0.0
        %1451 = vmatpush1.msra.mxu0 0.0
        %1452 = vmatprep.subr.mxu0 0.0
        %1453 = vmatpush1.msra.mxu0 0.0
        %1454 = vmatprep.subr.mxu0 0.0
        %1455 = vmatpush1.msra.mxu0 %v1429
        %1456 = vmatprep.subr.mxu0 0.0
        %1457 = vmatpush1.msra.mxu0 %v1428
        %1458 = vmatprep.subr.mxu0 0.0
        %1459 = vmatpush1.msra.mxu0 %v1427
        %1460 = vmatprep.subr.mxu0 0.0
        %1461 = vmatpush1.msra.mxu0 %v1426
        %1462 = vmatprep.subr.mxu0 0.0
        %1463 = vmatpush2.msra.mxu0 0.0
        %1464 = vmatprep.subr.mxu0 0.0
        %1465 = vmatpush2.msra.mxu0 0.0
        %1466 = vmatprep.subr.mxu0 0.0
        %1467 = vmatpush2.msra.mxu0 0.0
        %1468 = vmatprep.subr.mxu0 0.0
        %1469 = vmatpush2.msra.mxu0 0.0
        %1470 = vmatprep.subr.mxu0 0.0
        %1471 = vmatpush2.msra.mxu0 0.0
        %1472 = vmatprep.subr.mxu0 0.0
        %1473 = vmatpush2.msra.mxu0 0.0
        %1474 = vmatprep.subr.mxu0 0.0
        %1475 = vmatpush2.msra.mxu0 0.0
        %1476 = vmatprep.subr.mxu0 0.0
        %1477 = vmatpush2.msra.mxu0 0.0
        %1478 = vmatprep.subr.mxu0 0.0
        %1479 = vmatpush2.msra.mxu0 0.0
        %1480 = vmatprep.subr.mxu0 0.0
        %1481 = vmatpush2.msra.mxu0 0.0
        %1482 = vmatprep.subr.mxu0 0.0
        %1483 = vmatpush2.msra.mxu0 0.0
        %1484 = vmatprep.subr.mxu0 0.0
        %1485 = vmatpush2.msra.mxu0 0.0
        %1486 = vmatprep.subr.mxu0 0.0
        %1487 = vmatpush2.msra.mxu0 0.0
        %1488 = vmatprep.subr.mxu0 0.0
        %1489 = vmatpush2.msra.mxu0 0.0
        %1490 = vmatprep.subr.mxu0 0.0
        %1491 = vmatpush2.msra.mxu0 0.0
        %1492 = vmatprep.subr.mxu0 0.0
        %1493 = vmatpush2.msra.mxu0 0.0
        %1494 = vmatprep.mubr.f32.mxu0 0.0
        %1495 = vmatmul.mubr.f32.gmra.mxu0 %v1327
        %v1496 = vpop.f32.mrf.mxu0
        %v1497 = vadd.f32 0.0, %v1496
        %v1498 = vpop.f32.mrf.mxu0
        %1499 = vdwg.mxu0
        %s1500 = scalar_lea.vmem [#allocation2], 16
        %v1501 = vld [vmem:[%s1500] sm:$0xff]
        %v1502 = vadd.f32 %v1501, %v1497
        %v1503 = vtanh.pop %v1502
        %v1504 = vmul.f32 %v1503, %v835
        %v1505 = vadd.f32 %v1504, %v842
        %v1506 = vmul.f32 %v1505, %v1237
        %1508 = vrot.lane.b32.xlu0 %v1505, 64
        %v1509 = vpop.permute.xlu0 %1508
        %v1511 = vmul.f32 %v1505, %v1509
        %1513 = vrot.lane.b32.xlu0 %v1511, 32
        %v1514 = vpop.permute.xlu0 %1513
        %v1516 = vadd.f32 %v1506, %v1514
        %v1517 = vtanh.pop %v1516
        %1519 = vrot.lane.b32.xlu0 %v1517, 64
        %v1520 = vpop.permute.xlu0 %1519
        %v1522 = vmul.f32 %v1505, %v1520
        %v1523 = vld [vmem:[#allocation12] sm:$0xff]
        %v1524 = vld [vmem:[#allocation12 + $0x8] sm:$0xff]
        %v1525 = vld [vmem:[#allocation12 + $0x10] sm:$0xff]
        %v1526 = vld [vmem:[#allocation12 + $0x18] sm:$0xff]
        %v1527 = vsel %vm861, %v1422, 0
        %1529 = vmatprep.subr.mxu0 0.0
        %1530 = vmatpush1.msra.mxu0 0.0
        %1531 = vmatprep.subr.mxu0 0.0
        %1532 = vmatpush1.msra.mxu0 0.0
        %1533 = vmatprep.subr.mxu0 0.0
        %1534 = vmatpush1.msra.mxu0 0.0
        %1535 = vmatprep.subr.mxu0 0.0
        %1536 = vmatpush1.msra.mxu0 0.0
        %1537 = vmatprep.subr.mxu0 0.0
        %1538 = vmatpush1.msra.mxu0 0.0
        %1539 = vmatprep.subr.mxu0 0.0
        %1540 = vmatpush1.msra.mxu0 0.0
        %1541 = vmatprep.subr.mxu0 0.0
        %1542 = vmatpush1.msra.mxu0 0.0
        %1543 = vmatprep.subr.mxu0 0.0
        %1544 = vmatpush1.msra.mxu0 0.0
        %1545 = vmatprep.subr.mxu0 0.0
        %1546 = vmatpush1.msra.mxu0 0.0
        %1547 = vmatprep.subr.mxu0 0.0
        %1548 = vmatpush1.msra.mxu0 0.0
        %1549 = vmatprep.subr.mxu0 0.0
        %1550 = vmatpush1.msra.mxu0 0.0
        %1551 = vmatprep.subr.mxu0 0.0
        %1552 = vmatpush1.msra.mxu0 0.0
        %1553 = vmatprep.subr.mxu0 0.0
        %1554 = vmatpush1.msra.mxu0 %v1526
        %1555 = vmatprep.subr.mxu0 0.0
        %1556 = vmatpush1.msra.mxu0 %v1525
        %1557 = vmatprep.subr.mxu0 0.0
        %1558 = vmatpush1.msra.mxu0 %v1524
        %1559 = vmatprep.subr.mxu0 0.0
        %1560 = vmatpush1.msra.mxu0 %v1523
        %1561 = vmatprep.subr.mxu0 0.0
        %1562 = vmatpush2.msra.mxu0 0.0
        %1563 = vmatprep.subr.mxu0 0.0
        %1564 = vmatpush2.msra.mxu0 0.0
        %1565 = vmatprep.subr.mxu0 0.0
        %1566 = vmatpush2.msra.mxu0 0.0
        %1567 = vmatprep.subr.mxu0 0.0
        %1568 = vmatpush2.msra.mxu0 0.0
        %1569 = vmatprep.subr.mxu0 0.0
        %1570 = vmatpush2.msra.mxu0 0.0
        %1571 = vmatprep.subr.mxu0 0.0
        %1572 = vmatpush2.msra.mxu0 0.0
        %1573 = vmatprep.subr.mxu0 0.0
        %1574 = vmatpush2.msra.mxu0 0.0
        %1575 = vmatprep.subr.mxu0 0.0
        %1576 = vmatpush2.msra.mxu0 0.0
        %1577 = vmatprep.subr.mxu0 0.0
        %1578 = vmatpush2.msra.mxu0 0.0
        %1579 = vmatprep.subr.mxu0 0.0
        %1580 = vmatpush2.msra.mxu0 0.0
        %1581 = vmatprep.subr.mxu0 0.0
        %1582 = vmatpush2.msra.mxu0 0.0
        %1583 = vmatprep.subr.mxu0 0.0
        %1584 = vmatpush2.msra.mxu0 0.0
        %1585 = vmatprep.subr.mxu0 0.0
        %1586 = vmatpush2.msra.mxu0 0.0
        %1587 = vmatprep.subr.mxu0 0.0
        %1588 = vmatpush2.msra.mxu0 0.0
        %1589 = vmatprep.subr.mxu0 0.0
        %1590 = vmatpush2.msra.mxu0 0.0
        %1591 = vmatprep.subr.mxu0 0.0
        %1592 = vmatpush2.msra.mxu0 0.0
        %1593 = vmatprep.mubr.f32.mxu0 0.0
        %1594 = vmatmul.mubr.f32.gmra.mxu0 %v1527
        %v1595 = vpop.f32.mrf.mxu0
        %v1596 = vadd.f32 0.0, %v1595
        %v1597 = vpop.f32.mrf.mxu0
        %1598 = vdwg.mxu0
        %v1599 = vld [vmem:[#allocation10] sm:$0xff]
        %v1600 = vld [vmem:[#allocation10 + $0x8] sm:$0xff]
        %v1601 = vld [vmem:[#allocation10 + $0x10] sm:$0xff]
        %v1602 = vld [vmem:[#allocation10 + $0x18] sm:$0xff]
        %1604 = vrot.lane.b32.xlu0 %v1522, 32
        %v1605 = vpop.permute.xlu0 %1604
        %v1606 = vsel %vm861, %v1605, 0
        %1608 = vmatprep.subr.mxu0 0.0
        %1609 = vmatpush1.msra.mxu0 0.0
        %1610 = vmatprep.subr.mxu0 0.0
        %1611 = vmatpush1.msra.mxu0 0.0
        %1612 = vmatprep.subr.mxu0 0.0
        %1613 = vmatpush1.msra.mxu0 0.0
        %1614 = vmatprep.subr.mxu0 0.0
        %1615 = vmatpush1.msra.mxu0 0.0
        %1616 = vmatprep.subr.mxu0 0.0
        %1617 = vmatpush1.msra.mxu0 0.0
        %1618 = vmatprep.subr.mxu0 0.0
        %1619 = vmatpush1.msra.mxu0 0.0
        %1620 = vmatprep.subr.mxu0 0.0
        %1621 = vmatpush1.msra.mxu0 0.0
        %1622 = vmatprep.subr.mxu0 0.0
        %1623 = vmatpush1.msra.mxu0 0.0
        %1624 = vmatprep.subr.mxu0 0.0
        %1625 = vmatpush1.msra.mxu0 0.0
        %1626 = vmatprep.subr.mxu0 0.0
        %1627 = vmatpush1.msra.mxu0 0.0
        %1628 = vmatprep.subr.mxu0 0.0
        %1629 = vmatpush1.msra.mxu0 0.0
        %1630 = vmatprep.subr.mxu0 0.0
        %1631 = vmatpush1.msra.mxu0 0.0
        %1632 = vmatprep.subr.mxu0 0.0
        %1633 = vmatpush1.msra.mxu0 %v1602
        %1634 = vmatprep.subr.mxu0 0.0
        %1635 = vmatpush1.msra.mxu0 %v1601
        %1636 = vmatprep.subr.mxu0 0.0
        %1637 = vmatpush1.msra.mxu0 %v1600
        %1638 = vmatprep.subr.mxu0 0.0
        %1639 = vmatpush1.msra.mxu0 %v1599
        %1640 = vmatprep.subr.mxu0 0.0
        %1641 = vmatpush2.msra.mxu0 0.0
        %1642 = vmatprep.subr.mxu0 0.0
        %1643 = vmatpush2.msra.mxu0 0.0
        %1644 = vmatprep.subr.mxu0 0.0
        %1645 = vmatpush2.msra.mxu0 0.0
        %1646 = vmatprep.subr.mxu0 0.0
        %1647 = vmatpush2.msra.mxu0 0.0
        %1648 = vmatprep.subr.mxu0 0.0
        %1649 = vmatpush2.msra.mxu0 0.0
        %1650 = vmatprep.subr.mxu0 0.0
        %1651 = vmatpush2.msra.mxu0 0.0
        %1652 = vmatprep.subr.mxu0 0.0
        %1653 = vmatpush2.msra.mxu0 0.0
        %1654 = vmatprep.subr.mxu0 0.0
        %1655 = vmatpush2.msra.mxu0 0.0
        %1656 = vmatprep.subr.mxu0 0.0
        %1657 = vmatpush2.msra.mxu0 0.0
        %1658 = vmatprep.subr.mxu0 0.0
        %1659 = vmatpush2.msra.mxu0 0.0
        %1660 = vmatprep.subr.mxu0 0.0
        %1661 = vmatpush2.msra.mxu0 0.0
        %1662 = vmatprep.subr.mxu0 0.0
        %1663 = vmatpush2.msra.mxu0 0.0
        %1664 = vmatprep.subr.mxu0 0.0
        %1665 = vmatpush2.msra.mxu0 0.0
        %1666 = vmatprep.subr.mxu0 0.0
        %1667 = vmatpush2.msra.mxu0 0.0
        %1668 = vmatprep.subr.mxu0 0.0
        %1669 = vmatpush2.msra.mxu0 0.0
        %1670 = vmatprep.subr.mxu0 0.0
        %1671 = vmatpush2.msra.mxu0 0.0
        %1672 = vmatprep.mubr.f32.mxu0 0.0
        %1673 = vmatmul.mubr.f32.gmra.mxu0 %v1606
        %v1674 = vpop.f32.mrf.mxu0
        %v1675 = vadd.f32 %v1596, %v1674
        %v1676 = vpop.f32.mrf.mxu0
        %1677 = vdwg.mxu0
        %v1678 = vadd.f32 %v1675, %v849
        %v1679 = vtanh.pop %v1678
        %v1680 = vmul.f32 %v1679, %v835
        %v1681 = vadd.f32 %v1680, %v842
        %v1682 = vmul.f32 %v1681, %v1413
        %1684 = vrot.lane.b32.xlu0 %v1681, 64
        %v1685 = vpop.permute.xlu0 %1684
        %v1687 = vmul.f32 %v1681, %v1685
        %1689 = vrot.lane.b32.xlu0 %v1687, 32
        %v1690 = vpop.permute.xlu0 %1689
        %v1692 = vadd.f32 %v1682, %v1690
        %v1693 = vtanh.pop %v1692
        %1695 = vrot.lane.b32.xlu0 %v1693, 64
        %v1696 = vpop.permute.xlu0 %1695
        %v1698 = vmul.f32 %v1681, %v1696
        %1700 = vrot.lane.b32.xlu0 %v1698, 32
        %v1701 = vpop.permute.xlu0 %1700
        %s1703 = scalar_lea.vmem [#allocation3], 16
        %1704 = vst.msk [vmem:[%s1703] sm:$0xff] %vm861, %v1701
        %v1705 = vld [vmem:[#allocation9] sm:$0xff]
        %v1706 = vld [vmem:[#allocation9 + $0x8] sm:$0xff]
        %v1707 = vld [vmem:[#allocation9 + $0x10] sm:$0xff]
        %v1708 = vld [vmem:[#allocation9 + $0x18] sm:$0xff]
        %1709 = vmatprep.subr.mxu0 0.0
        %1710 = vmatpush1.msra.mxu0 0.0
        %1711 = vmatprep.subr.mxu0 0.0
        %1712 = vmatpush1.msra.mxu0 0.0
        %1713 = vmatprep.subr.mxu0 0.0
        %1714 = vmatpush1.msra.mxu0 0.0
        %1715 = vmatprep.subr.mxu0 0.0
        %1716 = vmatpush1.msra.mxu0 0.0
        %1717 = vmatprep.subr.mxu0 0.0
        %1718 = vmatpush1.msra.mxu0 0.0
        %1719 = vmatprep.subr.mxu0 0.0
        %1720 = vmatpush1.msra.mxu0 0.0
        %1721 = vmatprep.subr.mxu0 0.0
        %1722 = vmatpush1.msra.mxu0 0.0
        %1723 = vmatprep.subr.mxu0 0.0
        %1724 = vmatpush1.msra.mxu0 0.0
        %1725 = vmatprep.subr.mxu0 0.0
        %1726 = vmatpush1.msra.mxu0 0.0
        %1727 = vmatprep.subr.mxu0 0.0
        %1728 = vmatpush1.msra.mxu0 0.0
        %1729 = vmatprep.subr.mxu0 0.0
        %1730 = vmatpush1.msra.mxu0 0.0
        %1731 = vmatprep.subr.mxu0 0.0
        %1732 = vmatpush1.msra.mxu0 0.0
        %1733 = vmatprep.subr.mxu0 0.0
        %1734 = vmatpush1.msra.mxu0 %v1708
        %1735 = vmatprep.subr.mxu0 0.0
        %1736 = vmatpush1.msra.mxu0 %v1707
        %1737 = vmatprep.subr.mxu0 0.0
        %1738 = vmatpush1.msra.mxu0 %v1706
        %1739 = vmatprep.subr.mxu0 0.0
        %1740 = vmatpush1.msra.mxu0 %v1705
        %1741 = vmatprep.subr.mxu0 0.0
        %1742 = vmatpush2.msra.mxu0 0.0
        %1743 = vmatprep.subr.mxu0 0.0
        %1744 = vmatpush2.msra.mxu0 0.0
        %1745 = vmatprep.subr.mxu0 0.0
        %1746 = vmatpush2.msra.mxu0 0.0
        %1747 = vmatprep.subr.mxu0 0.0
        %1748 = vmatpush2.msra.mxu0 0.0
        %1749 = vmatprep.subr.mxu0 0.0
        %1750 = vmatpush2.msra.mxu0 0.0
        %1751 = vmatprep.subr.mxu0 0.0
        %1752 = vmatpush2.msra.mxu0 0.0
        %1753 = vmatprep.subr.mxu0 0.0
        %1754 = vmatpush2.msra.mxu0 0.0
        %1755 = vmatprep.subr.mxu0 0.0
        %1756 = vmatpush2.msra.mxu0 0.0
        %1757 = vmatprep.subr.mxu0 0.0
        %1758 = vmatpush2.msra.mxu0 0.0
        %1759 = vmatprep.subr.mxu0 0.0
        %1760 = vmatpush2.msra.mxu0 0.0
        %1761 = vmatprep.subr.mxu0 0.0
        %1762 = vmatpush2.msra.mxu0 0.0
        %1763 = vmatprep.subr.mxu0 0.0
        %1764 = vmatpush2.msra.mxu0 0.0
        %1765 = vmatprep.subr.mxu0 0.0
        %1766 = vmatpush2.msra.mxu0 0.0
        %1767 = vmatprep.subr.mxu0 0.0
        %1768 = vmatpush2.msra.mxu0 0.0
        %1769 = vmatprep.subr.mxu0 0.0
        %1770 = vmatpush2.msra.mxu0 0.0
        %1771 = vmatprep.subr.mxu0 0.0
        %1772 = vmatpush2.msra.mxu0 0.0
        %1773 = vmatprep.mubr.f32.mxu0 0.0
        %1774 = vmatmul.mubr.f32.gmra.mxu0 %v1606
        %v1775 = vpop.f32.mrf.mxu0
        %v1776 = vadd.f32 0.0, %v1775
        %v1777 = vpop.f32.mrf.mxu0
        %1778 = vdwg.mxu0
        %s1779 = scalar_lea.vmem [#allocation2], 24
        %v1780 = vld [vmem:[%s1779] sm:$0xff]
        %v1781 = vadd.f32 %v1780, %v1776
        %v1782 = vtanh.pop %v1781
        %v1783 = vmul.f32 %v1782, %v835
        %v1784 = vadd.f32 %v1783, %v842
        %v1785 = vmul.f32 %v1784, %v1516
        %1787 = vrot.lane.b32.xlu0 %v1784, 64
        %v1788 = vpop.permute.xlu0 %1787
        %v1790 = vmul.f32 %v1784, %v1788
        %1792 = vrot.lane.b32.xlu0 %v1790, 32
        %v1793 = vpop.permute.xlu0 %1792
        %v1795 = vadd.f32 %v1785, %v1793
        %v1796 = vtanh.pop %v1795
        %1798 = vrot.lane.b32.xlu0 %v1796, 64
        %v1799 = vpop.permute.xlu0 %1798
        %v1801 = vmul.f32 %v1784, %v1799
        %v1802 = vld [vmem:[#allocation12] sm:$0xff]
        %v1803 = vld [vmem:[#allocation12 + $0x8] sm:$0xff]
        %v1804 = vld [vmem:[#allocation12 + $0x10] sm:$0xff]
        %v1805 = vld [vmem:[#allocation12 + $0x18] sm:$0xff]
        %v1806 = vsel %vm861, %v1701, 0
        %1808 = vmatprep.subr.mxu0 0.0
        %1809 = vmatpush1.msra.mxu0 0.0
        %1810 = vmatprep.subr.mxu0 0.0
        %1811 = vmatpush1.msra.mxu0 0.0
        %1812 = vmatprep.subr.mxu0 0.0
        %1813 = vmatpush1.msra.mxu0 0.0
        %1814 = vmatprep.subr.mxu0 0.0
        %1815 = vmatpush1.msra.mxu0 0.0
        %1816 = vmatprep.subr.mxu0 0.0
        %1817 = vmatpush1.msra.mxu0 0.0
        %1818 = vmatprep.subr.mxu0 0.0
        %1819 = vmatpush1.msra.mxu0 0.0
        %1820 = vmatprep.subr.mxu0 0.0
        %1821 = vmatpush1.msra.mxu0 0.0
        %1822 = vmatprep.subr.mxu0 0.0
        %1823 = vmatpush1.msra.mxu0 0.0
        %1824 = vmatprep.subr.mxu0 0.0
        %1825 = vmatpush1.msra.mxu0 0.0
        %1826 = vmatprep.subr.mxu0 0.0
        %1827 = vmatpush1.msra.mxu0 0.0
        %1828 = vmatprep.subr.mxu0 0.0
        %1829 = vmatpush1.msra.mxu0 0.0
        %1830 = vmatprep.subr.mxu0 0.0
        %1831 = vmatpush1.msra.mxu0 0.0
        %1832 = vmatprep.subr.mxu0 0.0
        %1833 = vmatpush1.msra.mxu0 %v1805
        %1834 = vmatprep.subr.mxu0 0.0
        %1835 = vmatpush1.msra.mxu0 %v1804
        %1836 = vmatprep.subr.mxu0 0.0
        %1837 = vmatpush1.msra.mxu0 %v1803
        %1838 = vmatprep.subr.mxu0 0.0
        %1839 = vmatpush1.msra.mxu0 %v1802
        %1840 = vmatprep.subr.mxu0 0.0
        %1841 = vmatpush2.msra.mxu0 0.0
        %1842 = vmatprep.subr.mxu0 0.0
        %1843 = vmatpush2.msra.mxu0 0.0
        %1844 = vmatprep.subr.mxu0 0.0
        %1845 = vmatpush2.msra.mxu0 0.0
        %1846 = vmatprep.subr.mxu0 0.0
        %1847 = vmatpush2.msra.mxu0 0.0
        %1848 = vmatprep.subr.mxu0 0.0
        %1849 = vmatpush2.msra.mxu0 0.0
        %1850 = vmatprep.subr.mxu0 0.0
        %1851 = vmatpush2.msra.mxu0 0.0
        %1852 = vmatprep.subr.mxu0 0.0
        %1853 = vmatpush2.msra.mxu0 0.0
        %1854 = vmatprep.subr.mxu0 0.0
        %1855 = vmatpush2.msra.mxu0 0.0
        %1856 = vmatprep.subr.mxu0 0.0
        %1857 = vmatpush2.msra.mxu0 0.0
        %1858 = vmatprep.subr.mxu0 0.0
        %1859 = vmatpush2.msra.mxu0 0.0
        %1860 = vmatprep.subr.mxu0 0.0
        %1861 = vmatpush2.msra.mxu0 0.0
        %1862 = vmatprep.subr.mxu0 0.0
        %1863 = vmatpush2.msra.mxu0 0.0
        %1864 = vmatprep.subr.mxu0 0.0
        %1865 = vmatpush2.msra.mxu0 0.0
        %1866 = vmatprep.subr.mxu0 0.0
        %1867 = vmatpush2.msra.mxu0 0.0
        %1868 = vmatprep.subr.mxu0 0.0
        %1869 = vmatpush2.msra.mxu0 0.0
        %1870 = vmatprep.subr.mxu0 0.0
        %1871 = vmatpush2.msra.mxu0 0.0
        %1872 = vmatprep.mubr.f32.mxu0 0.0
        %1873 = vmatmul.mubr.f32.gmra.mxu0 %v1806
        %v1874 = vpop.f32.mrf.mxu0
        %v1875 = vadd.f32 0.0, %v1874
        %v1876 = vpop.f32.mrf.mxu0
        %1877 = vdwg.mxu0
        %v1878 = vld [vmem:[#allocation10] sm:$0xff]
        %v1879 = vld [vmem:[#allocation10 + $0x8] sm:$0xff]
        %v1880 = vld [vmem:[#allocation10 + $0x10] sm:$0xff]
        %v1881 = vld [vmem:[#allocation10 + $0x18] sm:$0xff]
        %1883 = vrot.lane.b32.xlu0 %v1801, 32
        %v1884 = vpop.permute.xlu0 %1883
        %v1885 = vsel %vm861, %v1884, 0
        %1887 = vmatprep.subr.mxu0 0.0
        %1888 = vmatpush1.msra.mxu0 0.0
        %1889 = vmatprep.subr.mxu0 0.0
        %1890 = vmatpush1.msra.mxu0 0.0
        %1891 = vmatprep.subr.mxu0 0.0
        %1892 = vmatpush1.msra.mxu0 0.0
        %1893 = vmatprep.subr.mxu0 0.0
        %1894 = vmatpush1.msra.mxu0 0.0
        %1895 = vmatprep.subr.mxu0 0.0
        %1896 = vmatpush1.msra.mxu0 0.0
        %1897 = vmatprep.subr.mxu0 0.0
        %1898 = vmatpush1.msra.mxu0 0.0
        %1899 = vmatprep.subr.mxu0 0.0
        %1900 = vmatpush1.msra.mxu0 0.0
        %1901 = vmatprep.subr.mxu0 0.0
        %1902 = vmatpush1.msra.mxu0 0.0
        %1903 = vmatprep.subr.mxu0 0.0
        %1904 = vmatpush1.msra.mxu0 0.0
        %1905 = vmatprep.subr.mxu0 0.0
        %1906 = vmatpush1.msra.mxu0 0.0
        %1907 = vmatprep.subr.mxu0 0.0
        %1908 = vmatpush1.msra.mxu0 0.0
        %1909 = vmatprep.subr.mxu0 0.0
        %1910 = vmatpush1.msra.mxu0 0.0
        %1911 = vmatprep.subr.mxu0 0.0
        %1912 = vmatpush1.msra.mxu0 %v1881
        %1913 = vmatprep.subr.mxu0 0.0
        %1914 = vmatpush1.msra.mxu0 %v1880
        %1915 = vmatprep.subr.mxu0 0.0
        %1916 = vmatpush1.msra.mxu0 %v1879
        %1917 = vmatprep.subr.mxu0 0.0
        %1918 = vmatpush1.msra.mxu0 %v1878
        %1919 = vmatprep.subr.mxu0 0.0
        %1920 = vmatpush2.msra.mxu0 0.0
        %1921 = vmatprep.subr.mxu0 0.0
        %1922 = vmatpush2.msra.mxu0 0.0
        %1923 = vmatprep.subr.mxu0 0.0
        %1924 = vmatpush2.msra.mxu0 0.0
        %1925 = vmatprep.subr.mxu0 0.0
        %1926 = vmatpush2.msra.mxu0 0.0
        %1927 = vmatprep.subr.mxu0 0.0
        %1928 = vmatpush2.msra.mxu0 0.0
        %1929 = vmatprep.subr.mxu0 0.0
        %1930 = vmatpush2.msra.mxu0 0.0
        %1931 = vmatprep.subr.mxu0 0.0
        %1932 = vmatpush2.msra.mxu0 0.0
        %1933 = vmatprep.subr.mxu0 0.0
        %1934 = vmatpush2.msra.mxu0 0.0
        %1935 = vmatprep.subr.mxu0 0.0
        %1936 = vmatpush2.msra.mxu0 0.0
        %1937 = vmatprep.subr.mxu0 0.0
        %1938 = vmatpush2.msra.mxu0 0.0
        %1939 = vmatprep.subr.mxu0 0.0
        %1940 = vmatpush2.msra.mxu0 0.0
        %1941 = vmatprep.subr.mxu0 0.0
        %1942 = vmatpush2.msra.mxu0 0.0
        %1943 = vmatprep.subr.mxu0 0.0
        %1944 = vmatpush2.msra.mxu0 0.0
        %1945 = vmatprep.subr.mxu0 0.0
        %1946 = vmatpush2.msra.mxu0 0.0
        %1947 = vmatprep.subr.mxu0 0.0
        %1948 = vmatpush2.msra.mxu0 0.0
        %1949 = vmatprep.subr.mxu0 0.0
        %1950 = vmatpush2.msra.mxu0 0.0
        %1951 = vmatprep.mubr.f32.mxu0 0.0
        %1952 = vmatmul.mubr.f32.gmra.mxu0 %v1885
        %v1953 = vpop.f32.mrf.mxu0
        %v1954 = vadd.f32 %v1875, %v1953
        %v1955 = vpop.f32.mrf.mxu0
        %1956 = vdwg.mxu0
        %v1957 = vadd.f32 %v1954, %v849
        %v1958 = vtanh.pop %v1957
        %v1959 = vmul.f32 %v1958, %v835
        %v1960 = vadd.f32 %v1959, %v842
        %v1961 = vmul.f32 %v1960, %v1692
        %1963 = vrot.lane.b32.xlu0 %v1960, 64
        %v1964 = vpop.permute.xlu0 %1963
        %v1966 = vmul.f32 %v1960, %v1964
        %1968 = vrot.lane.b32.xlu0 %v1966, 32
        %v1969 = vpop.permute.xlu0 %1968
        %v1971 = vadd.f32 %v1961, %v1969
        %v1972 = vtanh.pop %v1971
        %1974 = vrot.lane.b32.xlu0 %v1972, 64
        %v1975 = vpop.permute.xlu0 %1974
        %v1977 = vmul.f32 %v1960, %v1975
        %1979 = vrot.lane.b32.xlu0 %v1977, 32
        %v1980 = vpop.permute.xlu0 %1979
        %s1982 = scalar_lea.vmem [#allocation3], 24
        %1983 = vst.msk [vmem:[%s1982] sm:$0xff] %vm861, %v1980
        %v1984 = vld [vmem:[#allocation9] sm:$0xff]
        %v1985 = vld [vmem:[#allocation9 + $0x8] sm:$0xff]
        %v1986 = vld [vmem:[#allocation9 + $0x10] sm:$0xff]
        %v1987 = vld [vmem:[#allocation9 + $0x18] sm:$0xff]
        %1988 = vmatprep.subr.mxu0 0.0
        %1989 = vmatpush1.msra.mxu0 0.0
        %1990 = vmatprep.subr.mxu0 0.0
        %1991 = vmatpush1.msra.mxu0 0.0
        %1992 = vmatprep.subr.mxu0 0.0
        %1993 = vmatpush1.msra.mxu0 0.0
        %1994 = vmatprep.subr.mxu0 0.0
        %1995 = vmatpush1.msra.mxu0 0.0
        %1996 = vmatprep.subr.mxu0 0.0
        %1997 = vmatpush1.msra.mxu0 0.0
        %1998 = vmatprep.subr.mxu0 0.0
        %1999 = vmatpush1.msra.mxu0 0.0
        %2000 = vmatprep.subr.mxu0 0.0
        %2001 = vmatpush1.msra.mxu0 0.0
        %2002 = vmatprep.subr.mxu0 0.0
        %2003 = vmatpush1.msra.mxu0 0.0
        %2004 = vmatprep.subr.mxu0 0.0
        %2005 = vmatpush1.msra.mxu0 0.0
        %2006 = vmatprep.subr.mxu0 0.0
        %2007 = vmatpush1.msra.mxu0 0.0
        %2008 = vmatprep.subr.mxu0 0.0
        %2009 = vmatpush1.msra.mxu0 0.0
        %2010 = vmatprep.subr.mxu0 0.0
        %2011 = vmatpush1.msra.mxu0 0.0
        %2012 = vmatprep.subr.mxu0 0.0
        %2013 = vmatpush1.msra.mxu0 %v1987
        %2014 = vmatprep.subr.mxu0 0.0
        %2015 = vmatpush1.msra.mxu0 %v1986
        %2016 = vmatprep.subr.mxu0 0.0
        %2017 = vmatpush1.msra.mxu0 %v1985
        %2018 = vmatprep.subr.mxu0 0.0
        %2019 = vmatpush1.msra.mxu0 %v1984
        %2020 = vmatprep.subr.mxu0 0.0
        %2021 = vmatpush2.msra.mxu0 0.0
        %2022 = vmatprep.subr.mxu0 0.0
        %2023 = vmatpush2.msra.mxu0 0.0
        %2024 = vmatprep.subr.mxu0 0.0
        %2025 = vmatpush2.msra.mxu0 0.0
        %2026 = vmatprep.subr.mxu0 0.0
        %2027 = vmatpush2.msra.mxu0 0.0
        %2028 = vmatprep.subr.mxu0 0.0
        %2029 = vmatpush2.msra.mxu0 0.0
        %2030 = vmatprep.subr.mxu0 0.0
        %2031 = vmatpush2.msra.mxu0 0.0
        %2032 = vmatprep.subr.mxu0 0.0
        %2033 = vmatpush2.msra.mxu0 0.0
        %2034 = vmatprep.subr.mxu0 0.0
        %2035 = vmatpush2.msra.mxu0 0.0
        %2036 = vmatprep.subr.mxu0 0.0
        %2037 = vmatpush2.msra.mxu0 0.0
        %2038 = vmatprep.subr.mxu0 0.0
        %2039 = vmatpush2.msra.mxu0 0.0
        %2040 = vmatprep.subr.mxu0 0.0
        %2041 = vmatpush2.msra.mxu0 0.0
        %2042 = vmatprep.subr.mxu0 0.0
        %2043 = vmatpush2.msra.mxu0 0.0
        %2044 = vmatprep.subr.mxu0 0.0
        %2045 = vmatpush2.msra.mxu0 0.0
        %2046 = vmatprep.subr.mxu0 0.0
        %2047 = vmatpush2.msra.mxu0 0.0
        %2048 = vmatprep.subr.mxu0 0.0
        %2049 = vmatpush2.msra.mxu0 0.0
        %2050 = vmatprep.subr.mxu0 0.0
        %2051 = vmatpush2.msra.mxu0 0.0
        %2052 = vmatprep.mubr.f32.mxu0 0.0
        %2053 = vmatmul.mubr.f32.gmra.mxu0 %v1885
        %v2054 = vpop.f32.mrf.mxu0
        %v2055 = vadd.f32 0.0, %v2054
        %v2056 = vpop.f32.mrf.mxu0
        %2057 = vdwg.mxu0
        %s2058 = scalar_lea.vmem [#allocation2], 32
        %v2059 = vld [vmem:[%s2058] sm:$0xff]
        %v2060 = vadd.f32 %v2059, %v2055
        %v2061 = vtanh.pop %v2060
        %v2062 = vmul.f32 %v2061, %v835
        %v2063 = vadd.f32 %v2062, %v842
        %v2064 = vmul.f32 %v2063, %v1795
        %2066 = vrot.lane.b32.xlu0 %v2063, 64
        %v2067 = vpop.permute.xlu0 %2066
        %v2069 = vmul.f32 %v2063, %v2067
        %2071 = vrot.lane.b32.xlu0 %v2069, 32
        %v2072 = vpop.permute.xlu0 %2071
        %v2074 = vadd.f32 %v2064, %v2072
        %v2075 = vtanh.pop %v2074
        %2077 = vrot.lane.b32.xlu0 %v2075, 64
        %v2078 = vpop.permute.xlu0 %2077
        %v2080 = vmul.f32 %v2063, %v2078
        %v2081 = vld [vmem:[#allocation12] sm:$0xff]
        %v2082 = vld [vmem:[#allocation12 + $0x8] sm:$0xff]
        %v2083 = vld [vmem:[#allocation12 + $0x10] sm:$0xff]
        %v2084 = vld [vmem:[#allocation12 + $0x18] sm:$0xff]
        %v2085 = vsel %vm861, %v1980, 0
        %2087 = vmatprep.subr.mxu0 0.0
        %2088 = vmatpush1.msra.mxu0 0.0
        %2089 = vmatprep.subr.mxu0 0.0
        %2090 = vmatpush1.msra.mxu0 0.0
        %2091 = vmatprep.subr.mxu0 0.0
        %2092 = vmatpush1.msra.mxu0 0.0
        %2093 = vmatprep.subr.mxu0 0.0
        %2094 = vmatpush1.msra.mxu0 0.0
        %2095 = vmatprep.subr.mxu0 0.0
        %2096 = vmatpush1.msra.mxu0 0.0
        %2097 = vmatprep.subr.mxu0 0.0
        %2098 = vmatpush1.msra.mxu0 0.0
        %2099 = vmatprep.subr.mxu0 0.0
        %2100 = vmatpush1.msra.mxu0 0.0
        %2101 = vmatprep.subr.mxu0 0.0
        %2102 = vmatpush1.msra.mxu0 0.0
        %2103 = vmatprep.subr.mxu0 0.0
        %2104 = vmatpush1.msra.mxu0 0.0
        %2105 = vmatprep.subr.mxu0 0.0
        %2106 = vmatpush1.msra.mxu0 0.0
        %2107 = vmatprep.subr.mxu0 0.0
        %2108 = vmatpush1.msra.mxu0 0.0
        %2109 = vmatprep.subr.mxu0 0.0
        %2110 = vmatpush1.msra.mxu0 0.0
        %2111 = vmatprep.subr.mxu0 0.0
        %2112 = vmatpush1.msra.mxu0 %v2084
        %2113 = vmatprep.subr.mxu0 0.0
        %2114 = vmatpush1.msra.mxu0 %v2083
        %2115 = vmatprep.subr.mxu0 0.0
        %2116 = vmatpush1.msra.mxu0 %v2082
        %2117 = vmatprep.subr.mxu0 0.0
        %2118 = vmatpush1.msra.mxu0 %v2081
        %2119 = vmatprep.subr.mxu0 0.0
        %2120 = vmatpush2.msra.mxu0 0.0
        %2121 = vmatprep.subr.mxu0 0.0
        %2122 = vmatpush2.msra.mxu0 0.0
        %2123 = vmatprep.subr.mxu0 0.0
        %2124 = vmatpush2.msra.mxu0 0.0
        %2125 = vmatprep.subr.mxu0 0.0
        %2126 = vmatpush2.msra.mxu0 0.0
        %2127 = vmatprep.subr.mxu0 0.0
        %2128 = vmatpush2.msra.mxu0 0.0
        %2129 = vmatprep.subr.mxu0 0.0
        %2130 = vmatpush2.msra.mxu0 0.0
        %2131 = vmatprep.subr.mxu0 0.0
        %2132 = vmatpush2.msra.mxu0 0.0
        %2133 = vmatprep.subr.mxu0 0.0
        %2134 = vmatpush2.msra.mxu0 0.0
        %2135 = vmatprep.subr.mxu0 0.0
        %2136 = vmatpush2.msra.mxu0 0.0
        %2137 = vmatprep.subr.mxu0 0.0
        %2138 = vmatpush2.msra.mxu0 0.0
        %2139 = vmatprep.subr.mxu0 0.0
        %2140 = vmatpush2.msra.mxu0 0.0
        %2141 = vmatprep.subr.mxu0 0.0
        %2142 = vmatpush2.msra.mxu0 0.0
        %2143 = vmatprep.subr.mxu0 0.0
        %2144 = vmatpush2.msra.mxu0 0.0
        %2145 = vmatprep.subr.mxu0 0.0
        %2146 = vmatpush2.msra.mxu0 0.0
        %2147 = vmatprep.subr.mxu0 0.0
        %2148 = vmatpush2.msra.mxu0 0.0
        %2149 = vmatprep.subr.mxu0 0.0
        %2150 = vmatpush2.msra.mxu0 0.0
        %2151 = vmatprep.mubr.f32.mxu0 0.0
        %2152 = vmatmul.mubr.f32.gmra.mxu0 %v2085
        %v2153 = vpop.f32.mrf.mxu0
        %v2154 = vadd.f32 0.0, %v2153
        %v2155 = vpop.f32.mrf.mxu0
        %2156 = vdwg.mxu0
        %v2157 = vld [vmem:[#allocation10] sm:$0xff]
        %v2158 = vld [vmem:[#allocation10 + $0x8] sm:$0xff]
        %v2159 = vld [vmem:[#allocation10 + $0x10] sm:$0xff]
        %v2160 = vld [vmem:[#allocation10 + $0x18] sm:$0xff]
        %2162 = vrot.lane.b32.xlu0 %v2080, 32
        %v2163 = vpop.permute.xlu0 %2162
        %v2164 = vsel %vm861, %v2163, 0
        %2166 = vmatprep.subr.mxu0 0.0
        %2167 = vmatpush1.msra.mxu0 0.0
        %2168 = vmatprep.subr.mxu0 0.0
        %2169 = vmatpush1.msra.mxu0 0.0
        %2170 = vmatprep.subr.mxu0 0.0
        %2171 = vmatpush1.msra.mxu0 0.0
        %2172 = vmatprep.subr.mxu0 0.0
        %2173 = vmatpush1.msra.mxu0 0.0
        %2174 = vmatprep.subr.mxu0 0.0
        %2175 = vmatpush1.msra.mxu0 0.0
        %2176 = vmatprep.subr.mxu0 0.0
        %2177 = vmatpush1.msra.mxu0 0.0
        %2178 = vmatprep.subr.mxu0 0.0
        %2179 = vmatpush1.msra.mxu0 0.0
        %2180 = vmatprep.subr.mxu0 0.0
        %2181 = vmatpush1.msra.mxu0 0.0
        %2182 = vmatprep.subr.mxu0 0.0
        %2183 = vmatpush1.msra.mxu0 0.0
        %2184 = vmatprep.subr.mxu0 0.0
        %2185 = vmatpush1.msra.mxu0 0.0
        %2186 = vmatprep.subr.mxu0 0.0
        %2187 = vmatpush1.msra.mxu0 0.0
        %2188 = vmatprep.subr.mxu0 0.0
        %2189 = vmatpush1.msra.mxu0 0.0
        %2190 = vmatprep.subr.mxu0 0.0
        %2191 = vmatpush1.msra.mxu0 %v2160
        %2192 = vmatprep.subr.mxu0 0.0
        %2193 = vmatpush1.msra.mxu0 %v2159
        %2194 = vmatprep.subr.mxu0 0.0
        %2195 = vmatpush1.msra.mxu0 %v2158
        %2196 = vmatprep.subr.mxu0 0.0
        %2197 = vmatpush1.msra.mxu0 %v2157
        %2198 = vmatprep.subr.mxu0 0.0
        %2199 = vmatpush2.msra.mxu0 0.0
        %2200 = vmatprep.subr.mxu0 0.0
        %2201 = vmatpush2.msra.mxu0 0.0
        %2202 = vmatprep.subr.mxu0 0.0
        %2203 = vmatpush2.msra.mxu0 0.0
        %2204 = vmatprep.subr.mxu0 0.0
        %2205 = vmatpush2.msra.mxu0 0.0
        %2206 = vmatprep.subr.mxu0 0.0
        %2207 = vmatpush2.msra.mxu0 0.0
        %2208 = vmatprep.subr.mxu0 0.0
        %2209 = vmatpush2.msra.mxu0 0.0
        %2210 = vmatprep.subr.mxu0 0.0
        %2211 = vmatpush2.msra.mxu0 0.0
        %2212 = vmatprep.subr.mxu0 0.0
        %2213 = vmatpush2.msra.mxu0 0.0
        %2214 = vmatprep.subr.mxu0 0.0
        %2215 = vmatpush2.msra.mxu0 0.0
        %2216 = vmatprep.subr.mxu0 0.0
        %2217 = vmatpush2.msra.mxu0 0.0
        %2218 = vmatprep.subr.mxu0 0.0
        %2219 = vmatpush2.msra.mxu0 0.0
        %2220 = vmatprep.subr.mxu0 0.0
        %2221 = vmatpush2.msra.mxu0 0.0
        %2222 = vmatprep.subr.mxu0 0.0
        %2223 = vmatpush2.msra.mxu0 0.0
        %2224 = vmatprep.subr.mxu0 0.0
        %2225 = vmatpush2.msra.mxu0 0.0
        %2226 = vmatprep.subr.mxu0 0.0
        %2227 = vmatpush2.msra.mxu0 0.0
        %2228 = vmatprep.subr.mxu0 0.0
        %2229 = vmatpush2.msra.mxu0 0.0
        %2230 = vmatprep.mubr.f32.mxu0 0.0
        %2231 = vmatmul.mubr.f32.gmra.mxu0 %v2164
        %v2232 = vpop.f32.mrf.mxu0
        %v2233 = vadd.f32 %v2154, %v2232
        %v2234 = vpop.f32.mrf.mxu0
        %2235 = vdwg.mxu0
        %v2236 = vadd.f32 %v2233, %v849
        %v2237 = vtanh.pop %v2236
        %v2238 = vmul.f32 %v2237, %v835
        %v2239 = vadd.f32 %v2238, %v842
        %v2240 = vmul.f32 %v2239, %v1971
        %2242 = vrot.lane.b32.xlu0 %v2239, 64
        %v2243 = vpop.permute.xlu0 %2242
        %v2245 = vmul.f32 %v2239, %v2243
        %2247 = vrot.lane.b32.xlu0 %v2245, 32
        %v2248 = vpop.permute.xlu0 %2247
        %v2250 = vadd.f32 %v2240, %v2248
        %v2251 = vtanh.pop %v2250
        %2253 = vrot.lane.b32.xlu0 %v2251, 64
        %v2254 = vpop.permute.xlu0 %2253
        %v2256 = vmul.f32 %v2239, %v2254
        %2258 = vrot.lane.b32.xlu0 %v2256, 32
        %v2259 = vpop.permute.xlu0 %2258
        %s2261 = scalar_lea.vmem [#allocation3], 32
        %2262 = vst.msk [vmem:[%s2261] sm:$0xff] %vm861, %v2259
        %v2263 = vld [vmem:[#allocation9] sm:$0xff]
        %v2264 = vld [vmem:[#allocation9 + $0x8] sm:$0xff]
        %v2265 = vld [vmem:[#allocation9 + $0x10] sm:$0xff]
        %v2266 = vld [vmem:[#allocation9 + $0x18] sm:$0xff]
        %2267 = vmatprep.subr.mxu0 0.0
        %2268 = vmatpush1.msra.mxu0 0.0
        %2269 = vmatprep.subr.mxu0 0.0
        %2270 = vmatpush1.msra.mxu0 0.0
        %2271 = vmatprep.subr.mxu0 0.0
        %2272 = vmatpush1.msra.mxu0 0.0
        %2273 = vmatprep.subr.mxu0 0.0
        %2274 = vmatpush1.msra.mxu0 0.0
        %2275 = vmatprep.subr.mxu0 0.0
        %2276 = vmatpush1.msra.mxu0 0.0
        %2277 = vmatprep.subr.mxu0 0.0
        %2278 = vmatpush1.msra.mxu0 0.0
        %2279 = vmatprep.subr.mxu0 0.0
        %2280 = vmatpush1.msra.mxu0 0.0
        %2281 = vmatprep.subr.mxu0 0.0
        %2282 = vmatpush1.msra.mxu0 0.0
        %2283 = vmatprep.subr.mxu0 0.0
        %2284 = vmatpush1.msra.mxu0 0.0
        %2285 = vmatprep.subr.mxu0 0.0
        %2286 = vmatpush1.msra.mxu0 0.0
        %2287 = vmatprep.subr.mxu0 0.0
        %2288 = vmatpush1.msra.mxu0 0.0
        %2289 = vmatprep.subr.mxu0 0.0
        %2290 = vmatpush1.msra.mxu0 0.0
        %2291 = vmatprep.subr.mxu0 0.0
        %2292 = vmatpush1.msra.mxu0 %v2266
        %2293 = vmatprep.subr.mxu0 0.0
        %2294 = vmatpush1.msra.mxu0 %v2265
        %2295 = vmatprep.subr.mxu0 0.0
        %2296 = vmatpush1.msra.mxu0 %v2264
        %2297 = vmatprep.subr.mxu0 0.0
        %2298 = vmatpush1.msra.mxu0 %v2263
        %2299 = vmatprep.subr.mxu0 0.0
        %2300 = vmatpush2.msra.mxu0 0.0
        %2301 = vmatprep.subr.mxu0 0.0
        %2302 = vmatpush2.msra.mxu0 0.0
        %2303 = vmatprep.subr.mxu0 0.0
        %2304 = vmatpush2.msra.mxu0 0.0
        %2305 = vmatprep.subr.mxu0 0.0
        %2306 = vmatpush2.msra.mxu0 0.0
        %2307 = vmatprep.subr.mxu0 0.0
        %2308 = vmatpush2.msra.mxu0 0.0
        %2309 = vmatprep.subr.mxu0 0.0
        %2310 = vmatpush2.msra.mxu0 0.0
        %2311 = vmatprep.subr.mxu0 0.0
        %2312 = vmatpush2.msra.mxu0 0.0
        %2313 = vmatprep.subr.mxu0 0.0
        %2314 = vmatpush2.msra.mxu0 0.0
        %2315 = vmatprep.subr.mxu0 0.0
        %2316 = vmatpush2.msra.mxu0 0.0
        %2317 = vmatprep.subr.mxu0 0.0
        %2318 = vmatpush2.msra.mxu0 0.0
        %2319 = vmatprep.subr.mxu0 0.0
        %2320 = vmatpush2.msra.mxu0 0.0
        %2321 = vmatprep.subr.mxu0 0.0
        %2322 = vmatpush2.msra.mxu0 0.0
        %2323 = vmatprep.subr.mxu0 0.0
        %2324 = vmatpush2.msra.mxu0 0.0
        %2325 = vmatprep.subr.mxu0 0.0
        %2326 = vmatpush2.msra.mxu0 0.0
        %2327 = vmatprep.subr.mxu0 0.0
        %2328 = vmatpush2.msra.mxu0 0.0
        %2329 = vmatprep.subr.mxu0 0.0
        %2330 = vmatpush2.msra.mxu0 0.0
        %2331 = vmatprep.mubr.f32.mxu0 0.0
        %2332 = vmatmul.mubr.f32.gmra.mxu0 %v2164
        %v2333 = vpop.f32.mrf.mxu0
        %v2334 = vadd.f32 0.0, %v2333
        %v2335 = vpop.f32.mrf.mxu0
        %2336 = vdwg.mxu0
        %s2337 = scalar_lea.vmem [#allocation2], 40
        %v2338 = vld [vmem:[%s2337] sm:$0xff]
        %v2339 = vadd.f32 %v2338, %v2334
        %v2340 = vtanh.pop %v2339
        %v2341 = vmul.f32 %v2340, %v835
        %v2342 = vadd.f32 %v2341, %v842
        %v2343 = vmul.f32 %v2342, %v2074
        %2345 = vrot.lane.b32.xlu0 %v2342, 64
        %v2346 = vpop.permute.xlu0 %2345
        %v2348 = vmul.f32 %v2342, %v2346
        %2350 = vrot.lane.b32.xlu0 %v2348, 32
        %v2351 = vpop.permute.xlu0 %2350
        %v2353 = vadd.f32 %v2343, %v2351
        %v2354 = vtanh.pop %v2353
        %2356 = vrot.lane.b32.xlu0 %v2354, 64
        %v2357 = vpop.permute.xlu0 %2356
        %v2359 = vmul.f32 %v2342, %v2357
        %v2360 = vld [vmem:[#allocation12] sm:$0xff]
        %v2361 = vld [vmem:[#allocation12 + $0x8] sm:$0xff]
        %v2362 = vld [vmem:[#allocation12 + $0x10] sm:$0xff]
        %v2363 = vld [vmem:[#allocation12 + $0x18] sm:$0xff]
        %v2364 = vsel %vm861, %v2259, 0
        %2366 = vmatprep.subr.mxu0 0.0
        %2367 = vmatpush1.msra.mxu0 0.0
        %2368 = vmatprep.subr.mxu0 0.0
        %2369 = vmatpush1.msra.mxu0 0.0
        %2370 = vmatprep.subr.mxu0 0.0
        %2371 = vmatpush1.msra.mxu0 0.0
        %2372 = vmatprep.subr.mxu0 0.0
        %2373 = vmatpush1.msra.mxu0 0.0
        %2374 = vmatprep.subr.mxu0 0.0
        %2375 = vmatpush1.msra.mxu0 0.0
        %2376 = vmatprep.subr.mxu0 0.0
        %2377 = vmatpush1.msra.mxu0 0.0
        %2378 = vmatprep.subr.mxu0 0.0
        %2379 = vmatpush1.msra.mxu0 0.0
        %2380 = vmatprep.subr.mxu0 0.0
        %2381 = vmatpush1.msra.mxu0 0.0
        %2382 = vmatprep.subr.mxu0 0.0
        %2383 = vmatpush1.msra.mxu0 0.0
        %2384 = vmatprep.subr.mxu0 0.0
        %2385 = vmatpush1.msra.mxu0 0.0
        %2386 = vmatprep.subr.mxu0 0.0
        %2387 = vmatpush1.msra.mxu0 0.0
        %2388 = vmatprep.subr.mxu0 0.0
        %2389 = vmatpush1.msra.mxu0 0.0
        %2390 = vmatprep.subr.mxu0 0.0
        %2391 = vmatpush1.msra.mxu0 %v2363
        %2392 = vmatprep.subr.mxu0 0.0
        %2393 = vmatpush1.msra.mxu0 %v2362
        %2394 = vmatprep.subr.mxu0 0.0
        %2395 = vmatpush1.msra.mxu0 %v2361
        %2396 = vmatprep.subr.mxu0 0.0
        %2397 = vmatpush1.msra.mxu0 %v2360
        %2398 = vmatprep.subr.mxu0 0.0
        %2399 = vmatpush2.msra.mxu0 0.0
        %2400 = vmatprep.subr.mxu0 0.0
        %2401 = vmatpush2.msra.mxu0 0.0
        %2402 = vmatprep.subr.mxu0 0.0
        %2403 = vmatpush2.msra.mxu0 0.0
        %2404 = vmatprep.subr.mxu0 0.0
        %2405 = vmatpush2.msra.mxu0 0.0
        %2406 = vmatprep.subr.mxu0 0.0
        %2407 = vmatpush2.msra.mxu0 0.0
        %2408 = vmatprep.subr.mxu0 0.0
        %2409 = vmatpush2.msra.mxu0 0.0
        %2410 = vmatprep.subr.mxu0 0.0
        %2411 = vmatpush2.msra.mxu0 0.0
        %2412 = vmatprep.subr.mxu0 0.0
        %2413 = vmatpush2.msra.mxu0 0.0
        %2414 = vmatprep.subr.mxu0 0.0
        %2415 = vmatpush2.msra.mxu0 0.0
        %2416 = vmatprep.subr.mxu0 0.0
        %2417 = vmatpush2.msra.mxu0 0.0
        %2418 = vmatprep.subr.mxu0 0.0
        %2419 = vmatpush2.msra.mxu0 0.0
        %2420 = vmatprep.subr.mxu0 0.0
        %2421 = vmatpush2.msra.mxu0 0.0
        %2422 = vmatprep.subr.mxu0 0.0
        %2423 = vmatpush2.msra.mxu0 0.0
        %2424 = vmatprep.subr.mxu0 0.0
        %2425 = vmatpush2.msra.mxu0 0.0
        %2426 = vmatprep.subr.mxu0 0.0
        %2427 = vmatpush2.msra.mxu0 0.0
        %2428 = vmatprep.subr.mxu0 0.0
        %2429 = vmatpush2.msra.mxu0 0.0
        %2430 = vmatprep.mubr.f32.mxu0 0.0
        %2431 = vmatmul.mubr.f32.gmra.mxu0 %v2364
        %v2432 = vpop.f32.mrf.mxu0
        %v2433 = vadd.f32 0.0, %v2432
        %v2434 = vpop.f32.mrf.mxu0
        %2435 = vdwg.mxu0
        %v2436 = vld [vmem:[#allocation10] sm:$0xff]
        %v2437 = vld [vmem:[#allocation10 + $0x8] sm:$0xff]
        %v2438 = vld [vmem:[#allocation10 + $0x10] sm:$0xff]
        %v2439 = vld [vmem:[#allocation10 + $0x18] sm:$0xff]
        %2441 = vrot.lane.b32.xlu0 %v2359, 32
        %v2442 = vpop.permute.xlu0 %2441
        %v2443 = vsel %vm861, %v2442, 0
        %2445 = vmatprep.subr.mxu0 0.0
        %2446 = vmatpush1.msra.mxu0 0.0
        %2447 = vmatprep.subr.mxu0 0.0
        %2448 = vmatpush1.msra.mxu0 0.0
        %2449 = vmatprep.subr.mxu0 0.0
        %2450 = vmatpush1.msra.mxu0 0.0
        %2451 = vmatprep.subr.mxu0 0.0
        %2452 = vmatpush1.msra.mxu0 0.0
        %2453 = vmatprep.subr.mxu0 0.0
        %2454 = vmatpush1.msra.mxu0 0.0
        %2455 = vmatprep.subr.mxu0 0.0
        %2456 = vmatpush1.msra.mxu0 0.0
        %2457 = vmatprep.subr.mxu0 0.0
        %2458 = vmatpush1.msra.mxu0 0.0
        %2459 = vmatprep.subr.mxu0 0.0
        %2460 = vmatpush1.msra.mxu0 0.0
        %2461 = vmatprep.subr.mxu0 0.0
        %2462 = vmatpush1.msra.mxu0 0.0
        %2463 = vmatprep.subr.mxu0 0.0
        %2464 = vmatpush1.msra.mxu0 0.0
        %2465 = vmatprep.subr.mxu0 0.0
        %2466 = vmatpush1.msra.mxu0 0.0
        %2467 = vmatprep.subr.mxu0 0.0
        %2468 = vmatpush1.msra.mxu0 0.0
        %2469 = vmatprep.subr.mxu0 0.0
        %2470 = vmatpush1.msra.mxu0 %v2439
        %2471 = vmatprep.subr.mxu0 0.0
        %2472 = vmatpush1.msra.mxu0 %v2438
        %2473 = vmatprep.subr.mxu0 0.0
        %2474 = vmatpush1.msra.mxu0 %v2437
        %2475 = vmatprep.subr.mxu0 0.0
        %2476 = vmatpush1.msra.mxu0 %v2436
        %2477 = vmatprep.subr.mxu0 0.0
        %2478 = vmatpush2.msra.mxu0 0.0
        %2479 = vmatprep.subr.mxu0 0.0
        %2480 = vmatpush2.msra.mxu0 0.0
        %2481 = vmatprep.subr.mxu0 0.0
        %2482 = vmatpush2.msra.mxu0 0.0
        %2483 = vmatprep.subr.mxu0 0.0
        %2484 = vmatpush2.msra.mxu0 0.0
        %2485 = vmatprep.subr.mxu0 0.0
        %2486 = vmatpush2.msra.mxu0 0.0
        %2487 = vmatprep.subr.mxu0 0.0
        %2488 = vmatpush2.msra.mxu0 0.0
        %2489 = vmatprep.subr.mxu0 0.0
        %2490 = vmatpush2.msra.mxu0 0.0
        %2491 = vmatprep.subr.mxu0 0.0
        %2492 = vmatpush2.msra.mxu0 0.0
        %2493 = vmatprep.subr.mxu0 0.0
        %2494 = vmatpush2.msra.mxu0 0.0
        %2495 = vmatprep.subr.mxu0 0.0
        %2496 = vmatpush2.msra.mxu0 0.0
        %2497 = vmatprep.subr.mxu0 0.0
        %2498 = vmatpush2.msra.mxu0 0.0
        %2499 = vmatprep.subr.mxu0 0.0
        %2500 = vmatpush2.msra.mxu0 0.0
        %2501 = vmatprep.subr.mxu0 0.0
        %2502 = vmatpush2.msra.mxu0 0.0
        %2503 = vmatprep.subr.mxu0 0.0
        %2504 = vmatpush2.msra.mxu0 0.0
        %2505 = vmatprep.subr.mxu0 0.0
        %2506 = vmatpush2.msra.mxu0 0.0
        %2507 = vmatprep.subr.mxu0 0.0
        %2508 = vmatpush2.msra.mxu0 0.0
        %2509 = vmatprep.mubr.f32.mxu0 0.0
        %2510 = vmatmul.mubr.f32.gmra.mxu0 %v2443
        %v2511 = vpop.f32.mrf.mxu0
        %v2512 = vadd.f32 %v2433, %v2511
        %v2513 = vpop.f32.mrf.mxu0
        %2514 = vdwg.mxu0
        %v2515 = vadd.f32 %v2512, %v849
        %v2516 = vtanh.pop %v2515
        %v2517 = vmul.f32 %v2516, %v835
        %v2518 = vadd.f32 %v2517, %v842
        %v2519 = vmul.f32 %v2518, %v2250
        %2521 = vrot.lane.b32.xlu0 %v2518, 64
        %v2522 = vpop.permute.xlu0 %2521
        %v2524 = vmul.f32 %v2518, %v2522
        %2526 = vrot.lane.b32.xlu0 %v2524, 32
        %v2527 = vpop.permute.xlu0 %2526
        %v2529 = vadd.f32 %v2519, %v2527
        %v2530 = vtanh.pop %v2529
        %2532 = vrot.lane.b32.xlu0 %v2530, 64
        %v2533 = vpop.permute.xlu0 %2532
        %v2535 = vmul.f32 %v2518, %v2533
        %2537 = vrot.lane.b32.xlu0 %v2535, 32
        %v2538 = vpop.permute.xlu0 %2537
        %s2540 = scalar_lea.vmem [#allocation3], 40
        %2541 = vst.msk [vmem:[%s2540] sm:$0xff] %vm861, %v2538
        %v2542 = vld [vmem:[#allocation9] sm:$0xff]
        %v2543 = vld [vmem:[#allocation9 + $0x8] sm:$0xff]
        %v2544 = vld [vmem:[#allocation9 + $0x10] sm:$0xff]
        %v2545 = vld [vmem:[#allocation9 + $0x18] sm:$0xff]
        %2546 = vmatprep.subr.mxu0 0.0
        %2547 = vmatpush1.msra.mxu0 0.0
        %2548 = vmatprep.subr.mxu0 0.0
        %2549 = vmatpush1.msra.mxu0 0.0
        %2550 = vmatprep.subr.mxu0 0.0
        %2551 = vmatpush1.msra.mxu0 0.0
        %2552 = vmatprep.subr.mxu0 0.0
        %2553 = vmatpush1.msra.mxu0 0.0
        %2554 = vmatprep.subr.mxu0 0.0
        %2555 = vmatpush1.msra.mxu0 0.0
        %2556 = vmatprep.subr.mxu0 0.0
        %2557 = vmatpush1.msra.mxu0 0.0
        %2558 = vmatprep.subr.mxu0 0.0
        %2559 = vmatpush1.msra.mxu0 0.0
        %2560 = vmatprep.subr.mxu0 0.0
        %2561 = vmatpush1.msra.mxu0 0.0
        %2562 = vmatprep.subr.mxu0 0.0
        %2563 = vmatpush1.msra.mxu0 0.0
        %2564 = vmatprep.subr.mxu0 0.0
        %2565 = vmatpush1.msra.mxu0 0.0
        %2566 = vmatprep.subr.mxu0 0.0
        %2567 = vmatpush1.msra.mxu0 0.0
        %2568 = vmatprep.subr.mxu0 0.0
        %2569 = vmatpush1.msra.mxu0 0.0
        %2570 = vmatprep.subr.mxu0 0.0
        %2571 = vmatpush1.msra.mxu0 %v2545
        %2572 = vmatprep.subr.mxu0 0.0
        %2573 = vmatpush1.msra.mxu0 %v2544
        %2574 = vmatprep.subr.mxu0 0.0
        %2575 = vmatpush1.msra.mxu0 %v2543
        %2576 = vmatprep.subr.mxu0 0.0
        %2577 = vmatpush1.msra.mxu0 %v2542
        %2578 = vmatprep.subr.mxu0 0.0
        %2579 = vmatpush2.msra.mxu0 0.0
        %2580 = vmatprep.subr.mxu0 0.0
        %2581 = vmatpush2.msra.mxu0 0.0
        %2582 = vmatprep.subr.mxu0 0.0
        %2583 = vmatpush2.msra.mxu0 0.0
        %2584 = vmatprep.subr.mxu0 0.0
        %2585 = vmatpush2.msra.mxu0 0.0
        %2586 = vmatprep.subr.mxu0 0.0
        %2587 = vmatpush2.msra.mxu0 0.0
        %2588 = vmatprep.subr.mxu0 0.0
        %2589 = vmatpush2.msra.mxu0 0.0
        %2590 = vmatprep.subr.mxu0 0.0
        %2591 = vmatpush2.msra.mxu0 0.0
        %2592 = vmatprep.subr.mxu0 0.0
        %2593 = vmatpush2.msra.mxu0 0.0
        %2594 = vmatprep.subr.mxu0 0.0
        %2595 = vmatpush2.msra.mxu0 0.0
        %2596 = vmatprep.subr.mxu0 0.0
        %2597 = vmatpush2.msra.mxu0 0.0
        %2598 = vmatprep.subr.mxu0 0.0
        %2599 = vmatpush2.msra.mxu0 0.0
        %2600 = vmatprep.subr.mxu0 0.0
        %2601 = vmatpush2.msra.mxu0 0.0
        %2602 = vmatprep.subr.mxu0 0.0
        %2603 = vmatpush2.msra.mxu0 0.0
        %2604 = vmatprep.subr.mxu0 0.0
        %2605 = vmatpush2.msra.mxu0 0.0
        %2606 = vmatprep.subr.mxu0 0.0
        %2607 = vmatpush2.msra.mxu0 0.0
        %2608 = vmatprep.subr.mxu0 0.0
        %2609 = vmatpush2.msra.mxu0 0.0
        %2610 = vmatprep.mubr.f32.mxu0 0.0
        %2611 = vmatmul.mubr.f32.gmra.mxu0 %v2443
        %v2612 = vpop.f32.mrf.mxu0
        %v2613 = vadd.f32 0.0, %v2612
        %v2614 = vpop.f32.mrf.mxu0
        %2615 = vdwg.mxu0
        %s2616 = scalar_lea.vmem [#allocation2], 48
        %v2617 = vld [vmem:[%s2616] sm:$0xff]
        %v2618 = vadd.f32 %v2617, %v2613
        %v2619 = vtanh.pop %v2618
        %v2620 = vmul.f32 %v2619, %v835
        %v2621 = vadd.f32 %v2620, %v842
        %v2622 = vmul.f32 %v2621, %v2353
        %2624 = vrot.lane.b32.xlu0 %v2621, 64
        %v2625 = vpop.permute.xlu0 %2624
        %v2627 = vmul.f32 %v2621, %v2625
        %2629 = vrot.lane.b32.xlu0 %v2627, 32
        %v2630 = vpop.permute.xlu0 %2629
        %v2632 = vadd.f32 %v2622, %v2630
        %v2633 = vtanh.pop %v2632
        %2635 = vrot.lane.b32.xlu0 %v2633, 64
        %v2636 = vpop.permute.xlu0 %2635
        %v2638 = vmul.f32 %v2621, %v2636
        %v2639 = vld [vmem:[#allocation12] sm:$0xff]
        %v2640 = vld [vmem:[#allocation12 + $0x8] sm:$0xff]
        %v2641 = vld [vmem:[#allocation12 + $0x10] sm:$0xff]
        %v2642 = vld [vmem:[#allocation12 + $0x18] sm:$0xff]
        %v2643 = vsel %vm861, %v2538, 0
        %2645 = vmatprep.subr.mxu0 0.0
        %2646 = vmatpush1.msra.mxu0 0.0
        %2647 = vmatprep.subr.mxu0 0.0
        %2648 = vmatpush1.msra.mxu0 0.0
        %2649 = vmatprep.subr.mxu0 0.0
        %2650 = vmatpush1.msra.mxu0 0.0
        %2651 = vmatprep.subr.mxu0 0.0
        %2652 = vmatpush1.msra.mxu0 0.0
        %2653 = vmatprep.subr.mxu0 0.0
        %2654 = vmatpush1.msra.mxu0 0.0
        %2655 = vmatprep.subr.mxu0 0.0
        %2656 = vmatpush1.msra.mxu0 0.0
        %2657 = vmatprep.subr.mxu0 0.0
        %2658 = vmatpush1.msra.mxu0 0.0
        %2659 = vmatprep.subr.mxu0 0.0
        %2660 = vmatpush1.msra.mxu0 0.0
        %2661 = vmatprep.subr.mxu0 0.0
        %2662 = vmatpush1.msra.mxu0 0.0
        %2663 = vmatprep.subr.mxu0 0.0
        %2664 = vmatpush1.msra.mxu0 0.0
        %2665 = vmatprep.subr.mxu0 0.0
        %2666 = vmatpush1.msra.mxu0 0.0
        %2667 = vmatprep.subr.mxu0 0.0
        %2668 = vmatpush1.msra.mxu0 0.0
        %2669 = vmatprep.subr.mxu0 0.0
        %2670 = vmatpush1.msra.mxu0 %v2642
        %2671 = vmatprep.subr.mxu0 0.0
        %2672 = vmatpush1.msra.mxu0 %v2641
        %2673 = vmatprep.subr.mxu0 0.0
        %2674 = vmatpush1.msra.mxu0 %v2640
        %2675 = vmatprep.subr.mxu0 0.0
        %2676 = vmatpush1.msra.mxu0 %v2639
        %2677 = vmatprep.subr.mxu0 0.0
        %2678 = vmatpush2.msra.mxu0 0.0
        %2679 = vmatprep.subr.mxu0 0.0
        %2680 = vmatpush2.msra.mxu0 0.0
        %2681 = vmatprep.subr.mxu0 0.0
        %2682 = vmatpush2.msra.mxu0 0.0
        %2683 = vmatprep.subr.mxu0 0.0
        %2684 = vmatpush2.msra.mxu0 0.0
        %2685 = vmatprep.subr.mxu0 0.0
        %2686 = vmatpush2.msra.mxu0 0.0
        %2687 = vmatprep.subr.mxu0 0.0
        %2688 = vmatpush2.msra.mxu0 0.0
        %2689 = vmatprep.subr.mxu0 0.0
        %2690 = vmatpush2.msra.mxu0 0.0
        %2691 = vmatprep.subr.mxu0 0.0
        %2692 = vmatpush2.msra.mxu0 0.0
        %2693 = vmatprep.subr.mxu0 0.0
        %2694 = vmatpush2.msra.mxu0 0.0
        %2695 = vmatprep.subr.mxu0 0.0
        %2696 = vmatpush2.msra.mxu0 0.0
        %2697 = vmatprep.subr.mxu0 0.0
        %2698 = vmatpush2.msra.mxu0 0.0
        %2699 = vmatprep.subr.mxu0 0.0
        %2700 = vmatpush2.msra.mxu0 0.0
        %2701 = vmatprep.subr.mxu0 0.0
        %2702 = vmatpush2.msra.mxu0 0.0
        %2703 = vmatprep.subr.mxu0 0.0
        %2704 = vmatpush2.msra.mxu0 0.0
        %2705 = vmatprep.subr.mxu0 0.0
        %2706 = vmatpush2.msra.mxu0 0.0
        %2707 = vmatprep.subr.mxu0 0.0
        %2708 = vmatpush2.msra.mxu0 0.0
        %2709 = vmatprep.mubr.f32.mxu0 0.0
        %2710 = vmatmul.mubr.f32.gmra.mxu0 %v2643
        %v2711 = vpop.f32.mrf.mxu0
        %v2712 = vadd.f32 0.0, %v2711
        %v2713 = vpop.f32.mrf.mxu0
        %2714 = vdwg.mxu0
        %v2715 = vld [vmem:[#allocation10] sm:$0xff]
        %v2716 = vld [vmem:[#allocation10 + $0x8] sm:$0xff]
        %v2717 = vld [vmem:[#allocation10 + $0x10] sm:$0xff]
        %v2718 = vld [vmem:[#allocation10 + $0x18] sm:$0xff]
        %2720 = vrot.lane.b32.xlu0 %v2638, 32
        %v2721 = vpop.permute.xlu0 %2720
        %v2722 = vsel %vm861, %v2721, 0
        %2724 = vmatprep.subr.mxu0 0.0
        %2725 = vmatpush1.msra.mxu0 0.0
        %2726 = vmatprep.subr.mxu0 0.0
        %2727 = vmatpush1.msra.mxu0 0.0
        %2728 = vmatprep.subr.mxu0 0.0
        %2729 = vmatpush1.msra.mxu0 0.0
        %2730 = vmatprep.subr.mxu0 0.0
        %2731 = vmatpush1.msra.mxu0 0.0
        %2732 = vmatprep.subr.mxu0 0.0
        %2733 = vmatpush1.msra.mxu0 0.0
        %2734 = vmatprep.subr.mxu0 0.0
        %2735 = vmatpush1.msra.mxu0 0.0
        %2736 = vmatprep.subr.mxu0 0.0
        %2737 = vmatpush1.msra.mxu0 0.0
        %2738 = vmatprep.subr.mxu0 0.0
        %2739 = vmatpush1.msra.mxu0 0.0
        %2740 = vmatprep.subr.mxu0 0.0
        %2741 = vmatpush1.msra.mxu0 0.0
        %2742 = vmatprep.subr.mxu0 0.0
        %2743 = vmatpush1.msra.mxu0 0.0
        %2744 = vmatprep.subr.mxu0 0.0
        %2745 = vmatpush1.msra.mxu0 0.0
        %2746 = vmatprep.subr.mxu0 0.0
        %2747 = vmatpush1.msra.mxu0 0.0
        %2748 = vmatprep.subr.mxu0 0.0
        %2749 = vmatpush1.msra.mxu0 %v2718
        %2750 = vmatprep.subr.mxu0 0.0
        %2751 = vmatpush1.msra.mxu0 %v2717
        %2752 = vmatprep.subr.mxu0 0.0
        %2753 = vmatpush1.msra.mxu0 %v2716
        %2754 = vmatprep.subr.mxu0 0.0
        %2755 = vmatpush1.msra.mxu0 %v2715
        %2756 = vmatprep.subr.mxu0 0.0
        %2757 = vmatpush2.msra.mxu0 0.0
        %2758 = vmatprep.subr.mxu0 0.0
        %2759 = vmatpush2.msra.mxu0 0.0
        %2760 = vmatprep.subr.mxu0 0.0
        %2761 = vmatpush2.msra.mxu0 0.0
        %2762 = vmatprep.subr.mxu0 0.0
        %2763 = vmatpush2.msra.mxu0 0.0
        %2764 = vmatprep.subr.mxu0 0.0
        %2765 = vmatpush2.msra.mxu0 0.0
        %2766 = vmatprep.subr.mxu0 0.0
        %2767 = vmatpush2.msra.mxu0 0.0
        %2768 = vmatprep.subr.mxu0 0.0
        %2769 = vmatpush2.msra.mxu0 0.0
        %2770 = vmatprep.subr.mxu0 0.0
        %2771 = vmatpush2.msra.mxu0 0.0
        %2772 = vmatprep.subr.mxu0 0.0
        %2773 = vmatpush2.msra.mxu0 0.0
        %2774 = vmatprep.subr.mxu0 0.0
        %2775 = vmatpush2.msra.mxu0 0.0
        %2776 = vmatprep.subr.mxu0 0.0
        %2777 = vmatpush2.msra.mxu0 0.0
        %2778 = vmatprep.subr.mxu0 0.0
        %2779 = vmatpush2.msra.mxu0 0.0
        %2780 = vmatprep.subr.mxu0 0.0
        %2781 = vmatpush2.msra.mxu0 0.0
        %2782 = vmatprep.subr.mxu0 0.0
        %2783 = vmatpush2.msra.mxu0 0.0
        %2784 = vmatprep.subr.mxu0 0.0
        %2785 = vmatpush2.msra.mxu0 0.0
        %2786 = vmatprep.subr.mxu0 0.0
        %2787 = vmatpush2.msra.mxu0 0.0
        %2788 = vmatprep.mubr.f32.mxu0 0.0
        %2789 = vmatmul.mubr.f32.gmra.mxu0 %v2722
        %v2790 = vpop.f32.mrf.mxu0
        %v2791 = vadd.f32 %v2712, %v2790
        %v2792 = vpop.f32.mrf.mxu0
        %2793 = vdwg.mxu0
        %v2794 = vadd.f32 %v2791, %v849
        %v2795 = vtanh.pop %v2794
        %v2796 = vmul.f32 %v2795, %v835
        %v2797 = vadd.f32 %v2796, %v842
        %v2798 = vmul.f32 %v2797, %v2529
        %2800 = vrot.lane.b32.xlu0 %v2797, 64
        %v2801 = vpop.permute.xlu0 %2800
        %v2803 = vmul.f32 %v2797, %v2801
        %2805 = vrot.lane.b32.xlu0 %v2803, 32
        %v2806 = vpop.permute.xlu0 %2805
        %v2808 = vadd.f32 %v2798, %v2806
        %v2809 = vtanh.pop %v2808
        %2811 = vrot.lane.b32.xlu0 %v2809, 64
        %v2812 = vpop.permute.xlu0 %2811
        %v2814 = vmul.f32 %v2797, %v2812
        %2816 = vrot.lane.b32.xlu0 %v2814, 32
        %v2817 = vpop.permute.xlu0 %2816
        %s2819 = scalar_lea.vmem [#allocation3], 48
        %2820 = vst.msk [vmem:[%s2819] sm:$0xff] %vm861, %v2817
        %v2821 = vld [vmem:[#allocation9] sm:$0xff]
        %v2822 = vld [vmem:[#allocation9 + $0x8] sm:$0xff]
        %v2823 = vld [vmem:[#allocation9 + $0x10] sm:$0xff]
        %v2824 = vld [vmem:[#allocation9 + $0x18] sm:$0xff]
        %2825 = vmatprep.subr.mxu0 0.0
        %2826 = vmatpush1.msra.mxu0 0.0
        %2827 = vmatprep.subr.mxu0 0.0
        %2828 = vmatpush1.msra.mxu0 0.0
        %2829 = vmatprep.subr.mxu0 0.0
        %2830 = vmatpush1.msra.mxu0 0.0
        %2831 = vmatprep.subr.mxu0 0.0
        %2832 = vmatpush1.msra.mxu0 0.0
        %2833 = vmatprep.subr.mxu0 0.0
        %2834 = vmatpush1.msra.mxu0 0.0
        %2835 = vmatprep.subr.mxu0 0.0
        %2836 = vmatpush1.msra.mxu0 0.0
        %2837 = vmatprep.subr.mxu0 0.0
        %2838 = vmatpush1.msra.mxu0 0.0
        %2839 = vmatprep.subr.mxu0 0.0
        %2840 = vmatpush1.msra.mxu0 0.0
        %2841 = vmatprep.subr.mxu0 0.0
        %2842 = vmatpush1.msra.mxu0 0.0
        %2843 = vmatprep.subr.mxu0 0.0
        %2844 = vmatpush1.msra.mxu0 0.0
        %2845 = vmatprep.subr.mxu0 0.0
        %2846 = vmatpush1.msra.mxu0 0.0
        %2847 = vmatprep.subr.mxu0 0.0
        %2848 = vmatpush1.msra.mxu0 0.0
        %2849 = vmatprep.subr.mxu0 0.0
        %2850 = vmatpush1.msra.mxu0 %v2824
        %2851 = vmatprep.subr.mxu0 0.0
        %2852 = vmatpush1.msra.mxu0 %v2823
        %2853 = vmatprep.subr.mxu0 0.0
        %2854 = vmatpush1.msra.mxu0 %v2822
        %2855 = vmatprep.subr.mxu0 0.0
        %2856 = vmatpush1.msra.mxu0 %v2821
        %2857 = vmatprep.subr.mxu0 0.0
        %2858 = vmatpush2.msra.mxu0 0.0
        %2859 = vmatprep.subr.mxu0 0.0
        %2860 = vmatpush2.msra.mxu0 0.0
        %2861 = vmatprep.subr.mxu0 0.0
        %2862 = vmatpush2.msra.mxu0 0.0
        %2863 = vmatprep.subr.mxu0 0.0
        %2864 = vmatpush2.msra.mxu0 0.0
        %2865 = vmatprep.subr.mxu0 0.0
        %2866 = vmatpush2.msra.mxu0 0.0
        %2867 = vmatprep.subr.mxu0 0.0
        %2868 = vmatpush2.msra.mxu0 0.0
        %2869 = vmatprep.subr.mxu0 0.0
        %2870 = vmatpush2.msra.mxu0 0.0
        %2871 = vmatprep.subr.mxu0 0.0
        %2872 = vmatpush2.msra.mxu0 0.0
        %2873 = vmatprep.subr.mxu0 0.0
        %2874 = vmatpush2.msra.mxu0 0.0
        %2875 = vmatprep.subr.mxu0 0.0
        %2876 = vmatpush2.msra.mxu0 0.0
        %2877 = vmatprep.subr.mxu0 0.0
        %2878 = vmatpush2.msra.mxu0 0.0
        %2879 = vmatprep.subr.mxu0 0.0
        %2880 = vmatpush2.msra.mxu0 0.0
        %2881 = vmatprep.subr.mxu0 0.0
        %2882 = vmatpush2.msra.mxu0 0.0
        %2883 = vmatprep.subr.mxu0 0.0
        %2884 = vmatpush2.msra.mxu0 0.0
        %2885 = vmatprep.subr.mxu0 0.0
        %2886 = vmatpush2.msra.mxu0 0.0
        %2887 = vmatprep.subr.mxu0 0.0
        %2888 = vmatpush2.msra.mxu0 0.0
        %2889 = vmatprep.mubr.f32.mxu0 0.0
        %2890 = vmatmul.mubr.f32.gmra.mxu0 %v2722
        %v2891 = vpop.f32.mrf.mxu0
        %v2892 = vadd.f32 0.0, %v2891
        %v2893 = vpop.f32.mrf.mxu0
        %2894 = vdwg.mxu0
        %s2895 = scalar_lea.vmem [#allocation2], 56
        %v2896 = vld [vmem:[%s2895] sm:$0xff]
        %v2897 = vadd.f32 %v2896, %v2892
        %v2898 = vtanh.pop %v2897
        %v2899 = vmul.f32 %v2898, %v835
        %v2900 = vadd.f32 %v2899, %v842
        %v2901 = vmul.f32 %v2900, %v2632
        %2903 = vrot.lane.b32.xlu0 %v2900, 64
        %v2904 = vpop.permute.xlu0 %2903
        %v2906 = vmul.f32 %v2900, %v2904
        %2908 = vrot.lane.b32.xlu0 %v2906, 32
        %v2909 = vpop.permute.xlu0 %2908
        %v2911 = vadd.f32 %v2901, %v2909
        %v2912 = vtanh.pop %v2911
        %2914 = vrot.lane.b32.xlu0 %v2912, 64
        %v2915 = vpop.permute.xlu0 %2914
        %v2917 = vmul.f32 %v2900, %v2915
        %v2918 = vld [vmem:[#allocation12] sm:$0xff]
        %v2919 = vld [vmem:[#allocation12 + $0x8] sm:$0xff]
        %v2920 = vld [vmem:[#allocation12 + $0x10] sm:$0xff]
        %v2921 = vld [vmem:[#allocation12 + $0x18] sm:$0xff]
        %v2922 = vsel %vm861, %v2817, 0
        %2924 = vmatprep.subr.mxu0 0.0
        %2925 = vmatpush1.msra.mxu0 0.0
        %2926 = vmatprep.subr.mxu0 0.0
        %2927 = vmatpush1.msra.mxu0 0.0
        %2928 = vmatprep.subr.mxu0 0.0
        %2929 = vmatpush1.msra.mxu0 0.0
        %2930 = vmatprep.subr.mxu0 0.0
        %2931 = vmatpush1.msra.mxu0 0.0
        %2932 = vmatprep.subr.mxu0 0.0
        %2933 = vmatpush1.msra.mxu0 0.0
        %2934 = vmatprep.subr.mxu0 0.0
        %2935 = vmatpush1.msra.mxu0 0.0
        %2936 = vmatprep.subr.mxu0 0.0
        %2937 = vmatpush1.msra.mxu0 0.0
        %2938 = vmatprep.subr.mxu0 0.0
        %2939 = vmatpush1.msra.mxu0 0.0
        %2940 = vmatprep.subr.mxu0 0.0
        %2941 = vmatpush1.msra.mxu0 0.0
        %2942 = vmatprep.subr.mxu0 0.0
        %2943 = vmatpush1.msra.mxu0 0.0
        %2944 = vmatprep.subr.mxu0 0.0
        %2945 = vmatpush1.msra.mxu0 0.0
        %2946 = vmatprep.subr.mxu0 0.0
        %2947 = vmatpush1.msra.mxu0 0.0
        %2948 = vmatprep.subr.mxu0 0.0
        %2949 = vmatpush1.msra.mxu0 %v2921
        %2950 = vmatprep.subr.mxu0 0.0
        %2951 = vmatpush1.msra.mxu0 %v2920
        %2952 = vmatprep.subr.mxu0 0.0
        %2953 = vmatpush1.msra.mxu0 %v2919
        %2954 = vmatprep.subr.mxu0 0.0
        %2955 = vmatpush1.msra.mxu0 %v2918
        %2956 = vmatprep.subr.mxu0 0.0
        %2957 = vmatpush2.msra.mxu0 0.0
        %2958 = vmatprep.subr.mxu0 0.0
        %2959 = vmatpush2.msra.mxu0 0.0
        %2960 = vmatprep.subr.mxu0 0.0
        %2961 = vmatpush2.msra.mxu0 0.0
        %2962 = vmatprep.subr.mxu0 0.0
        %2963 = vmatpush2.msra.mxu0 0.0
        %2964 = vmatprep.subr.mxu0 0.0
        %2965 = vmatpush2.msra.mxu0 0.0
        %2966 = vmatprep.subr.mxu0 0.0
        %2967 = vmatpush2.msra.mxu0 0.0
        %2968 = vmatprep.subr.mxu0 0.0
        %2969 = vmatpush2.msra.mxu0 0.0
        %2970 = vmatprep.subr.mxu0 0.0
        %2971 = vmatpush2.msra.mxu0 0.0
        %2972 = vmatprep.subr.mxu0 0.0
        %2973 = vmatpush2.msra.mxu0 0.0
        %2974 = vmatprep.subr.mxu0 0.0
        %2975 = vmatpush2.msra.mxu0 0.0
        %2976 = vmatprep.subr.mxu0 0.0
        %2977 = vmatpush2.msra.mxu0 0.0
        %2978 = vmatprep.subr.mxu0 0.0
        %2979 = vmatpush2.msra.mxu0 0.0
        %2980 = vmatprep.subr.mxu0 0.0
        %2981 = vmatpush2.msra.mxu0 0.0
        %2982 = vmatprep.subr.mxu0 0.0
        %2983 = vmatpush2.msra.mxu0 0.0
        %2984 = vmatprep.subr.mxu0 0.0
        %2985 = vmatpush2.msra.mxu0 0.0
        %2986 = vmatprep.subr.mxu0 0.0
        %2987 = vmatpush2.msra.mxu0 0.0
        %2988 = vmatprep.mubr.f32.mxu0 0.0
        %2989 = vmatmul.mubr.f32.gmra.mxu0 %v2922
        %v2990 = vpop.f32.mrf.mxu0
        %v2991 = vadd.f32 0.0, %v2990
        %v2992 = vpop.f32.mrf.mxu0
        %2993 = vdwg.mxu0
        %v2994 = vld [vmem:[#allocation10] sm:$0xff]
        %v2995 = vld [vmem:[#allocation10 + $0x8] sm:$0xff]
        %v2996 = vld [vmem:[#allocation10 + $0x10] sm:$0xff]
        %v2997 = vld [vmem:[#allocation10 + $0x18] sm:$0xff]
        %2999 = vrot.lane.b32.xlu0 %v2917, 32
        %v3000 = vpop.permute.xlu0 %2999
        %v3001 = vsel %vm861, %v3000, 0
        %3003 = vmatprep.subr.mxu0 0.0
        %3004 = vmatpush1.msra.mxu0 0.0
        %3005 = vmatprep.subr.mxu0 0.0
        %3006 = vmatpush1.msra.mxu0 0.0
        %3007 = vmatprep.subr.mxu0 0.0
        %3008 = vmatpush1.msra.mxu0 0.0
        %3009 = vmatprep.subr.mxu0 0.0
        %3010 = vmatpush1.msra.mxu0 0.0
        %3011 = vmatprep.subr.mxu0 0.0
        %3012 = vmatpush1.msra.mxu0 0.0
        %3013 = vmatprep.subr.mxu0 0.0
        %3014 = vmatpush1.msra.mxu0 0.0
        %3015 = vmatprep.subr.mxu0 0.0
        %3016 = vmatpush1.msra.mxu0 0.0
        %3017 = vmatprep.subr.mxu0 0.0
        %3018 = vmatpush1.msra.mxu0 0.0
        %3019 = vmatprep.subr.mxu0 0.0
        %3020 = vmatpush1.msra.mxu0 0.0
        %3021 = vmatprep.subr.mxu0 0.0
        %3022 = vmatpush1.msra.mxu0 0.0
        %3023 = vmatprep.subr.mxu0 0.0
        %3024 = vmatpush1.msra.mxu0 0.0
        %3025 = vmatprep.subr.mxu0 0.0
        %3026 = vmatpush1.msra.mxu0 0.0
        %3027 = vmatprep.subr.mxu0 0.0
        %3028 = vmatpush1.msra.mxu0 %v2997
        %3029 = vmatprep.subr.mxu0 0.0
        %3030 = vmatpush1.msra.mxu0 %v2996
        %3031 = vmatprep.subr.mxu0 0.0
        %3032 = vmatpush1.msra.mxu0 %v2995
        %3033 = vmatprep.subr.mxu0 0.0
        %3034 = vmatpush1.msra.mxu0 %v2994
        %3035 = vmatprep.subr.mxu0 0.0
        %3036 = vmatpush2.msra.mxu0 0.0
        %3037 = vmatprep.subr.mxu0 0.0
        %3038 = vmatpush2.msra.mxu0 0.0
        %3039 = vmatprep.subr.mxu0 0.0
        %3040 = vmatpush2.msra.mxu0 0.0
        %3041 = vmatprep.subr.mxu0 0.0
        %3042 = vmatpush2.msra.mxu0 0.0
        %3043 = vmatprep.subr.mxu0 0.0
        %3044 = vmatpush2.msra.mxu0 0.0
        %3045 = vmatprep.subr.mxu0 0.0
        %3046 = vmatpush2.msra.mxu0 0.0
        %3047 = vmatprep.subr.mxu0 0.0
        %3048 = vmatpush2.msra.mxu0 0.0
        %3049 = vmatprep.subr.mxu0 0.0
        %3050 = vmatpush2.msra.mxu0 0.0
        %3051 = vmatprep.subr.mxu0 0.0
        %3052 = vmatpush2.msra.mxu0 0.0
        %3053 = vmatprep.subr.mxu0 0.0
        %3054 = vmatpush2.msra.mxu0 0.0
        %3055 = vmatprep.subr.mxu0 0.0
        %3056 = vmatpush2.msra.mxu0 0.0
        %3057 = vmatprep.subr.mxu0 0.0
        %3058 = vmatpush2.msra.mxu0 0.0
        %3059 = vmatprep.subr.mxu0 0.0
        %3060 = vmatpush2.msra.mxu0 0.0
        %3061 = vmatprep.subr.mxu0 0.0
        %3062 = vmatpush2.msra.mxu0 0.0
        %3063 = vmatprep.subr.mxu0 0.0
        %3064 = vmatpush2.msra.mxu0 0.0
        %3065 = vmatprep.subr.mxu0 0.0
        %3066 = vmatpush2.msra.mxu0 0.0
        %3067 = vmatprep.mubr.f32.mxu0 0.0
        %3068 = vmatmul.mubr.f32.gmra.mxu0 %v3001
        %v3069 = vpop.f32.mrf.mxu0
        %v3070 = vadd.f32 %v2991, %v3069
        %v3071 = vpop.f32.mrf.mxu0
        %3072 = vdwg.mxu0
        %v3073 = vadd.f32 %v3070, %v849
        %v3074 = vtanh.pop %v3073
        %v3075 = vmul.f32 %v3074, %v835
        %v3076 = vadd.f32 %v3075, %v842
        %v3077 = vmul.f32 %v3076, %v2808
        %3079 = vrot.lane.b32.xlu0 %v3076, 64
        %v3080 = vpop.permute.xlu0 %3079
        %v3082 = vmul.f32 %v3076, %v3080
        %3084 = vrot.lane.b32.xlu0 %v3082, 32
        %v3085 = vpop.permute.xlu0 %3084
        %v3087 = vadd.f32 %v3077, %v3085
        %v3088 = vtanh.pop %v3087
        %3090 = vrot.lane.b32.xlu0 %v3088, 64
        %v3091 = vpop.permute.xlu0 %3090
        %v3093 = vmul.f32 %v3076, %v3091
        %3095 = vrot.lane.b32.xlu0 %v3093, 32
        %v3096 = vpop.permute.xlu0 %3095
        %s3098 = scalar_lea.vmem [#allocation3], 56
        %3099 = vst.msk [vmem:[%s3098] sm:$0xff] %vm861, %v3096
        %3101 = vst.msk [vmem:[%s667] sm:$0xff] %vm861, %v3000
        %3103 = vrot.lane.b32.xlu0 %v2911, 96
        %v3104 = vpop.permute.xlu0 %3103
        %3106 = vst.msk [vmem:[%s674] sm:$0xff] %vm861, %v3104
        %s3107 = scalar_lea.vmem %s667, 8 [#allocation18]
        %3108 = vst.msk [vmem:[%s3107] sm:$0xff] %vm861, %v3096
        %3110 = vrot.lane.b32.xlu0 %v3087, 96
        %v3111 = vpop.permute.xlu0 %3110
        %s3113 = scalar_lea.vmem %s674, 8 [#allocation20]
        %3114 = vst.msk [vmem:[%s3113] sm:$0xff] %vm861, %v3111
        %v3115 = vld [vmem:[#allocation3] sm:$0xff]
        %v3116 = vld [vmem:[#allocation3 + $0x8] sm:$0xff]
        %v3117 = vld [vmem:[#allocation3 + $0x10] sm:$0xff]
        %v3118 = vld [vmem:[#allocation3 + $0x18] sm:$0xff]
        %v3119 = vld [vmem:[#allocation3 + $0x20] sm:$0xff]
        %v3120 = vld [vmem:[#allocation3 + $0x28] sm:$0xff]
        %v3121 = vld [vmem:[#allocation3 + $0x30] sm:$0xff]
        %v3122 = vld [vmem:[#allocation3 + $0x38] sm:$0xff]
        %v3123 = vld [vmem:[#allocation13] sm:$0xff]
        %v3124 = vld [vmem:[#allocation13 + $0x8] sm:$0xff]
        %v3125 = vld [vmem:[#allocation13 + $0x10] sm:$0xff]
        %v3126 = vld [vmem:[#allocation13 + $0x18] sm:$0xff]
        %v3127 = vld [vmem:[%s8] sm:$0x1]
        %v3129 = vlaneseq
        %v3130 = vshrl.u32 %v3129, 7
        %v3131 = vsub.s32 0, %v3130
        %v3132 = vrot.slane %v3127, %v3131
        %v3135 = vsel %vm861, %v3115, 0
        %v3138 = vsel %vm861, %v3116, 0
        %v3141 = vsel %vm861, %v3117, 0
        %v3144 = vsel %vm861, %v3118, 0
        %v3147 = vsel %vm861, %v3119, 0
        %v3150 = vsel %vm861, %v3120, 0
        %v3153 = vsel %vm861, %v3121, 0
        %v3156 = vsel %vm861, %v3122, 0
        %3158 = vmatprep.subr.mxu0 0.0
        %3159 = vmatpush1.msra.mxu0 0.0
        %3160 = vmatprep.subr.mxu0 0.0
        %3161 = vmatpush1.msra.mxu0 0.0
        %3162 = vmatprep.subr.mxu0 0.0
        %3163 = vmatpush1.msra.mxu0 0.0
        %3164 = vmatprep.subr.mxu0 0.0
        %3165 = vmatpush1.msra.mxu0 0.0
        %3166 = vmatprep.subr.mxu0 0.0
        %3167 = vmatpush1.msra.mxu0 0.0
        %3168 = vmatprep.subr.mxu0 0.0
        %3169 = vmatpush1.msra.mxu0 0.0
        %3170 = vmatprep.subr.mxu0 0.0
        %3171 = vmatpush1.msra.mxu0 0.0
        %3172 = vmatprep.subr.mxu0 0.0
        %3173 = vmatpush1.msra.mxu0 0.0
        %3174 = vmatprep.subr.mxu0 0.0
        %3175 = vmatpush1.msra.mxu0 0.0
        %3176 = vmatprep.subr.mxu0 0.0
        %3177 = vmatpush1.msra.mxu0 0.0
        %3178 = vmatprep.subr.mxu0 0.0
        %3179 = vmatpush1.msra.mxu0 0.0
        %3180 = vmatprep.subr.mxu0 0.0
        %3181 = vmatpush1.msra.mxu0 0.0
        %3182 = vmatprep.subr.mxu0 0.0
        %3183 = vmatpush1.msra.mxu0 %v3126
        %3184 = vmatprep.subr.mxu0 0.0
        %3185 = vmatpush1.msra.mxu0 %v3125
        %3186 = vmatprep.subr.mxu0 0.0
        %3187 = vmatpush1.msra.mxu0 %v3124
        %3188 = vmatprep.subr.mxu0 0.0
        %3189 = vmatpush1.msra.mxu0 %v3123
        %3190 = vmatprep.subr.mxu0 0.0
        %3191 = vmatpush2.msra.mxu0 0.0
        %3192 = vmatprep.subr.mxu0 0.0
        %3193 = vmatpush2.msra.mxu0 0.0
        %3194 = vmatprep.subr.mxu0 0.0
        %3195 = vmatpush2.msra.mxu0 0.0
        %3196 = vmatprep.subr.mxu0 0.0
        %3197 = vmatpush2.msra.mxu0 0.0
        %3198 = vmatprep.subr.mxu0 0.0
        %3199 = vmatpush2.msra.mxu0 0.0
        %3200 = vmatprep.subr.mxu0 0.0
        %3201 = vmatpush2.msra.mxu0 0.0
        %3202 = vmatprep.subr.mxu0 0.0
        %3203 = vmatpush2.msra.mxu0 0.0
        %3204 = vmatprep.subr.mxu0 0.0
        %3205 = vmatpush2.msra.mxu0 0.0
        %3206 = vmatprep.subr.mxu0 0.0
        %3207 = vmatpush2.msra.mxu0 0.0
        %3208 = vmatprep.subr.mxu0 0.0
        %3209 = vmatpush2.msra.mxu0 0.0
        %3210 = vmatprep.subr.mxu0 0.0
        %3211 = vmatpush2.msra.mxu0 0.0
        %3212 = vmatprep.subr.mxu0 0.0
        %3213 = vmatpush2.msra.mxu0 0.0
        %3214 = vmatprep.subr.mxu0 0.0
        %3215 = vmatpush2.msra.mxu0 0.0
        %3216 = vmatprep.subr.mxu0 0.0
        %3217 = vmatpush2.msra.mxu0 0.0
        %3218 = vmatprep.subr.mxu0 0.0
        %3219 = vmatpush2.msra.mxu0 0.0
        %3220 = vmatprep.subr.mxu0 0.0
        %3221 = vmatpush2.msra.mxu0 0.0
        %3222 = vmatprep.mubr.f32.mxu0 0.0
        %3223 = vmatmul.mubr.f32.gmra.mxu0 %v3135
        %v3224 = vpop.f32.mrf.mxu0
        %v3225 = vadd.f32 %v3132, %v3224
        %v3226 = vpop.f32.mrf.mxu0
        %3227 = vmatprep.mubr.f32.mxu0 0.0
        %3228 = vmatmul.mubr.f32.gmra.mxu0 %v3138
        %v3229 = vpop.f32.mrf.mxu0
        %v3230 = vadd.f32 %v3132, %v3229
        %v3231 = vpop.f32.mrf.mxu0
        %3232 = vmatprep.mubr.f32.mxu0 0.0
        %3233 = vmatmul.mubr.f32.gmra.mxu0 %v3141
        %v3234 = vpop.f32.mrf.mxu0
        %v3235 = vadd.f32 %v3132, %v3234
        %v3236 = vpop.f32.mrf.mxu0
        %3237 = vmatprep.mubr.f32.mxu0 0.0
        %3238 = vmatmul.mubr.f32.gmra.mxu0 %v3144
        %v3239 = vpop.f32.mrf.mxu0
        %v3240 = vadd.f32 %v3132, %v3239
        %v3241 = vpop.f32.mrf.mxu0
        %3242 = vmatprep.mubr.f32.mxu0 0.0
        %3243 = vmatmul.mubr.f32.gmra.mxu0 %v3147
        %v3244 = vpop.f32.mrf.mxu0
        %v3245 = vadd.f32 %v3132, %v3244
        %v3246 = vpop.f32.mrf.mxu0
        %3247 = vmatprep.mubr.f32.mxu0 0.0
        %3248 = vmatmul.mubr.f32.gmra.mxu0 %v3150
        %v3249 = vpop.f32.mrf.mxu0
        %v3250 = vadd.f32 %v3132, %v3249
        %v3251 = vpop.f32.mrf.mxu0
        %3252 = vmatprep.mubr.f32.mxu0 0.0
        %3253 = vmatmul.mubr.f32.gmra.mxu0 %v3153
        %v3254 = vpop.f32.mrf.mxu0
        %v3255 = vadd.f32 %v3132, %v3254
        %v3256 = vpop.f32.mrf.mxu0
        %3257 = vmatprep.mubr.f32.mxu0 0.0
        %3258 = vmatmul.mubr.f32.gmra.mxu0 %v3156
        %v3259 = vpop.f32.mrf.mxu0
        %v3260 = vadd.f32 %v3132, %v3259
        %v3261 = vpop.f32.mrf.mxu0
        %3262 = vdwg.mxu0
        %v3263 = vtanh.pop %v3225
        %v3264 = vtanh.pop %v3230
        %v3265 = vtanh.pop %v3235
        %v3266 = vtanh.pop %v3240
        %v3267 = vtanh.pop %v3245
        %v3268 = vtanh.pop %v3250
        %v3269 = vtanh.pop %v3255
        %v3270 = vtanh.pop %v3260
        %3271 = vst [vmem:[%s660] sm:$0xff] %v3263
        %3272 = vst [vmem:[%s660 + $0x8] sm:$0xff] %v3264
        %3273 = vst [vmem:[%s660 + $0x10] sm:$0xff] %v3265
        %3274 = vst [vmem:[%s660 + $0x18] sm:$0xff] %v3266
        %3275 = vst [vmem:[%s660 + $0x20] sm:$0xff] %v3267
        %3276 = vst [vmem:[%s660 + $0x28] sm:$0xff] %v3268
        %3277 = vst [vmem:[%s660 + $0x30] sm:$0xff] %v3269
        %3278 = vst [vmem:[%s660 + $0x38] sm:$0xff] %v3270
        %s3279 = sand.u32 %s335, 1
        %s3280 = scalar_lea.sflag [#allocation6], %s3279
        %s3281 = sand.u32 %s335, 1
        %s3282 = smul.addr %s3281, 64
        %s3283 = scalar_lea.vmem [#allocation17], %s3282
        %s3284 = sand.u32 %s39, 1
        %s3285 = scalar_lea.sflag [#allocation19], %s3284
        %s3286 = sand.u32 %s361, 1
        %s3287 = smul.addr %s3286, 16
        %s3288 = scalar_lea.vmem [#allocation18], %s3287
        %s3289 = sand.u32 %s39, 1
        %s3290 = scalar_lea.sflag [#allocation19], %s3289
        %s3291 = sand.u32 %s387, 1
        %s3292 = smul.addr %s3291, 16
        %s3293 = scalar_lea.vmem [#allocation20], %s3292
        // Predicated region
        $region105: #{tpu_custom_call.1} parent=71 // pred_check
          %p3294 = pneg %p345
        $region106: #{tpu_custom_call.1} parent=71 // pred_check_branch
          %3296 = sbr.rel (%p3294) target = $region108
        $region107: #{tpu_custom_call.1} parent=71 // pred_region
          %s3298 = ssub.s32 1024, 1024
          %3299 = vsyncadd %s3280, %s3298
          %s3300 = smul.addr %s39, 128
          %s3301 = scalar_lea.hbm %s13, %s3300
          %s3302 = sshll.u32 %s3283, 4
          %s3303 = int_to_ptr.vmem [resolvable:$true] %s3302
          %3308 = dma.vmem_to_hbm [thread:$0]  %s3303, 1024, %s3301, %s3280, 128, 256, 8
        $region108: #{tpu_custom_call.1} parent=71 // pred_fallthru
          _
        // Predicated region
        $region109: #{tpu_custom_call.1} parent=71 // pred_check
          %p3309 = pneg %p371
        $region110: #{tpu_custom_call.1} parent=71 // pred_check_branch
          %3311 = sbr.rel (%p3309) target = $region112
        $region111: #{tpu_custom_call.1} parent=71 // pred_region
          %s3313 = ssub.s32 256, 256
          %3314 = vsyncadd %s3285, %s3313
          %s3315 = smul.addr %s39, 128
          %s3316 = scalar_lea.hbm %s14, %s3315
          %s3317 = sshll.u32 %s3288, 4
          %s3318 = int_to_ptr.vmem [resolvable:$true] %s3317
          %3323 = dma.vmem_to_hbm [thread:$0]  %s3318, 256, %s3316, %s3285, 128, 256, 8
        $region112: #{tpu_custom_call.1} parent=71 // pred_fallthru
          _
        // Predicated region
        $region113: #{tpu_custom_call.1} parent=71 // pred_check
          %p3324 = pneg %p397
        $region114: #{tpu_custom_call.1} parent=71 // pred_check_branch
          %3326 = sbr.rel (%p3324) target = $region116
        $region115: #{tpu_custom_call.1} parent=71 // pred_region
          %s3328 = ssub.s32 256, 256
          %3329 = vsyncadd %s3290, %s3328
          %s3330 = smul.addr %s39, 128
          %s3331 = scalar_lea.hbm %s15, %s3330
          %s3332 = sshll.u32 %s3293, 4
          %s3333 = int_to_ptr.vmem [resolvable:$true] %s3332
          %3338 = dma.vmem_to_hbm [thread:$0]  %s3333, 256, %s3331, %s3290, 128, 256, 8
        $region116: #{tpu_custom_call.1} parent=71 // pred_fallthru
          _
      $region72: #{tpu_custom_call.1} parent=5 // pred_fallthru
        _
      %p3339 = scmp.le.s32.totalorder 2, %s34
      // Predicated region
      $region117: #{tpu_custom_call.1} parent=5 // pred_check
        %p3340 = pneg %p3339
      $region118: #{tpu_custom_call.1} parent=5 // pred_check_branch
        %3342 = sbr.rel (%p3340) target = $region120
      $region119: #{tpu_custom_call.1} parent=5 // pred_region
        %s3343 = ssub.s32 %s34, 2
        // Predicated region
        $region121: #{tpu_custom_call.1} parent=119 // pred_check
          %p3344 = pneg %p351
        $region122: #{tpu_custom_call.1} parent=119 // pred_check_branch
          %3346 = sbr.rel (%p3344) target = $region124
        $region123: #{tpu_custom_call.1} parent=119 // pred_region
          %s3347 = sand.u32 %s336, 1
          %s3348 = scalar_lea.sflag [#allocation6], %s3347
          %s3349 = sand.u32 %s336, 1
          %s3350 = smul.addr %s3349, 64
          %s3351 = scalar_lea.vmem [#allocation17], %s3350
          %3352 = dma.done %s3348, 1024
        $region124: #{tpu_custom_call.1} parent=119 // pred_fallthru
          _
        // Predicated region
        $region125: #{tpu_custom_call.1} parent=119 // pred_check
          %p3353 = pneg %p377
        $region126: #{tpu_custom_call.1} parent=119 // pred_check_branch
          %3355 = sbr.rel (%p3353) target = $region128
        $region127: #{tpu_custom_call.1} parent=119 // pred_region
          %s3356 = sand.u32 %s40, 1
          %s3357 = scalar_lea.sflag [#allocation19], %s3356
          %s3358 = sand.u32 %s362, 1
          %s3359 = smul.addr %s3358, 16
          %s3360 = scalar_lea.vmem [#allocation18], %s3359
          %3361 = dma.done %s3357, 256
        $region128: #{tpu_custom_call.1} parent=119 // pred_fallthru
          _
        // Predicated region
        $region129: #{tpu_custom_call.1} parent=119 // pred_check
          %p3362 = pneg %p403
        $region130: #{tpu_custom_call.1} parent=119 // pred_check_branch
          %3364 = sbr.rel (%p3362) target = $region132
        $region131: #{tpu_custom_call.1} parent=119 // pred_region
          %s3365 = sand.u32 %s40, 1
          %s3366 = scalar_lea.sflag [#allocation19], %s3365
          %s3367 = sand.u32 %s388, 1
          %s3368 = smul.addr %s3367, 16
          %s3369 = scalar_lea.vmem [#allocation20], %s3368
          %3370 = dma.done %s3366, 256
        $region132: #{tpu_custom_call.1} parent=119 // pred_fallthru
          _
      $region120: #{tpu_custom_call.1} parent=5 // pred_fallthru
        _
    $region6: #{tpu_custom_call.1} parent=1 // loop_footer
      %s38 = sadd.s32 1, %s34
    $region7: #{tpu_custom_call.1} parent=1 // loop_footer_branch
      %33 = sbr.rel target = $region3
    $region8: #{tpu_custom_call.1} parent=1 // loop_exit
      _
    %3371 = vsyncpa [#allocation5], 1
    %s3372 = scalar_lea.sflag [#allocation5], 1
    %3373 = vsyncpa %s3372, 1
    %3374 = vsyncpa [#allocation8], 1
    %3375 = vsyncpa [#allocation11], 1
    %3376 = vsyncpa [#allocation14], 1
    %3377 = vsyncpa [#allocation6], 1
    %s3378 = scalar_lea.sflag [#allocation6], 1
    %3379 = vsyncpa %s3378, 1
    %3380 = vsyncpa [#allocation19], 1
    %s3381 = scalar_lea.sflag [#allocation19], 1
    %3382 = vsyncpa %s3381, 1

</llo_original>
